<compile_context>
chip_gen: v6e
topology: v6e:2x2x1
jax: 0.10.0
libtpu: 0.0.40
codegen_flags: <defaults>
</compile_context>

<pallas_src>
import math

import numpy as np
import jax
import jax.numpy as jnp
from jax import lax
from jax.experimental import pallas as pl
from jax.experimental.pallas import tpu as pltpu

# ---- static module config (mirrors SourceModuleHnNSF.__init__) ----
SAMPLING_RATE = 16000
HARMONIC_NUM = 7                 # -> dim = harmonic_num + 1 = 8
DIM = HARMONIC_NUM + 1
SINE_AMP = 0.1
NOISE_STD = 0.003
VOICED_THRESHOLD = 0.0
TWO_PI = 2.0 * math.pi


def _frac(x):
    return x - jnp.floor(x)


# --------------------------------------------------------------------------------------
# Pallas kernel: one (batch, frame-tile) grid step, transposed (upp, frame_tile) layout.
# --------------------------------------------------------------------------------------
def _source_kernel(fd_ref, noise_ref, w_ref, wa_ref, wb_ref, scal_ref, out_ref):
    """fd_ref    : (2*DIM+1, LT) f32 frame-rate rows: 0..DIM-1 rad_d, DIM..2*DIM-1 pstart_d, 2*DIM uv.
       noise_ref : (upp, LT)     bf16 single N(0,1) channel (sample j of frame l at [j, l]).
       w_ref     : (DIM,)   f32 SMEM Linear weights (slow path).
       wa_ref    : (B, DIM) f32 SMEM w_d * cos(2*pi*frac(upp*rand_ini_d)).
       wb_ref    : (B, DIM) f32 SMEM w_d * sin(2*pi*frac(upp*rand_ini_d)).
       scal_ref  : (3,)     f32 SMEM [bias, noise_std*||w||, (sine_amp/3)*||w||].
       out_ref   : (upp, LT) f32 tanh(Linear(sine_waves)) in transposed layout."""
    b = pl.program_id(0)
    t = pl.program_id(1)
    upp, lt = out_ref.shape

    uv = fd_ref[2 * DIM:2 * DIM + 1, :]                                   # (1, LT)
    # within-frame sample index (j + 1): varies down sublanes, constant along lanes
    ramp = (lax.broadcasted_iota(jnp.int32, (upp, lt), 0) + 1).astype(jnp.float32)
    noise = noise_ref[...].astype(jnp.float32)                            # (upp, LT)
    namp = uv * scal_ref[1] + (1.0 - uv) * scal_ref[2]                    # (1, LT)
    noise_term = namp * noise + scal_ref[0]                               # (upp, LT)

    @pl.when(t != 0)
    def _fast():
        # For every frame l >= 1: harmonic-d phase = (d+1)*theta + c_d  (mod 1),
        # with theta the fundamental phase and c_d a per-batch constant -> one sin +
        # one cos + a Chebyshev/angle-addition recurrence instead of 8 sines.
        rad1 = fd_ref[0:1, :]                                             # (1, LT)
        ps1 = fd_ref[DIM:DIM + 1, :]                                      # (1, LT)
        theta = ps1 + ramp * rad1
        theta = theta - jnp.floor(theta)                                  # wrap: bounded sin arg
        ang = theta * TWO_PI
        s1 = jnp.sin(ang)
        c1 = jnp.cos(ang)
        s, c = s1, c1
        acc = wa_ref[b, 0] * s + wb_ref[b, 0] * c
        for d in range(1, DIM):                                           # unrolled, DIM == 8
            s, c = s * c1 + c * s1, c * c1 - s * s1
            acc = acc + wa_ref[b, d] * s + wb_ref[b, d] * c
        out_ref[...] = jnp.tanh(SINE_AMP * uv * acc + noise_term)

    @pl.when(t == 0)
    def _slow():
        # Tile containing frame 0: rand_ini there contributes (j+1)*rand_ini_d
        # (sample-dependent), so use direct per-harmonic sines for this one tile.
        acc = jnp.zeros((upp, lt), jnp.float32)
        for d in range(DIM):
            rad_d = fd_ref[d:d + 1, :]
            ps_d = fd_ref[DIM + d:DIM + d + 1, :]
            ph = ps_d + ramp * rad_d
            ph = ph - jnp.floor(ph)
            acc = acc + w_ref[d] * jnp.sin(ph * TWO_PI)
        out_ref[...] = jnp.tanh(SINE_AMP * uv * acc + noise_term)


def _choose_frame_tile(L, upp, max_tile_bytes=16 << 20):
    """Frame tile (lane count): multiple of 128, as big as a ~16 MiB/step
    double-buffered working set allows, while keeping >= 2 frame tiles when L
    permits so the (B, T) grid can shard across both v7x TensorCores."""
    bytes_per_frame = 2 * (6 * upp + 4 * (2 * DIM + 1))   # 2 bufs * (out f32 + noise bf16 + frame rows)
    max_lt = max(128, (max_tile_bytes // bytes_per_frame) // 128 * 128)
    half_l = max(128, ((L + 255) // 256) * 128)           # ~ceil(L/2) rounded up to 128
    return int(min(max_lt, half_l))


def source_module_hn_nsf(x, upp, weight, bias, rand_ini, noise_tl, frame_tile=None):
    """SourceModuleHnNSF.forward.

    x        : (B, L, 1) f32 frame-rate F0.
    upp      : int upsampling factor.
    weight   : (1, DIM) Linear(harmonic_num+1 -> 1) weight;  bias: (1,).
    rand_ini : (B, DIM) random initial phases (torch.rand analogue, column 0 = 0).
    noise_tl : (B, upp, L) single N(0,1) noise channel in "time-last" layout
               (sample j of frame l at [:, j, l]); bf16 recommended.  The reference
               sum_d w_d * n_d is replaced by ||w||_2 * noise_tl, which has the same
               distribution because noise_amp is harmonic-independent.
    Returns (sine_merge (B, L*upp, 1) f32, None, None).
    """
    B, L, _ = x.shape
    upp = int(upp)
    f0 = x[..., 0].astype(jnp.float32)
    w = weight.reshape(DIM).astype(jnp.float32)

    lt = int(frame_tile) if frame_tile is not None else _choose_frame_tile(L, upp)
    n_tiles = -(-L // lt)
    Lp = n_tiles * lt
    if Lp != L:                                    # pad: f0 = 0 -> uv = 0, trimmed at the end
        f0 = jnp.pad(f0, ((0, 0), (0, Lp - L)))
        noise_tl = jnp.pad(noise_tl, ((0, 0), (0, 0), (0, Lp - L)))

    # ---- frame-rate preprocessing, O(B*Lp*DIM): 1/upp of the sample-rate data ----
    harm = jnp.arange(1, DIM + 1, dtype=jnp.float32)
    rad = _frac(f0[:, :, None] * harm / SAMPLING_RATE)           # (B, Lp, DIM)
    rad = rad.at[:, 0, :].add(rand_ini.astype(jnp.float32))      # torch: rand phase on frame-0 rate
    # frac(upp * rad) with a hi/lo split -> per-frame error ~1 ulp even for large upp
    r_hi = jnp.floor(rad * 4096.0 + 0.5) * (1.0 / 4096.0)
    r_lo = rad - r_hi
    step = _frac(_frac(upp * r_hi) + upp * r_lo)                 # per-frame phase increment (mod 1)

    # wrapped exclusive prefix: pstart_d[l] = frac(sum_{l' < l} upp * rad_d[l'])
    def _scan(c, a):
        return _frac(c + a), c
    _, pstart = lax.scan(_scan, jnp.zeros((B, DIM), jnp.float32), jnp.moveaxis(step, 1, 0))
    pstart = jnp.moveaxis(pstart, 0, 1)                          # (B, Lp, DIM)
    uv = (f0 > VOICED_THRESHOLD).astype(jnp.float32)             # (B, Lp)

    # single consolidated frame-rate input: rows = [rad_1..rad_D, pstart_1..pstart_D, uv]
    frame_data = jnp.concatenate(
        [jnp.swapaxes(rad, 1, 2), jnp.swapaxes(pstart, 1, 2), uv[:, None, :]], axis=1)

    # fast-path per-batch constants: c_d = frac(upp * rand_ini_d)
    c = _frac(upp * rand_ini.astype(jnp.float32))                # (B, DIM)
    wa = w[None, :] * jnp.cos(TWO_PI * c)
    wb = w[None, :] * jnp.sin(TWO_PI * c)
    wnorm = jnp.sqrt(jnp.sum(w * w))
    scal = jnp.stack([bias.astype(jnp.float32).reshape(-1)[0],
                      NOISE_STD * wnorm,
                      (SINE_AMP / 3.0) * wnorm])

    n_rows = 2 * DIM + 1
    out_tl = pl.pallas_call(
        _source_kernel,
        out_shape=jax.ShapeDtypeStruct((B, upp, Lp), jnp.float32),
        grid=(B, n_tiles),
        in_specs=[
            pl.BlockSpec((None, n_rows, lt), lambda b, t: (b, 0, t)),   # frame-rate rows
            pl.BlockSpec((None, upp, lt), lambda b, t: (b, 0, t)),      # noise channel (bf16)
            pl.BlockSpec(memory_space=pltpu.MemorySpace.SMEM),          # w    (DIM,)
            pl.BlockSpec(memory_space=pltpu.MemorySpace.SMEM),          # wa   (B, DIM)
            pl.BlockSpec(memory_space=pltpu.MemorySpace.SMEM),          # wb   (B, DIM)
            pl.BlockSpec(memory_space=pltpu.MemorySpace.SMEM),          # scal (3,)
        ],
        out_specs=pl.BlockSpec((None, upp, lt), lambda b, t: (b, 0, t)),
        compiler_params=pltpu.CompilerParams(
            dimension_semantics=("parallel", "parallel"),
            vmem_limit_bytes=48 * 1024 * 1024),
    )(frame_data, noise_tl, w, wa, wb, scal)

    # (B, upp, Lp) -> sample order (B, N, 1); this transpose is the only extra XLA pass.
    sine_merge = jnp.swapaxes(out_tl, 1, 2)[:, :L, :].reshape(B, L * upp, 1)
    return sine_merge, None, None


# --------------------------------------------------------------------------------------
# Pure-JAX reference: faithful transcription of SineGen (upp path) + Linear + tanh.
# The per-harmonic noise term sum_d w_d * n_d is expressed as ||w||_2 * noise1 (same
# distribution, shared with the kernel so results are directly comparable).
# --------------------------------------------------------------------------------------
def reference(x, upp, weight, bias, rand_ini, noise1):
    B, L, _ = x.shape
    N = L * upp
    f0 = x[..., 0]
    harm = jnp.arange(1, DIM + 1, dtype=jnp.float32)
    f0_buf = f0[:, :, None] * harm[None, None, :]                # (B, L, DIM)
    rad = (f0_buf / SAMPLING_RATE) % 1.0
    rad = rad.at[:, 0, :].add(rand_ini)

    tmp_over_one = jnp.cumsum(rad, axis=1) * upp                 # (B, L, DIM)
    # linear upsample (align_corners=True) of tmp_over_one, nearest upsample of rad
    pos = jnp.arange(N) * (L - 1) / (N - 1)
    i0 = jnp.clip(jnp.floor(pos).astype(jnp.int32), 0, L - 2)
    wlin = (pos - i0.astype(jnp.float32))[None, :, None]
    tmp_up = tmp_over_one[:, i0, :] * (1.0 - wlin) + tmp_over_one[:, i0 + 1, :] * wlin
    rad_up = jnp.repeat(rad, upp, axis=1)                        # (B, N, DIM)

    tmp_up = tmp_up % 1.0
    neg_jump = (tmp_up[:, 1:, :] - tmp_up[:, :-1, :]) < 0.0
    shift = jnp.concatenate(
        [jnp.zeros((B, 1, DIM), jnp.float32), jnp.where(neg_jump, -1.0, 0.0)], axis=1)

    phase = jnp.cumsum(rad_up + shift, axis=1)
    sine = jnp.sin(phase * TWO_PI) * SINE_AMP

    uv = (f0 > VOICED_THRESHOLD).astype(jnp.float32)
    uv_up = jnp.repeat(uv, upp, axis=1)                          # (B, N)
    noise_amp = uv_up * NOISE_STD + (1.0 - uv_up) * SINE_AMP / 3.0
    wnorm = jnp.sqrt(jnp.sum(weight[0] ** 2))
    merged = ((sine * uv_up[..., None]) @ weight.T)[..., 0]      # (B, N)
    merged = merged + noise_amp * wnorm * noise1 + bias[0]
    return jnp.tanh(merged)[..., None]


if __name__ == "__main__":
    B, L, UPP = 2, 256, 16
    N = L * UPP

    key = jax.random.PRNGKey(0)
    k_f0, k_voiced, k_rand, k_noise, k_w, k_b = jax.random.split(key, 6)

    # deterministic F0 input (B, L, 1): mix of voiced (80-400 Hz) and unvoiced (0) frames
    f0 = jax.random.uniform(k_f0, (B, L), minval=80.0, maxval=400.0)
    f0 = f0 * jax.random.bernoulli(k_voiced, 0.75, (B, L)).astype(jnp.float32)
    x = f0[..., None].astype(jnp.float32)

    # SineGen randomness (torch.rand / torch.randn analogues); fundamental phase fixed to 0
    rand_ini = jax.random.uniform(k_rand, (B, DIM), dtype=jnp.float32).at[:, 0].set(0.0)
    # single N(0,1) channel, time-last layout, streamed as bf16
    noise_tl = jax.random.normal(k_noise, (B, UPP, L), dtype=jnp.float32).astype(jnp.bfloat16)

    # Linear(harmonic_num + 1 -> 1) parameters, deterministic torch-style init
    bound = 1.0 / math.sqrt(DIM)
    weight = jax.random.uniform(k_w, (1, DIM), minval=-bound, maxval=bound, dtype=jnp.float32)
    bias = jax.random.uniform(k_b, (1,), minval=-bound, maxval=bound, dtype=jnp.float32)

    sine_merge, _, _ = source_module_hn_nsf(x, UPP, weight, bias, rand_ini, noise_tl)
    sine_merge = jax.block_until_ready(sine_merge)

    # reference consumes the exact same bf16 noise realization, in natural sample order
    noise_nat = jnp.swapaxes(noise_tl.astype(jnp.float32), 1, 2).reshape(B, N)
    ref = jax.block_until_ready(reference(x, UPP, weight, bias, rand_ini, noise_nat))

    assert sine_merge.shape == (B, N, 1)
    np.testing.assert_allclose(np.asarray(sine_merge), np.asarray(ref),
                               rtol=5e-3, atol=1e-3)
    print("KERNEL_OK")
</pallas_src>

<mosaic_0001>
module attributes {stable_mosaic.version = 11 : i64} {
  func.func @_source_kernel(%arg0: i32, %arg1: i32, %arg2: memref<1x17x128xf32, #tpu.memory_space<vmem>>, %arg3: memref<1x16x128xbf16, #tpu.memory_space<vmem>>, %arg4: memref<8xf32, #tpu.memory_space<smem>>, %arg5: memref<2x8xf32, #tpu.memory_space<smem>>, %arg6: memref<2x8xf32, #tpu.memory_space<smem>>, %arg7: memref<3xf32, #tpu.memory_space<smem>>, %arg8: memref<1x16x128xf32, #tpu.memory_space<vmem>>) attributes {dimension_semantics = [#tpu.dimension_semantics<parallel>, #tpu.dimension_semantics<parallel>], iteration_bounds = array<i64: 2, 2>, scalar_prefetch = 0 : i64, scratch_operands = 0 : i64, tpu.core_type = #tpu.core_type<tc>, window_params = [{transform_indices = @transform_0, window_bounds = array<i64: 1, 17, 128>}, {transform_indices = @transform_1, window_bounds = array<i64: 1, 16, 128>}, {transform_indices = @transform_2, window_bounds = array<i64: 8>}, {transform_indices = @transform_3, window_bounds = array<i64: 2, 8>}, {transform_indices = @transform_4, window_bounds = array<i64: 2, 8>}, {transform_indices = @transform_5, window_bounds = array<i64: 3>}, {transform_indices = @transform_6, window_bounds = array<i64: 1, 16, 128>}]} {
    %c0 = arith.constant 0 : index
    %c16 = arith.constant 16 : index
    %c0_0 = arith.constant 0 : index
    %0 = vector.load %arg2[%c0, %c16, %c0_0] : memref<1x17x128xf32, #tpu.memory_space<vmem>>, vector<1x1x128xf32>
    %1 = vector.shape_cast %0 : vector<1x1x128xf32> to vector<1x128xf32>
    %2 = tpu.iota {dimensions = array<i32: 0>} : vector<16x128xi32>
    %c1_i32 = arith.constant 1 : i32
    %3 = vector.broadcast %c1_i32 : i32 to vector<16x128xi32>
    %4 = arith.addi %2, %3 : vector<16x128xi32>
    %5 = arith.sitofp %4 : vector<16x128xi32> to vector<16x128xf32>
    %c0_1 = arith.constant 0 : index
    %c0_2 = arith.constant 0 : index
    %c0_3 = arith.constant 0 : index
    %6 = vector.load %arg3[%c0_1, %c0_2, %c0_3] : memref<1x16x128xbf16, #tpu.memory_space<vmem>>, vector<1x16x128xbf16>
    %7 = vector.shape_cast %6 : vector<1x16x128xbf16> to vector<16x128xbf16>
    %8 = arith.extf %7 : vector<16x128xbf16> to vector<16x128xf32>
    %c1 = arith.constant 1 : index
    %9 = memref.load %arg7[%c1] : memref<3xf32, #tpu.memory_space<smem>>
    %10 = vector.broadcast %9 : f32 to vector<1x128xf32>
    %11 = arith.mulf %1, %10 : vector<1x128xf32>
    %cst = arith.constant 1.000000e+00 : f32
    %12 = vector.broadcast %cst : f32 to vector<1x128xf32>
    %13 = arith.subf %12, %1 : vector<1x128xf32>
    %c2 = arith.constant 2 : index
    %14 = memref.load %arg7[%c2] : memref<3xf32, #tpu.memory_space<smem>>
    %15 = vector.broadcast %14 : f32 to vector<1x128xf32>
    %16 = arith.mulf %13, %15 : vector<1x128xf32>
    %17 = arith.addf %11, %16 : vector<1x128xf32>
    %18 = vector.broadcast %17 : vector<1x128xf32> to vector<16x128xf32>
    %19 = arith.mulf %18, %8 : vector<16x128xf32>
    %c0_4 = arith.constant 0 : index
    %20 = memref.load %arg7[%c0_4] : memref<3xf32, #tpu.memory_space<smem>>
    %21 = vector.broadcast %20 : f32 to vector<16x128xf32>
    %22 = arith.addf %19, %21 : vector<16x128xf32>
    %c0_i32 = arith.constant 0 : i32
    %23 = arith.cmpi ne, %arg1, %c0_i32 : i32
    %24 = arith.extui %23 : i1 to i32
    %c0_i32_5 = arith.constant 0 : i32
    %25 = arith.cmpi ne, %24, %c0_i32_5 : i32
    scf.if %25 {
      %c0_8 = arith.constant 0 : index
      %c0_9 = arith.constant 0 : index
      %c0_10 = arith.constant 0 : index
      %29 = vector.load %arg2[%c0_8, %c0_9, %c0_10] : memref<1x17x128xf32, #tpu.memory_space<vmem>>, vector<1x1x128xf32>
      %30 = vector.shape_cast %29 : vector<1x1x128xf32> to vector<1x128xf32>
      %c0_11 = arith.constant 0 : index
      %c8 = arith.constant 8 : index
      %c0_12 = arith.constant 0 : index
      %31 = vector.load %arg2[%c0_11, %c8, %c0_12] : memref<1x17x128xf32, #tpu.memory_space<vmem>>, vector<1x1x128xf32>
      %32 = vector.shape_cast %31 : vector<1x1x128xf32> to vector<1x128xf32>
      %33 = vector.broadcast %30 : vector<1x128xf32> to vector<16x128xf32>
      %34 = arith.mulf %5, %33 : vector<16x128xf32>
      %35 = vector.broadcast %32 : vector<1x128xf32> to vector<16x128xf32>
      %36 = arith.addf %35, %34 : vector<16x128xf32>
      %37 = math.floor %36 : vector<16x128xf32>
      %38 = arith.subf %36, %37 : vector<16x128xf32>
      %cst_13 = arith.constant 6.28318548 : f32
      %39 = vector.broadcast %cst_13 : f32 to vector<16x128xf32>
      %40 = arith.mulf %38, %39 : vector<16x128xf32>
      %41 = math.sin %40 : vector<16x128xf32>
      %42 = math.cos %40 : vector<16x128xf32>
      %43 = arith.index_cast %arg0 : i32 to index
      %c0_14 = arith.constant 0 : index
      %44 = memref.load %arg5[%43, %c0_14] : memref<2x8xf32, #tpu.memory_space<smem>>
      %45 = vector.broadcast %44 : f32 to vector<16x128xf32>
      %46 = arith.mulf %45, %41 : vector<16x128xf32>
      %47 = arith.index_cast %arg0 : i32 to index
      %c0_15 = arith.constant 0 : index
      %48 = memref.load %arg6[%47, %c0_15] : memref<2x8xf32, #tpu.memory_space<smem>>
      %49 = vector.broadcast %48 : f32 to vector<16x128xf32>
      %50 = arith.mulf %49, %42 : vector<16x128xf32>
      %51 = arith.addf %46, %50 : vector<16x128xf32>
      %52 = arith.mulf %41, %42 : vector<16x128xf32>
      %53 = arith.mulf %42, %41 : vector<16x128xf32>
      %54 = arith.addf %52, %53 : vector<16x128xf32>
      %55 = arith.mulf %42, %42 : vector<16x128xf32>
      %56 = arith.mulf %41, %41 : vector<16x128xf32>
      %57 = arith.subf %55, %56 : vector<16x128xf32>
      %58 = arith.index_cast %arg0 : i32 to index
      %c1_16 = arith.constant 1 : index
      %59 = memref.load %arg5[%58, %c1_16] : memref<2x8xf32, #tpu.memory_space<smem>>
      %60 = vector.broadcast %59 : f32 to vector<16x128xf32>
      %61 = arith.mulf %60, %54 : vector<16x128xf32>
      %62 = arith.addf %51, %61 : vector<16x128xf32>
      %63 = arith.index_cast %arg0 : i32 to index
      %c1_17 = arith.constant 1 : index
      %64 = memref.load %arg6[%63, %c1_17] : memref<2x8xf32, #tpu.memory_space<smem>>
      %65 = vector.broadcast %64 : f32 to vector<16x128xf32>
      %66 = arith.mulf %65, %57 : vector<16x128xf32>
      %67 = arith.addf %62, %66 : vector<16x128xf32>
      %68 = arith.mulf %54, %42 : vector<16x128xf32>
      %69 = arith.mulf %57, %41 : vector<16x128xf32>
      %70 = arith.addf %68, %69 : vector<16x128xf32>
      %71 = arith.mulf %57, %42 : vector<16x128xf32>
      %72 = arith.mulf %54, %41 : vector<16x128xf32>
      %73 = arith.subf %71, %72 : vector<16x128xf32>
      %74 = arith.index_cast %arg0 : i32 to index
      %c2_18 = arith.constant 2 : index
      %75 = memref.load %arg5[%74, %c2_18] : memref<2x8xf32, #tpu.memory_space<smem>>
      %76 = vector.broadcast %75 : f32 to vector<16x128xf32>
      %77 = arith.mulf %76, %70 : vector<16x128xf32>
      %78 = arith.addf %67, %77 : vector<16x128xf32>
      %79 = arith.index_cast %arg0 : i32 to index
      %c2_19 = arith.constant 2 : index
      %80 = memref.load %arg6[%79, %c2_19] : memref<2x8xf32, #tpu.memory_space<smem>>
      %81 = vector.broadcast %80 : f32 to vector<16x128xf32>
      %82 = arith.mulf %81, %73 : vector<16x128xf32>
      %83 = arith.addf %78, %82 : vector<16x128xf32>
      %84 = arith.mulf %70, %42 : vector<16x128xf32>
      %85 = arith.mulf %73, %41 : vector<16x128xf32>
      %86 = arith.addf %84, %85 : vector<16x128xf32>
      %87 = arith.mulf %73, %42 : vector<16x128xf32>
      %88 = arith.mulf %70, %41 : vector<16x128xf32>
      %89 = arith.subf %87, %88 : vector<16x128xf32>
      %90 = arith.index_cast %arg0 : i32 to index
      %c3 = arith.constant 3 : index
      %91 = memref.load %arg5[%90, %c3] : memref<2x8xf32, #tpu.memory_space<smem>>
      %92 = vector.broadcast %91 : f32 to vector<16x128xf32>
      %93 = arith.mulf %92, %86 : vector<16x128xf32>
      %94 = arith.addf %83, %93 : vector<16x128xf32>
      %95 = arith.index_cast %arg0 : i32 to index
      %c3_20 = arith.constant 3 : index
      %96 = memref.load %arg6[%95, %c3_20] : memref<2x8xf32, #tpu.memory_space<smem>>
      %97 = vector.broadcast %96 : f32 to vector<16x128xf32>
      %98 = arith.mulf %97, %89 : vector<16x128xf32>
      %99 = arith.addf %94, %98 : vector<16x128xf32>
      %100 = arith.mulf %86, %42 : vector<16x128xf32>
      %101 = arith.mulf %89, %41 : vector<16x128xf32>
      %102 = arith.addf %100, %101 : vector<16x128xf32>
      %103 = arith.mulf %89, %42 : vector<16x128xf32>
      %104 = arith.mulf %86, %41 : vector<16x128xf32>
      %105 = arith.subf %103, %104 : vector<16x128xf32>
      %106 = arith.index_cast %arg0 : i32 to index
      %c4 = arith.constant 4 : index
      %107 = memref.load %arg5[%106, %c4] : memref<2x8xf32, #tpu.memory_space<smem>>
      %108 = vector.broadcast %107 : f32 to vector<16x128xf32>
      %109 = arith.mulf %108, %102 : vector<16x128xf32>
      %110 = arith.addf %99, %109 : vector<16x128xf32>
      %111 = arith.index_cast %arg0 : i32 to index
      %c4_21 = arith.constant 4 : index
      %112 = memref.load %arg6[%111, %c4_21] : memref<2x8xf32, #tpu.memory_space<smem>>
      %113 = vector.broadcast %112 : f32 to vector<16x128xf32>
      %114 = arith.mulf %113, %105 : vector<16x128xf32>
      %115 = arith.addf %110, %114 : vector<16x128xf32>
      %116 = arith.mulf %102, %42 : vector<16x128xf32>
      %117 = arith.mulf %105, %41 : vector<16x128xf32>
      %118 = arith.addf %116, %117 : vector<16x128xf32>
      %119 = arith.mulf %105, %42 : vector<16x128xf32>
      %120 = arith.mulf %102, %41 : vector<16x128xf32>
      %121 = arith.subf %119, %120 : vector<16x128xf32>
      %122 = arith.index_cast %arg0 : i32 to index
      %c5 = arith.constant 5 : index
      %123 = memref.load %arg5[%122, %c5] : memref<2x8xf32, #tpu.memory_space<smem>>
      %124 = vector.broadcast %123 : f32 to vector<16x128xf32>
      %125 = arith.mulf %124, %118 : vector<16x128xf32>
      %126 = arith.addf %115, %125 : vector<16x128xf32>
      %127 = arith.index_cast %arg0 : i32 to index
      %c5_22 = arith.constant 5 : index
      %128 = memref.load %arg6[%127, %c5_22] : memref<2x8xf32, #tpu.memory_space<smem>>
      %129 = vector.broadcast %128 : f32 to vector<16x128xf32>
      %130 = arith.mulf %129, %121 : vector<16x128xf32>
      %131 = arith.addf %126, %130 : vector<16x128xf32>
      %132 = arith.mulf %118, %42 : vector<16x128xf32>
      %133 = arith.mulf %121, %41 : vector<16x128xf32>
      %134 = arith.addf %132, %133 : vector<16x128xf32>
      %135 = arith.mulf %121, %42 : vector<16x128xf32>
      %136 = arith.mulf %118, %41 : vector<16x128xf32>
      %137 = arith.subf %135, %136 : vector<16x128xf32>
      %138 = arith.index_cast %arg0 : i32 to index
      %c6 = arith.constant 6 : index
      %139 = memref.load %arg5[%138, %c6] : memref<2x8xf32, #tpu.memory_space<smem>>
      %140 = vector.broadcast %139 : f32 to vector<16x128xf32>
      %141 = arith.mulf %140, %134 : vector<16x128xf32>
      %142 = arith.addf %131, %141 : vector<16x128xf32>
      %143 = arith.index_cast %arg0 : i32 to index
      %c6_23 = arith.constant 6 : index
      %144 = memref.load %arg6[%143, %c6_23] : memref<2x8xf32, #tpu.memory_space<smem>>
      %145 = vector.broadcast %144 : f32 to vector<16x128xf32>
      %146 = arith.mulf %145, %137 : vector<16x128xf32>
      %147 = arith.addf %142, %146 : vector<16x128xf32>
      %148 = arith.mulf %134, %42 : vector<16x128xf32>
      %149 = arith.mulf %137, %41 : vector<16x128xf32>
      %150 = arith.addf %148, %149 : vector<16x128xf32>
      %151 = arith.mulf %137, %42 : vector<16x128xf32>
      %152 = arith.mulf %134, %41 : vector<16x128xf32>
      %153 = arith.subf %151, %152 : vector<16x128xf32>
      %154 = arith.index_cast %arg0 : i32 to index
      %c7 = arith.constant 7 : index
      %155 = memref.load %arg5[%154, %c7] : memref<2x8xf32, #tpu.memory_space<smem>>
      %156 = vector.broadcast %155 : f32 to vector<16x128xf32>
      %157 = arith.mulf %156, %150 : vector<16x128xf32>
      %158 = arith.addf %147, %157 : vector<16x128xf32>
      %159 = arith.index_cast %arg0 : i32 to index
      %c7_24 = arith.constant 7 : index
      %160 = memref.load %arg6[%159, %c7_24] : memref<2x8xf32, #tpu.memory_space<smem>>
      %161 = vector.broadcast %160 : f32 to vector<16x128xf32>
      %162 = arith.mulf %161, %153 : vector<16x128xf32>
      %163 = arith.addf %158, %162 : vector<16x128xf32>
      %cst_25 = arith.constant 1.000000e-01 : f32
      %164 = vector.broadcast %cst_25 : f32 to vector<1x128xf32>
      %165 = arith.mulf %164, %1 : vector<1x128xf32>
      %166 = vector.broadcast %165 : vector<1x128xf32> to vector<16x128xf32>
      %167 = arith.mulf %166, %163 : vector<16x128xf32>
      %168 = arith.addf %167, %22 : vector<16x128xf32>
      %169 = math.tanh %168 : vector<16x128xf32>
      %c0_26 = arith.constant 0 : index
      %c0_27 = arith.constant 0 : index
      %c0_28 = arith.constant 0 : index
      %170 = vector.load %arg8[%c0_26, %c0_27, %c0_28] : memref<1x16x128xf32, #tpu.memory_space<vmem>>, vector<1x16x128xf32>
      %171 = vector.shape_cast %170 : vector<1x16x128xf32> to vector<16x128xf32>
      %172 = vector.shape_cast %169 : vector<16x128xf32> to vector<1x16x128xf32>
      tpu.vector_store %arg8[%c0_26, %c0_27, %c0_28], %172 {strides = array<i32>} : memref<1x16x128xf32, #tpu.memory_space<vmem>>, vector<1x16x128xf32>,
    } else {
    }
    %c0_i32_6 = arith.constant 0 : i32
    %26 = arith.cmpi eq, %arg1, %c0_i32_6 : i32
    %27 = arith.extui %26 : i1 to i32
    %c0_i32_7 = arith.constant 0 : i32
    %28 = arith.cmpi ne, %27, %c0_i32_7 : i32
    scf.if %28 {
      %cst_8 = arith.constant 0.000000e+00 : f32
      %29 = vector.broadcast %cst_8 : f32 to vector<16x128xf32>
      %c0_9 = arith.constant 0 : index
      %c0_10 = arith.constant 0 : index
      %c0_11 = arith.constant 0 : index
      %30 = vector.load %arg2[%c0_9, %c0_10, %c0_11] : memref<1x17x128xf32, #tpu.memory_space<vmem>>, vector<1x1x128xf32>
      %31 = vector.shape_cast %30 : vector<1x1x128xf32> to vector<1x128xf32>
      %c0_12 = arith.constant 0 : index
      %c8 = arith.constant 8 : index
      %c0_13 = arith.constant 0 : index
      %32 = vector.load %arg2[%c0_12, %c8, %c0_13] : memref<1x17x128xf32, #tpu.memory_space<vmem>>, vector<1x1x128xf32>
      %33 = vector.shape_cast %32 : vector<1x1x128xf32> to vector<1x128xf32>
      %34 = vector.broadcast %31 : vector<1x128xf32> to vector<16x128xf32>
      %35 = arith.mulf %5, %34 : vector<16x128xf32>
      %36 = vector.broadcast %33 : vector<1x128xf32> to vector<16x128xf32>
      %37 = arith.addf %36, %35 : vector<16x128xf32>
      %38 = math.floor %37 : vector<16x128xf32>
      %39 = arith.subf %37, %38 : vector<16x128xf32>
      %c0_14 = arith.constant 0 : index
      %40 = memref.load %arg4[%c0_14] : memref<8xf32, #tpu.memory_space<smem>>
      %cst_15 = arith.constant 6.28318548 : f32
      %41 = vector.broadcast %cst_15 : f32 to vector<16x128xf32>
      %42 = arith.mulf %39, %41 : vector<16x128xf32>
      %43 = math.sin %42 : vector<16x128xf32>
      %44 = vector.broadcast %40 : f32 to vector<16x128xf32>
      %45 = arith.mulf %44, %43 : vector<16x128xf32>
      %46 = arith.addf %29, %45 : vector<16x128xf32>
      %c0_16 = arith.constant 0 : index
      %c1_17 = arith.constant 1 : index
      %c0_18 = arith.constant 0 : index
      %47 = vector.load %arg2[%c0_16, %c1_17, %c0_18] : memref<1x17x128xf32, #tpu.memory_space<vmem>>, vector<1x1x128xf32>
      %48 = vector.shape_cast %47 : vector<1x1x128xf32> to vector<1x128xf32>
      %c0_19 = arith.constant 0 : index
      %c9 = arith.constant 9 : index
      %c0_20 = arith.constant 0 : index
      %49 = vector.load %arg2[%c0_19, %c9, %c0_20] : memref<1x17x128xf32, #tpu.memory_space<vmem>>, vector<1x1x128xf32>
      %50 = vector.shape_cast %49 : vector<1x1x128xf32> to vector<1x128xf32>
      %51 = vector.broadcast %48 : vector<1x128xf32> to vector<16x128xf32>
      %52 = arith.mulf %5, %51 : vector<16x128xf32>
      %53 = vector.broadcast %50 : vector<1x128xf32> to vector<16x128xf32>
      %54 = arith.addf %53, %52 : vector<16x128xf32>
      %55 = math.floor %54 : vector<16x128xf32>
      %56 = arith.subf %54, %55 : vector<16x128xf32>
      %c1_21 = arith.constant 1 : index
      %57 = memref.load %arg4[%c1_21] : memref<8xf32, #tpu.memory_space<smem>>
      %cst_22 = arith.constant 6.28318548 : f32
      %58 = vector.broadcast %cst_22 : f32 to vector<16x128xf32>
      %59 = arith.mulf %56, %58 : vector<16x128xf32>
      %60 = math.sin %59 : vector<16x128xf32>
      %61 = vector.broadcast %57 : f32 to vector<16x128xf32>
      %62 = arith.mulf %61, %60 : vector<16x128xf32>
      %63 = arith.addf %46, %62 : vector<16x128xf32>
      %c0_23 = arith.constant 0 : index
      %c2_24 = arith.constant 2 : index
      %c0_25 = arith.constant 0 : index
      %64 = vector.load %arg2[%c0_23, %c2_24, %c0_25] : memref<1x17x128xf32, #tpu.memory_space<vmem>>, vector<1x1x128xf32>
      %65 = vector.shape_cast %64 : vector<1x1x128xf32> to vector<1x128xf32>
      %c0_26 = arith.constant 0 : index
      %c10 = arith.constant 10 : index
      %c0_27 = arith.constant 0 : index
      %66 = vector.load %arg2[%c0_26, %c10, %c0_27] : memref<1x17x128xf32, #tpu.memory_space<vmem>>, vector<1x1x128xf32>
      %67 = vector.shape_cast %66 : vector<1x1x128xf32> to vector<1x128xf32>
      %68 = vector.broadcast %65 : vector<1x128xf32> to vector<16x128xf32>
      %69 = arith.mulf %5, %68 : vector<16x128xf32>
      %70 = vector.broadcast %67 : vector<1x128xf32> to vector<16x128xf32>
      %71 = arith.addf %70, %69 : vector<16x128xf32>
      %72 = math.floor %71 : vector<16x128xf32>
      %73 = arith.subf %71, %72 : vector<16x128xf32>
      %c2_28 = arith.constant 2 : index
      %74 = memref.load %arg4[%c2_28] : memref<8xf32, #tpu.memory_space<smem>>
      %cst_29 = arith.constant 6.28318548 : f32
      %75 = vector.broadcast %cst_29 : f32 to vector<16x128xf32>
      %76 = arith.mulf %73, %75 : vector<16x128xf32>
      %77 = math.sin %76 : vector<16x128xf32>
      %78 = vector.broadcast %74 : f32 to vector<16x128xf32>
      %79 = arith.mulf %78, %77 : vector<16x128xf32>
      %80 = arith.addf %63, %79 : vector<16x128xf32>
      %c0_30 = arith.constant 0 : index
      %c3 = arith.constant 3 : index
      %c0_31 = arith.constant 0 : index
      %81 = vector.load %arg2[%c0_30, %c3, %c0_31] : memref<1x17x128xf32, #tpu.memory_space<vmem>>, vector<1x1x128xf32>
      %82 = vector.shape_cast %81 : vector<1x1x128xf32> to vector<1x128xf32>
      %c0_32 = arith.constant 0 : index
      %c11 = arith.constant 11 : index
      %c0_33 = arith.constant 0 : index
      %83 = vector.load %arg2[%c0_32, %c11, %c0_33] : memref<1x17x128xf32, #tpu.memory_space<vmem>>, vector<1x1x128xf32>
      %84 = vector.shape_cast %83 : vector<1x1x128xf32> to vector<1x128xf32>
      %85 = vector.broadcast %82 : vector<1x128xf32> to vector<16x128xf32>
      %86 = arith.mulf %5, %85 : vector<16x128xf32>
      %87 = vector.broadcast %84 : vector<1x128xf32> to vector<16x128xf32>
      %88 = arith.addf %87, %86 : vector<16x128xf32>
      %89 = math.floor %88 : vector<16x128xf32>
      %90 = arith.subf %88, %89 : vector<16x128xf32>
      %c3_34 = arith.constant 3 : index
      %91 = memref.load %arg4[%c3_34] : memref<8xf32, #tpu.memory_space<smem>>
      %cst_35 = arith.constant 6.28318548 : f32
      %92 = vector.broadcast %cst_35 : f32 to vector<16x128xf32>
      %93 = arith.mulf %90, %92 : vector<16x128xf32>
      %94 = math.sin %93 : vector<16x128xf32>
      %95 = vector.broadcast %91 : f32 to vector<16x128xf32>
      %96 = arith.mulf %95, %94 : vector<16x128xf32>
      %97 = arith.addf %80, %96 : vector<16x128xf32>
      %c0_36 = arith.constant 0 : index
      %c4 = arith.constant 4 : index
      %c0_37 = arith.constant 0 : index
      %98 = vector.load %arg2[%c0_36, %c4, %c0_37] : memref<1x17x128xf32, #tpu.memory_space<vmem>>, vector<1x1x128xf32>
      %99 = vector.shape_cast %98 : vector<1x1x128xf32> to vector<1x128xf32>
      %c0_38 = arith.constant 0 : index
      %c12 = arith.constant 12 : index
      %c0_39 = arith.constant 0 : index
      %100 = vector.load %arg2[%c0_38, %c12, %c0_39] : memref<1x17x128xf32, #tpu.memory_space<vmem>>, vector<1x1x128xf32>
      %101 = vector.shape_cast %100 : vector<1x1x128xf32> to vector<1x128xf32>
      %102 = vector.broadcast %99 : vector<1x128xf32> to vector<16x128xf32>
      %103 = arith.mulf %5, %102 : vector<16x128xf32>
      %104 = vector.broadcast %101 : vector<1x128xf32> to vector<16x128xf32>
      %105 = arith.addf %104, %103 : vector<16x128xf32>
      %106 = math.floor %105 : vector<16x128xf32>
      %107 = arith.subf %105, %106 : vector<16x128xf32>
      %c4_40 = arith.constant 4 : index
      %108 = memref.load %arg4[%c4_40] : memref<8xf32, #tpu.memory_space<smem>>
      %cst_41 = arith.constant 6.28318548 : f32
      %109 = vector.broadcast %cst_41 : f32 to vector<16x128xf32>
      %110 = arith.mulf %107, %109 : vector<16x128xf32>
      %111 = math.sin %110 : vector<16x128xf32>
      %112 = vector.broadcast %108 : f32 to vector<16x128xf32>
      %113 = arith.mulf %112, %111 : vector<16x128xf32>
      %114 = arith.addf %97, %113 : vector<16x128xf32>
      %c0_42 = arith.constant 0 : index
      %c5 = arith.constant 5 : index
      %c0_43 = arith.constant 0 : index
      %115 = vector.load %arg2[%c0_42, %c5, %c0_43] : memref<1x17x128xf32, #tpu.memory_space<vmem>>, vector<1x1x128xf32>
      %116 = vector.shape_cast %115 : vector<1x1x128xf32> to vector<1x128xf32>
      %c0_44 = arith.constant 0 : index
      %c13 = arith.constant 13 : index
      %c0_45 = arith.constant 0 : index
      %117 = vector.load %arg2[%c0_44, %c13, %c0_45] : memref<1x17x128xf32, #tpu.memory_space<vmem>>, vector<1x1x128xf32>
      %118 = vector.shape_cast %117 : vector<1x1x128xf32> to vector<1x128xf32>
      %119 = vector.broadcast %116 : vector<1x128xf32> to vector<16x128xf32>
      %120 = arith.mulf %5, %119 : vector<16x128xf32>
      %121 = vector.broadcast %118 : vector<1x128xf32> to vector<16x128xf32>
      %122 = arith.addf %121, %120 : vector<16x128xf32>
      %123 = math.floor %122 : vector<16x128xf32>
      %124 = arith.subf %122, %123 : vector<16x128xf32>
      %c5_46 = arith.constant 5 : index
      %125 = memref.load %arg4[%c5_46] : memref<8xf32, #tpu.memory_space<smem>>
      %cst_47 = arith.constant 6.28318548 : f32
      %126 = vector.broadcast %cst_47 : f32 to vector<16x128xf32>
      %127 = arith.mulf %124, %126 : vector<16x128xf32>
      %128 = math.sin %127 : vector<16x128xf32>
      %129 = vector.broadcast %125 : f32 to vector<16x128xf32>
      %130 = arith.mulf %129, %128 : vector<16x128xf32>
      %131 = arith.addf %114, %130 : vector<16x128xf32>
      %c0_48 = arith.constant 0 : index
      %c6 = arith.constant 6 : index
      %c0_49 = arith.constant 0 : index
      %132 = vector.load %arg2[%c0_48, %c6, %c0_49] : memref<1x17x128xf32, #tpu.memory_space<vmem>>, vector<1x1x128xf32>
      %133 = vector.shape_cast %132 : vector<1x1x128xf32> to vector<1x128xf32>
      %c0_50 = arith.constant 0 : index
      %c14 = arith.constant 14 : index
      %c0_51 = arith.constant 0 : index
      %134 = vector.load %arg2[%c0_50, %c14, %c0_51] : memref<1x17x128xf32, #tpu.memory_space<vmem>>, vector<1x1x128xf32>
      %135 = vector.shape_cast %134 : vector<1x1x128xf32> to vector<1x128xf32>
      %136 = vector.broadcast %133 : vector<1x128xf32> to vector<16x128xf32>
      %137 = arith.mulf %5, %136 : vector<16x128xf32>
      %138 = vector.broadcast %135 : vector<1x128xf32> to vector<16x128xf32>
      %139 = arith.addf %138, %137 : vector<16x128xf32>
      %140 = math.floor %139 : vector<16x128xf32>
      %141 = arith.subf %139, %140 : vector<16x128xf32>
      %c6_52 = arith.constant 6 : index
      %142 = memref.load %arg4[%c6_52] : memref<8xf32, #tpu.memory_space<smem>>
      %cst_53 = arith.constant 6.28318548 : f32
      %143 = vector.broadcast %cst_53 : f32 to vector<16x128xf32>
      %144 = arith.mulf %141, %143 : vector<16x128xf32>
      %145 = math.sin %144 : vector<16x128xf32>
      %146 = vector.broadcast %142 : f32 to vector<16x128xf32>
      %147 = arith.mulf %146, %145 : vector<16x128xf32>
      %148 = arith.addf %131, %147 : vector<16x128xf32>
      %c0_54 = arith.constant 0 : index
      %c7 = arith.constant 7 : index
      %c0_55 = arith.constant 0 : index
      %149 = vector.load %arg2[%c0_54, %c7, %c0_55] : memref<1x17x128xf32, #tpu.memory_space<vmem>>, vector<1x1x128xf32>
      %150 = vector.shape_cast %149 : vector<1x1x128xf32> to vector<1x128xf32>
      %c0_56 = arith.constant 0 : index
      %c15 = arith.constant 15 : index
      %c0_57 = arith.constant 0 : index
      %151 = vector.load %arg2[%c0_56, %c15, %c0_57] : memref<1x17x128xf32, #tpu.memory_space<vmem>>, vector<1x1x128xf32>
      %152 = vector.shape_cast %151 : vector<1x1x128xf32> to vector<1x128xf32>
      %153 = vector.broadcast %150 : vector<1x128xf32> to vector<16x128xf32>
      %154 = arith.mulf %5, %153 : vector<16x128xf32>
      %155 = vector.broadcast %152 : vector<1x128xf32> to vector<16x128xf32>
      %156 = arith.addf %155, %154 : vector<16x128xf32>
      %157 = math.floor %156 : vector<16x128xf32>
      %158 = arith.subf %156, %157 : vector<16x128xf32>
      %c7_58 = arith.constant 7 : index
      %159 = memref.load %arg4[%c7_58] : memref<8xf32, #tpu.memory_space<smem>>
      %cst_59 = arith.constant 6.28318548 : f32
      %160 = vector.broadcast %cst_59 : f32 to vector<16x128xf32>
      %161 = arith.mulf %158, %160 : vector<16x128xf32>
      %162 = math.sin %161 : vector<16x128xf32>
      %163 = vector.broadcast %159 : f32 to vector<16x128xf32>
      %164 = arith.mulf %163, %162 : vector<16x128xf32>
      %165 = arith.addf %148, %164 : vector<16x128xf32>
      %cst_60 = arith.constant 1.000000e-01 : f32
      %166 = vector.broadcast %cst_60 : f32 to vector<1x128xf32>
      %167 = arith.mulf %166, %1 : vector<1x128xf32>
      %168 = vector.broadcast %167 : vector<1x128xf32> to vector<16x128xf32>
      %169 = arith.mulf %168, %165 : vector<16x128xf32>
      %170 = arith.addf %169, %22 : vector<16x128xf32>
      %171 = math.tanh %170 : vector<16x128xf32>
      %c0_61 = arith.constant 0 : index
      %c0_62 = arith.constant 0 : index
      %c0_63 = arith.constant 0 : index
      %172 = vector.load %arg8[%c0_61, %c0_62, %c0_63] : memref<1x16x128xf32, #tpu.memory_space<vmem>>, vector<1x16x128xf32>
      %173 = vector.shape_cast %172 : vector<1x16x128xf32> to vector<16x128xf32>
      %174 = vector.shape_cast %171 : vector<16x128xf32> to vector<1x16x128xf32>
      tpu.vector_store %arg8[%c0_61, %c0_62, %c0_63], %174 {strides = array<i32>} : memref<1x16x128xf32, #tpu.memory_space<vmem>>, vector<1x16x128xf32>,
    } else {
    }
    return
  }
  func.func @transform_0(%arg0: i32, %arg1: i32) -> (i32, i32, i32) {
    %c0_i32 = arith.constant 0 : i32
    %c0_i32_0 = arith.constant 0 : i32
    return %arg0, %c0_i32, %arg1 : i32, i32, i32
  }
  func.func @transform_1(%arg0: i32, %arg1: i32) -> (i32, i32, i32) {
    %c0_i32 = arith.constant 0 : i32
    %c0_i32_0 = arith.constant 0 : i32
    return %arg0, %c0_i32, %arg1 : i32, i32, i32
  }
  func.func @transform_2(%arg0: i32, %arg1: i32) -> i32 {
    %c0_i32 = arith.constant 0 : i32
    %c0_i32_0 = arith.constant 0 : i32
    return %c0_i32 : i32
  }
  func.func @transform_3(%arg0: i32, %arg1: i32) -> (i32, i32) {
    %c0_i32 = arith.constant 0 : i32
    %c0_i32_0 = arith.constant 0 : i32
    %c0_i32_1 = arith.constant 0 : i32
    return %c0_i32, %c0_i32_0 : i32, i32
  }
  func.func @transform_4(%arg0: i32, %arg1: i32) -> (i32, i32) {
    %c0_i32 = arith.constant 0 : i32
    %c0_i32_0 = arith.constant 0 : i32
    %c0_i32_1 = arith.constant 0 : i32
    return %c0_i32, %c0_i32_0 : i32, i32
  }
  func.func @transform_5(%arg0: i32, %arg1: i32) -> i32 {
    %c0_i32 = arith.constant 0 : i32
    %c0_i32_0 = arith.constant 0 : i32
    return %c0_i32 : i32
  }
  func.func @transform_6(%arg0: i32, %arg1: i32) -> (i32, i32, i32) {
    %c0_i32 = arith.constant 0 : i32
    %c0_i32_0 = arith.constant 0 : i32
    return %arg0, %c0_i32, %arg1 : i32, i32, i32
  }
}

</mosaic_0001>

<llo_original>
// kernel: tpu_custom_call.1
$region0: #{tpu_custom_call.1}
  #allocation0 [shape = 'u32[]', space=smem, size = 0x4, offset = 0x4, fixed_abs, tag = 'smem constant byte address 0x4 - core index']
  #allocation1 [shape = 'u32[144,128]{1,0:T(1,128)}', space=vmem, size = 0x12000, scoped, tag = 'internal scratch']
  %s0 = inlined_call_operand.vmem [shape: f32[2,17,256], index: 0, kind: input, shape index: {}]
  %s1 = inlined_call_operand.vmem [shape: bf16[2,16,256], index: 1, kind: input, shape index: {}]
  %s2 = inlined_call_operand.vmem [shape: f32[8], index: 2, kind: input, shape index: {}]
  %s3 = inlined_call_operand.vmem [shape: f32[2,8], index: 3, kind: input, shape index: {}]
  %s4 = inlined_call_operand.vmem [shape: f32[2,8], index: 4, kind: input, shape index: {}]
  %s5 = inlined_call_operand.vmem [shape: f32[3], index: 5, kind: input, shape index: {}]
  %s6 = inlined_call_operand.hbm [shape: f32[2,16,256], index: 6, kind: output, shape index: {}]
  %s7 = sld [smem:[#allocation0]]
  $region160: #{tpu_custom_call.1} parent=0
    _
  %s9 = ssub.s32 1, %s7
  %s10 = scalar_select 0, %s9, %s7
  $region1: #{tpu_custom_call.1} parent=0
    #allocation2 [shape = 'u8[24576]{0}', space=vmem, size = 0x6000, scoped, tag = 'input window, operand 0']
    #allocation3 [shape = 'u8[8192]{0}', space=vmem, size = 0x2000, scoped, tag = 'input window, operand 1']
    #allocation4 [shape = 'u8[512]{0}', space=smem, size = 0x200, scoped, tag = 'input window, operand 2, single buffered']
    #allocation5 [shape = 's32[2]{0}', space=sflag, size = 0x8, scoped, tag = 'scoped memory for tpu_custom_call.1']
    #allocation6 [shape = 's32[2]{0}', space=sflag, size = 0x8, scoped, tag = 'scoped memory for tpu_custom_call.1']
    #allocation7 [shape = 'u8[1024]{0}', space=smem, size = 0x400, scoped, tag = 'input window, operand 3, single buffered']
    #allocation8 [shape = 's32[1]{0}', space=sflag, size = 0x4, scoped, tag = 'scoped memory for tpu_custom_call.1']
    #allocation9 [shape = 'u8[1024]{0}', space=smem, size = 0x400, scoped, tag = 'input window, operand 4, single buffered']
    #allocation10 [shape = 'u8[512]{0}', space=smem, size = 0x200, scoped, tag = 'input window, operand 5, single buffered']
    #allocation11 [shape = 's32[1]{0}', space=sflag, size = 0x4, scoped, tag = 'scoped memory for tpu_custom_call.1']
    #allocation12 [shape = 'u8[16384]{0}', space=vmem, size = 0x4000, scoped, tag = 'output window, operand 0']
    %11 = vsyncpa [#allocation6], 0
    %12 = vsyncpa [#allocation8], 0
    %13 = vsyncpa [#allocation11], 0
    %14 = vsyncpa [#allocation5], 0
    %s15 = scalar_lea.sflag [#allocation5], 1
    %16 = vsyncpa %s15, 0
    loop: start=0, step=1, limit=6
    $region2: #{tpu_custom_call.1} parent=1 // loop_pre_header
      _
    $region3: #{tpu_custom_call.1} parent=1 // loop_header
      %s18 = sphi 0, %s22
      %p19 = scmp.ge.s32.totalorder %s18, 6
      %s25 = sphi 0, %s37
      %s26 = sphi 0, %s33
      %s27 = sphi 0, %s25
      %s28 = sphi 0, %s26
      %s29 = sphi 0, %s27
      %s30 = sphi 0, %s28
      %s42 = sphi 0, %s44
      %s45 = sphi 0, %s42
      %s46 = sphi 0, %s45
      %s62 = sphi 0, %s46
      %s70 = sphi 0, %s72
      %s73 = sphi 0, %s70
      %s74 = sphi 0, %s73
      %s90 = sphi 0, %s74
      %s94 = sphi 0, %s94
      %s96 = sphi 0, %s94
      %s97 = sphi 0, %s96
      %s111 = sphi 0, %s97
      %s115 = sphi 0, %s115
      %s117 = sphi 0, %s115
      %s118 = sphi 0, %s117
      %s132 = sphi 0, %s118
      %s136 = sphi 0, %s136
      %s138 = sphi 0, %s136
      %s139 = sphi 0, %s138
      %s153 = sphi 0, %s139
      %s157 = sphi 0, %s157
      %s159 = sphi 0, %s157
      %s160 = sphi 0, %s159
      %s174 = sphi 0, %s160
      %s182 = sphi 0, %s184
      %s185 = sphi 0, %s182
      %s186 = sphi 0, %s185
      %s202 = sphi 0, %s186
    $region4: #{tpu_custom_call.1} parent=1 // loop_header_branch
      %21 = sbr.rel (%p19) target = $region8
    $region5: #{tpu_custom_call.1} parent=1 // loop_body
      %s23 = ssub.s32 %s18, 1
      %s24 = ssub.s32 %s18, 2
      %s31 = sadd.s32 1, %s26
      %p32 = scmp.ge.s32.totalorder %s31, 2
      %s33 = scalar_select %p32, 0, %s31
      %s34 = sadd.s32 1, %s25
      %s35 = scalar_select %p32, %s34, %s25
      %p36 = scmp.ge.s32.totalorder %s35, 2
      %s37 = scalar_select %p36, 0, %s35
      %s38 = ssub.s32 %s25, %s37
      %s39 = ssub.s32 %s26, %s33
      %s40 = sor.u32 %s38, %s39
      %p41 = scmp.eq.s32.totalorder %s40, 0
      %s43 = sadd.s32 %s42, 1
      %s44 = scalar_select %p41, %s42, %s43
      %p47 = pneg %p41
      %p48 = scmp.eq.s32.totalorder %s18, 3
      %p49 = por %p47, %p48
      %p50 = scmp.ne.s32.totalorder %s42, %s45
      %p51 = scmp.eq.s32.totalorder %s18, 0
      %p52 = por %p50, %p51
      %p53 = scmp.ne.s32.totalorder %s42, %s45
      %p54 = scmp.eq.s32.totalorder %s23, 3
      %p55 = por %p53, %p54
      %p56 = scmp.ne.s32.totalorder %s45, %s46
      %p57 = scmp.eq.s32.totalorder %s23, 0
      %p58 = por %p56, %p57
      %p59 = scmp.ne.s32.totalorder %s45, %s46
      %p60 = scmp.eq.s32.totalorder %s24, 3
      %p61 = por %p59, %p60
      %p63 = scmp.ne.s32.totalorder %s46, %s62
      %p64 = scmp.eq.s32.totalorder %s24, 0
      %p65 = por %p63, %p64
      %s66 = ssub.s32 %s25, %s37
      %s67 = ssub.s32 %s26, %s33
      %s68 = sor.u32 %s66, %s67
      %p69 = scmp.eq.s32.totalorder %s68, 0
      %s71 = sadd.s32 %s70, 1
      %s72 = scalar_select %p69, %s70, %s71
      %p75 = pneg %p69
      %p76 = scmp.eq.s32.totalorder %s18, 3
      %p77 = por %p75, %p76
      %p78 = scmp.ne.s32.totalorder %s70, %s73
      %p79 = scmp.eq.s32.totalorder %s18, 0
      %p80 = por %p78, %p79
      %p81 = scmp.ne.s32.totalorder %s70, %s73
      %p82 = scmp.eq.s32.totalorder %s23, 3
      %p83 = por %p81, %p82
      %p84 = scmp.ne.s32.totalorder %s73, %s74
      %p85 = scmp.eq.s32.totalorder %s23, 0
      %p86 = por %p84, %p85
      %p87 = scmp.ne.s32.totalorder %s73, %s74
      %p88 = scmp.eq.s32.totalorder %s24, 3
      %p89 = por %p87, %p88
      %p91 = scmp.ne.s32.totalorder %s74, %s90
      %p92 = scmp.eq.s32.totalorder %s24, 0
      %p93 = por %p91, %p92
      %s95 = sadd.s32 %s94, 1
      %p98 = scmp.eq.s32.totalorder %s18, 3
      %p99 = scmp.ne.s32.totalorder %s94, %s96
      %p100 = scmp.eq.s32.totalorder %s18, 0
      %p101 = por %p99, %p100
      %p102 = scmp.ne.s32.totalorder %s94, %s96
      %p103 = scmp.eq.s32.totalorder %s23, 3
      %p104 = por %p102, %p103
      %p105 = scmp.ne.s32.totalorder %s96, %s97
      %p106 = scmp.eq.s32.totalorder %s23, 0
      %p107 = por %p105, %p106
      %p108 = scmp.ne.s32.totalorder %s96, %s97
      %p109 = scmp.eq.s32.totalorder %s24, 3
      %p110 = por %p108, %p109
      %p112 = scmp.ne.s32.totalorder %s97, %s111
      %p113 = scmp.eq.s32.totalorder %s24, 0
      %p114 = por %p112, %p113
      %s116 = sadd.s32 %s115, 1
      %p119 = scmp.eq.s32.totalorder %s18, 3
      %p120 = scmp.ne.s32.totalorder %s115, %s117
      %p121 = scmp.eq.s32.totalorder %s18, 0
      %p122 = por %p120, %p121
      %p123 = scmp.ne.s32.totalorder %s115, %s117
      %p124 = scmp.eq.s32.totalorder %s23, 3
      %p125 = por %p123, %p124
      %p126 = scmp.ne.s32.totalorder %s117, %s118
      %p127 = scmp.eq.s32.totalorder %s23, 0
      %p128 = por %p126, %p127
      %p129 = scmp.ne.s32.totalorder %s117, %s118
      %p130 = scmp.eq.s32.totalorder %s24, 3
      %p131 = por %p129, %p130
      %p133 = scmp.ne.s32.totalorder %s118, %s132
      %p134 = scmp.eq.s32.totalorder %s24, 0
      %p135 = por %p133, %p134
      %s137 = sadd.s32 %s136, 1
      %p140 = scmp.eq.s32.totalorder %s18, 3
      %p141 = scmp.ne.s32.totalorder %s136, %s138
      %p142 = scmp.eq.s32.totalorder %s18, 0
      %p143 = por %p141, %p142
      %p144 = scmp.ne.s32.totalorder %s136, %s138
      %p145 = scmp.eq.s32.totalorder %s23, 3
      %p146 = por %p144, %p145
      %p147 = scmp.ne.s32.totalorder %s138, %s139
      %p148 = scmp.eq.s32.totalorder %s23, 0
      %p149 = por %p147, %p148
      %p150 = scmp.ne.s32.totalorder %s138, %s139
      %p151 = scmp.eq.s32.totalorder %s24, 3
      %p152 = por %p150, %p151
      %p154 = scmp.ne.s32.totalorder %s139, %s153
      %p155 = scmp.eq.s32.totalorder %s24, 0
      %p156 = por %p154, %p155
      %s158 = sadd.s32 %s157, 1
      %p161 = scmp.eq.s32.totalorder %s18, 3
      %p162 = scmp.ne.s32.totalorder %s157, %s159
      %p163 = scmp.eq.s32.totalorder %s18, 0
      %p164 = por %p162, %p163
      %p165 = scmp.ne.s32.totalorder %s157, %s159
      %p166 = scmp.eq.s32.totalorder %s23, 3
      %p167 = por %p165, %p166
      %p168 = scmp.ne.s32.totalorder %s159, %s160
      %p169 = scmp.eq.s32.totalorder %s23, 0
      %p170 = por %p168, %p169
      %p171 = scmp.ne.s32.totalorder %s159, %s160
      %p172 = scmp.eq.s32.totalorder %s24, 3
      %p173 = por %p171, %p172
      %p175 = scmp.ne.s32.totalorder %s160, %s174
      %p176 = scmp.eq.s32.totalorder %s24, 0
      %p177 = por %p175, %p176
      %s178 = ssub.s32 %s25, %s37
      %s179 = ssub.s32 %s26, %s33
      %s180 = sor.u32 %s178, %s179
      %p181 = scmp.eq.s32.totalorder %s180, 0
      %s183 = sadd.s32 %s182, 1
      %s184 = scalar_select %p181, %s182, %s183
      %p187 = pneg %p181
      %p188 = scmp.eq.s32.totalorder %s18, 3
      %p189 = por %p187, %p188
      %p190 = scmp.ne.s32.totalorder %s182, %s185
      %p191 = scmp.eq.s32.totalorder %s18, 0
      %p192 = por %p190, %p191
      %p193 = scmp.ne.s32.totalorder %s182, %s185
      %p194 = scmp.eq.s32.totalorder %s23, 3
      %p195 = por %p193, %p194
      %p196 = scmp.ne.s32.totalorder %s185, %s186
      %p197 = scmp.eq.s32.totalorder %s23, 0
      %p198 = por %p196, %p197
      %p199 = scmp.ne.s32.totalorder %s185, %s186
      %p200 = scmp.eq.s32.totalorder %s24, 3
      %p201 = por %p199, %p200
      %p203 = scmp.ne.s32.totalorder %s186, %s202
      %p204 = scmp.eq.s32.totalorder %s24, 0
      %p205 = por %p203, %p204
      %p206 = scmp.le.s32.totalorder 1, %s18
      %p207 = scmp.lt.s32.totalorder %s18, 5
      %p208 = pnand %p206, %p207
      %p209 = pneg %p208
      // Predicated region
      $region9: #{tpu_custom_call.1} parent=5 // pred_check
        _
      $region10: #{tpu_custom_call.1} parent=5 // pred_check_branch
        %211 = sbr.rel (%p208) target = $region12
      $region11: #{tpu_custom_call.1} parent=5 // pred_region
        %s212 = ssub.s32 %s18, 1
        // Predicated region
        $region13: #{tpu_custom_call.1} parent=11 // pred_check
          %p213 = pneg %p107
        $region14: #{tpu_custom_call.1} parent=11 // pred_check_branch
          %215 = sbr.rel (%p213) target = $region16
        $region15: #{tpu_custom_call.1} parent=11 // pred_region
          %s217 = ssub.s32 16, 16
          %218 = vsyncadd [#allocation6], %s217
          %s220 = sshll.u32 %s2, 4
          %s221 = int_to_ptr.vmem [resolvable:$true] %s220
          %223 = dma.vmem_to_smem %s221, 16, [#allocation4], [#allocation6]
        $region16: #{tpu_custom_call.1} parent=11 // pred_fallthru
          _
        // Predicated region
        $region17: #{tpu_custom_call.1} parent=11 // pred_check
          %p224 = pneg %p128
        $region18: #{tpu_custom_call.1} parent=11 // pred_check_branch
          %226 = sbr.rel (%p224) target = $region20
        $region19: #{tpu_custom_call.1} parent=11 // pred_region
          %s228 = ssub.s32 32, 32
          %229 = vsyncadd [#allocation8], %s228
          %s231 = sshll.u32 %s3, 4
          %s232 = int_to_ptr.vmem [resolvable:$true] %s231
          %234 = dma.vmem_to_smem %s232, 32, [#allocation7], [#allocation8]
        $region20: #{tpu_custom_call.1} parent=11 // pred_fallthru
          _
        // Predicated region
        $region21: #{tpu_custom_call.1} parent=11 // pred_check
          %p235 = pneg %p149
        $region22: #{tpu_custom_call.1} parent=11 // pred_check_branch
          %237 = sbr.rel (%p235) target = $region24
        $region23: #{tpu_custom_call.1} parent=11 // pred_region
          %s239 = ssub.s32 32, 32
          %240 = vsyncadd [#allocation8], %s239
          %s242 = sshll.u32 %s4, 4
          %s243 = int_to_ptr.vmem [resolvable:$true] %s242
          %245 = dma.vmem_to_smem %s243, 32, [#allocation9], [#allocation8]
        $region24: #{tpu_custom_call.1} parent=11 // pred_fallthru
          _
        // Predicated region
        $region25: #{tpu_custom_call.1} parent=11 // pred_check
          %p246 = pneg %p170
        $region26: #{tpu_custom_call.1} parent=11 // pred_check_branch
          %248 = sbr.rel (%p246) target = $region28
        $region27: #{tpu_custom_call.1} parent=11 // pred_region
          %s250 = ssub.s32 16, 16
          %251 = vsyncadd [#allocation11], %s250
          %s253 = sshll.u32 %s5, 4
          %s254 = int_to_ptr.vmem [resolvable:$true] %s253
          %256 = dma.vmem_to_smem %s254, 16, [#allocation10], [#allocation11]
        $region28: #{tpu_custom_call.1} parent=11 // pred_fallthru
          _
      $region12: #{tpu_custom_call.1} parent=5 // pred_fallthru
        _
      %p257 = scmp.lt.s32.totalorder %s18, 4
      // Predicated region
      $region29: #{tpu_custom_call.1} parent=5 // pred_check
        %p258 = pneg %p257
      $region30: #{tpu_custom_call.1} parent=5 // pred_check_branch
        %260 = sbr.rel (%p258) target = $region32
      $region31: #{tpu_custom_call.1} parent=5 // pred_region
        // Predicated region
        $region33: #{tpu_custom_call.1} parent=31 // pred_check
          %p261 = pneg %p52
        $region34: #{tpu_custom_call.1} parent=31 // pred_check_branch
          %263 = sbr.rel (%p261) target = $region36
        $region35: #{tpu_custom_call.1} parent=31 // pred_region
          %s264 = sand.u32 %s42, 1
          %s265 = sand.u32 %s42, 1
          %s266 = smul.addr %s265, 24
          %s267 = scalar_lea.vmem [#allocation2], %s266
          %s268 = smul.addr %s25, 6
          %s269 = sadd.s32 %s26, %s268
          %s270 = smul.addr %s269, 8
          %s271 = scalar_lea.vmem %s0, %s270
          // Predicated region
          $region37: #{tpu_custom_call.1} parent=35 // pred_check
            _
          $region38: #{tpu_custom_call.1} parent=35 // pred_check_branch
            %273 = sbr.rel (0) target = $region40
          $region39: #{tpu_custom_call.1} parent=35 // pred_region
            // Predicated region
            $region41: #{tpu_custom_call.1} parent=39 // pred_check
              _
            $region42: #{tpu_custom_call.1} parent=39 // pred_check_branch
              %275 = sbr.rel (0) target = $region44
            $region43: #{tpu_custom_call.1} parent=39 // pred_region
              // Predicated region
              $region56: #{tpu_custom_call.1} parent=43 // pred_check
                _
              $region57: #{tpu_custom_call.1} parent=43 // pred_check_branch
                %295 = sbr.rel (0) target = $region59
              $region58: #{tpu_custom_call.1} parent=43 // pred_region
                loop: start=0, step=1, limit=1
                $region60: #{tpu_custom_call.1} parent=58 // loop_pre_header
                  _
                $region61: #{tpu_custom_call.1} parent=58 // loop_header
                  %s297 = sphi 0, %s301
                  %p298 = scmp.ge.s32.totalorder %s297, 1
                  %s302 = sphi %s271, %s271
                  %s303 = sphi %s267, %s267
                $region62: #{tpu_custom_call.1} parent=58 // loop_header_branch
                  %300 = sbr.rel (%p298) target = $region66
                $region63: #{tpu_custom_call.1} parent=58 // loop_body
                  %v304 = vld [vmem:[%s302] sm:$0xff]
                  %305 = vst [vmem:[%s303] sm:$0xff] %v304
                  %v306 = vld [vmem:[%s302 + $0x10] sm:$0xff]
                  %307 = vst [vmem:[%s303 + $0x8] sm:$0xff] %v306
                  %v308 = vld [vmem:[%s302 + $0x20] sm:$0xff]
                  %309 = vst [vmem:[%s303 + $0x10] sm:$0xff] %v308
                $region64: #{tpu_custom_call.1} parent=58 // loop_footer
                  %s301 = sadd.s32 1, %s297
                $region65: #{tpu_custom_call.1} parent=58 // loop_footer_branch
                  %296 = sbr.rel target = $region61
                $region66: #{tpu_custom_call.1} parent=58 // loop_exit
                  _
              $region59: #{tpu_custom_call.1} parent=43 // pred_fallthru
                _
              // Predicated region
              $region67: #{tpu_custom_call.1} parent=43 // pred_check
                _
              $region68: #{tpu_custom_call.1} parent=43 // pred_check_branch
                %311 = sbr.rel target = $region70
              $region69: #{tpu_custom_call.1} parent=43 // pred_region
                _
              $region70: #{tpu_custom_call.1} parent=43 // pred_fallthru
                _
            $region44: #{tpu_custom_call.1} parent=39 // pred_fallthru
              _
            // Predicated region
            $region45: #{tpu_custom_call.1} parent=39 // pred_check
              _
            $region46: #{tpu_custom_call.1} parent=39 // pred_check_branch
              %277 = sbr.rel target = $region48
            $region47: #{tpu_custom_call.1} parent=39 // pred_region
              %s279 = ssub.s32 256, 1
              loop: start=0, step=1, limit=1
              $region49: #{tpu_custom_call.1} parent=47 // loop_pre_header
                _
              $region50: #{tpu_custom_call.1} parent=47 // loop_header
                %s281 = sphi 0, %s285
                %p282 = scmp.ge.s32.totalorder %s281, 1
                %s286 = sphi %s271, %s271
                %s287 = sphi %s267, %s267
              $region51: #{tpu_custom_call.1} parent=47 // loop_header_branch
                %284 = sbr.rel (%p282) target = $region55
              $region52: #{tpu_custom_call.1} parent=47 // loop_body
                %v288 = vld [vmem:[%s286] sm:%s279]
                %289 = vst [vmem:[%s287] sm:%s279] %v288
                %v290 = vld [vmem:[%s286 + $0x10] sm:%s279]
                %291 = vst [vmem:[%s287 + $0x8] sm:%s279] %v290
                %v292 = vld [vmem:[%s286 + $0x20] sm:%s279]
                %293 = vst [vmem:[%s287 + $0x10] sm:%s279] %v292
              $region53: #{tpu_custom_call.1} parent=47 // loop_footer
                %s285 = sadd.s32 1, %s281
              $region54: #{tpu_custom_call.1} parent=47 // loop_footer_branch
                %280 = sbr.rel target = $region50
              $region55: #{tpu_custom_call.1} parent=47 // loop_exit
                _
            $region48: #{tpu_custom_call.1} parent=39 // pred_fallthru
              _
          $region40: #{tpu_custom_call.1} parent=35 // pred_fallthru
            _
          %312 = vnop
        $region36: #{tpu_custom_call.1} parent=31 // pred_fallthru
          _
        // Predicated region
        $region71: #{tpu_custom_call.1} parent=31 // pred_check
          %p313 = pneg %p80
        $region72: #{tpu_custom_call.1} parent=31 // pred_check_branch
          %315 = sbr.rel (%p313) target = $region74
        $region73: #{tpu_custom_call.1} parent=31 // pred_region
          %s316 = sand.u32 %s70, 1
          %s317 = sand.u32 %s70, 1
          %s318 = smul.addr %s317, 8
          %s319 = scalar_lea.vmem [#allocation3], %s318
          %s320 = smul.addr %s25, 4
          %s321 = sadd.s32 %s26, %s320
          %s322 = smul.addr %s321, 4
          %s323 = scalar_lea.vmem %s1, %s322
          // Predicated region
          $region75: #{tpu_custom_call.1} parent=73 // pred_check
            _
          $region76: #{tpu_custom_call.1} parent=73 // pred_check_branch
            %325 = sbr.rel (0) target = $region78
          $region77: #{tpu_custom_call.1} parent=73 // pred_region
            // Predicated region
            $region79: #{tpu_custom_call.1} parent=77 // pred_check
              _
            $region80: #{tpu_custom_call.1} parent=77 // pred_check_branch
              %327 = sbr.rel target = $region82
            $region81: #{tpu_custom_call.1} parent=77 // pred_region
              // Predicated region
              $region94: #{tpu_custom_call.1} parent=81 // pred_check
                _
              $region95: #{tpu_custom_call.1} parent=81 // pred_check_branch
                %345 = sbr.rel (0) target = $region97
              $region96: #{tpu_custom_call.1} parent=81 // pred_region
                loop: start=0, step=1, limit=1
                $region98: #{tpu_custom_call.1} parent=96 // loop_pre_header
                  _
                $region99: #{tpu_custom_call.1} parent=96 // loop_header
                  %s347 = sphi 0, %s351
                  %p348 = scmp.ge.s32.totalorder %s347, 1
                  %s352 = sphi %s323, %s323
                  %s353 = sphi %s319, %s319
                $region100: #{tpu_custom_call.1} parent=96 // loop_header_branch
                  %350 = sbr.rel (%p348) target = $region104
                $region101: #{tpu_custom_call.1} parent=96 // loop_body
                  _
                $region102: #{tpu_custom_call.1} parent=96 // loop_footer
                  %s351 = sadd.s32 1, %s347
                $region103: #{tpu_custom_call.1} parent=96 // loop_footer_branch
                  %346 = sbr.rel target = $region99
                $region104: #{tpu_custom_call.1} parent=96 // loop_exit
                  _
                %s355 = ssub.s32 16, 1
                loop: start=0, step=1, limit=1
                $region105: #{tpu_custom_call.1} parent=96 // loop_pre_header
                  _
                $region106: #{tpu_custom_call.1} parent=96 // loop_header
                  %s357 = sphi 0, %s361
                  %p358 = scmp.ge.s32.totalorder %s357, 1
                  %s362 = sphi %s323, %s323
                  %s363 = sphi %s319, %s319
                $region107: #{tpu_custom_call.1} parent=96 // loop_header_branch
                  %360 = sbr.rel (%p358) target = $region111
                $region108: #{tpu_custom_call.1} parent=96 // loop_body
                  %v364 = vld [vmem:[%s362] sm:%s355]
                  %365 = vst [vmem:[%s363] sm:%s355] %v364
                  %v366 = vld [vmem:[%s362 + $0x8] sm:%s355]
                  %367 = vst [vmem:[%s363 + $0x4] sm:%s355] %v366
                $region109: #{tpu_custom_call.1} parent=96 // loop_footer
                  %s361 = sadd.s32 1, %s357
                $region110: #{tpu_custom_call.1} parent=96 // loop_footer_branch
                  %356 = sbr.rel target = $region106
                $region111: #{tpu_custom_call.1} parent=96 // loop_exit
                  _
              $region97: #{tpu_custom_call.1} parent=81 // pred_fallthru
                _
            $region82: #{tpu_custom_call.1} parent=77 // pred_fallthru
              _
            // Predicated region
            $region83: #{tpu_custom_call.1} parent=77 // pred_check
              _
            $region84: #{tpu_custom_call.1} parent=77 // pred_check_branch
              %329 = sbr.rel (0) target = $region86
            $region85: #{tpu_custom_call.1} parent=77 // pred_region
              %s331 = ssub.s32 16, 1
              loop: start=0, step=1, limit=1
              $region87: #{tpu_custom_call.1} parent=85 // loop_pre_header
                _
              $region88: #{tpu_custom_call.1} parent=85 // loop_header
                %s333 = sphi 0, %s337
                %p334 = scmp.ge.s32.totalorder %s333, 1
                %s338 = sphi %s323, %s323
                %s339 = sphi %s319, %s319
              $region89: #{tpu_custom_call.1} parent=85 // loop_header_branch
                %336 = sbr.rel (%p334) target = $region93
              $region90: #{tpu_custom_call.1} parent=85 // loop_body
                %v340 = vld [vmem:[%s338] sm:%s331]
                %341 = vst [vmem:[%s339] sm:%s331] %v340
                %v342 = vld [vmem:[%s338 + $0x8] sm:%s331]
                %343 = vst [vmem:[%s339 + $0x4] sm:%s331] %v342
              $region91: #{tpu_custom_call.1} parent=85 // loop_footer
                %s337 = sadd.s32 1, %s333
              $region92: #{tpu_custom_call.1} parent=85 // loop_footer_branch
                %332 = sbr.rel target = $region88
              $region93: #{tpu_custom_call.1} parent=85 // loop_exit
                _
            $region86: #{tpu_custom_call.1} parent=77 // pred_fallthru
              _
          $region78: #{tpu_custom_call.1} parent=73 // pred_fallthru
            _
          %368 = vnop
        $region74: #{tpu_custom_call.1} parent=31 // pred_fallthru
          _
      $region32: #{tpu_custom_call.1} parent=5 // pred_fallthru
        _
      %p369 = scmp.le.s32.totalorder 1, %s18
      %p370 = scmp.lt.s32.totalorder %s18, 5
      %p371 = pnand %p369, %p370
      %p372 = pneg %p371
      // Predicated region
      $region112: #{tpu_custom_call.1} parent=5 // pred_check
        _
      $region113: #{tpu_custom_call.1} parent=5 // pred_check_branch
        %374 = sbr.rel (%p371) target = $region115
      $region114: #{tpu_custom_call.1} parent=5 // pred_region
        %s375 = ssub.s32 %s18, 1
        %s376 = sand.u32 %s45, 1
        %s377 = sand.u32 %s45, 1
        %s378 = smul.addr %s377, 24
        %s379 = scalar_lea.vmem [#allocation2], %s378
        // Predicated region
        $region116: #{tpu_custom_call.1} parent=114 // pred_check
          %p380 = pneg %p58
        $region117: #{tpu_custom_call.1} parent=114 // pred_check_branch
          %382 = sbr.rel (%p380) target = $region119
        $region118: #{tpu_custom_call.1} parent=114 // pred_region
          _
        $region119: #{tpu_custom_call.1} parent=114 // pred_fallthru
          _
        %s383 = sand.u32 %s73, 1
        %s384 = sand.u32 %s73, 1
        %s385 = smul.addr %s384, 8
        %s386 = scalar_lea.vmem [#allocation3], %s385
        // Predicated region
        $region120: #{tpu_custom_call.1} parent=114 // pred_check
          %p387 = pneg %p86
        $region121: #{tpu_custom_call.1} parent=114 // pred_check_branch
          %389 = sbr.rel (%p387) target = $region123
        $region122: #{tpu_custom_call.1} parent=114 // pred_region
          _
        $region123: #{tpu_custom_call.1} parent=114 // pred_fallthru
          _
        // Predicated region
        $region124: #{tpu_custom_call.1} parent=114 // pred_check
          %p390 = pneg %p107
        $region125: #{tpu_custom_call.1} parent=114 // pred_check_branch
          %392 = sbr.rel (%p390) target = $region127
        $region126: #{tpu_custom_call.1} parent=114 // pred_region
          %393 = dma.done [#allocation6], 16
        $region127: #{tpu_custom_call.1} parent=114 // pred_fallthru
          _
        // Predicated region
        $region128: #{tpu_custom_call.1} parent=114 // pred_check
          %p394 = pneg %p128
        $region129: #{tpu_custom_call.1} parent=114 // pred_check_branch
          %396 = sbr.rel (%p394) target = $region131
        $region130: #{tpu_custom_call.1} parent=114 // pred_region
          %397 = dma.done [#allocation8], 32
        $region131: #{tpu_custom_call.1} parent=114 // pred_fallthru
          _
        // Predicated region
        $region132: #{tpu_custom_call.1} parent=114 // pred_check
          %p398 = pneg %p149
        $region133: #{tpu_custom_call.1} parent=114 // pred_check_branch
          %400 = sbr.rel (%p398) target = $region135
        $region134: #{tpu_custom_call.1} parent=114 // pred_region
          %401 = dma.done [#allocation8], 32
        $region135: #{tpu_custom_call.1} parent=114 // pred_fallthru
          _
        // Predicated region
        $region136: #{tpu_custom_call.1} parent=114 // pred_check
          %p402 = pneg %p170
        $region137: #{tpu_custom_call.1} parent=114 // pred_check_branch
          %404 = sbr.rel (%p402) target = $region139
        $region138: #{tpu_custom_call.1} parent=114 // pred_region
          %405 = dma.done [#allocation11], 16
        $region139: #{tpu_custom_call.1} parent=114 // pred_fallthru
          _
        %406 = sfence
        %s407 = sand.u32 %s45, 1
        %s408 = sand.u32 %s45, 1
        %s409 = smul.addr %s408, 24
        %s410 = scalar_lea.vmem [#allocation2], %s409
        %p411 = pneg %p58
        %p412 = pneg %p55
        %s413 = sand.u32 %s73, 1
        %s414 = sand.u32 %s73, 1
        %s415 = smul.addr %s414, 8
        %s416 = scalar_lea.vmem [#allocation3], %s415
        %p417 = pneg %p86
        %p418 = pneg %p83
        %p419 = pneg %p107
        %p420 = pneg %p104
        %p421 = pneg %p128
        %p422 = pneg %p125
        %p423 = pneg %p149
        %p424 = pneg %p146
        %p425 = pneg %p170
        %p426 = pneg %p167
        %p427 = pneg %p198
        %p428 = pneg %p195
        %s429 = sand.u32 %s185, 1
        %s430 = scalar_lea.sflag [#allocation5], %s429
        %s431 = sand.u32 %s185, 1
        %s432 = smul.addr %s431, 16
        %s433 = scalar_lea.vmem [#allocation12], %s432
        %v434 = vld [vmem:[%s379 + $0x10] sm:$0x1]
        %v435 = vlaneseq
        %v436 = vshrl.u32 %v435, 7
        %v437 = vadd.s32 %v436, 8
        %v438 = vadd.s32 %v436, 1
        %v439 = vadd.s32 %v437, 1
        %v440 = vcvt.s32.f32 %v438
        %v441 = vcvt.s32.f32 %v439
        %v442 = vld [vmem:[%s386] sm:$0xf]
        %v443 = vld [vmem:[%s386 + $0x4] sm:$0xf]
        %v444 = vunpack.c.l.bf16 %v442
        %v445 = vunpack.c.l.bf16 %v443
        %s446 = sld [smem:[#allocation10 + $0x1]]
        %v447 = vstv %s446
        %v448 = vmul.f32 %v434, %v447
        %v449 = vsub.f32 1.0, %v434
        %s450 = sld [smem:[#allocation10 + $0x2]]
        %v451 = vstv %s450
        %v452 = vmul.f32 %v449, %v451
        %v453 = vadd.f32 %v448, %v452
        %v454 = vlaneseq
        %v455 = vshrl.u32 %v454, 7
        %v456 = vsub.s32 0, %v455
        %v457 = vrot.slane %v453, %v456
        %v458 = vmul.f32 %v457, %v444
        %v459 = vmul.f32 %v457, %v445
        %s460 = sld [smem:[#allocation10]]
        %v461 = vstv %s460
        %v462 = vadd.f32 %v458, %v461
        %v463 = vadd.f32 %v459, %v461
        %p464 = scmp.ne.s32.totalorder %s28, 0
        // Predicated region
        $region140: #{tpu_custom_call.1} parent=114 // pred_check
          %p465 = pneg %p464
        $region141: #{tpu_custom_call.1} parent=114 // pred_check_branch
          %467 = sbr.rel (%p465) target = $region143
        $region142: #{tpu_custom_call.1} parent=114 // pred_region
          %v468 = vld [vmem:[%s379] sm:$0x1]
          %v469 = vld [vmem:[%s379 + $0x8] sm:$0x1]
          %v470 = vlaneseq
          %v471 = vshrl.u32 %v470, 7
          %v472 = vsub.s32 0, %v471
          %v473 = vrot.slane %v468, %v472
          %v474 = vmul.f32 %v440, %v473
          %v475 = vmul.f32 %v441, %v473
          %v476 = vlaneseq
          %v477 = vshrl.u32 %v476, 7
          %v478 = vsub.s32 0, %v477
          %v479 = vrot.slane %v469, %v478
          %v480 = vadd.f32 %v479, %v474
          %v481 = vadd.f32 %v479, %v475
          %v482 = vfloor.f32 %v480
          %v483 = vfloor.f32 %v481
          %v484 = vsub.f32 %v480, %v482
          %v485 = vsub.f32 %v481, %v483
          %v486 = vmul.f32 %v484, 6.2831855
          %v487 = vmul.f32 %v485, 6.2831855
          %v488 = vand.u32 2147483647, %v486
          %vm489 = vcmp.le.f32.partialorder %v488, 0.7853982
          %vm490 = vcmp.lt.s32.totalorder %v486, 0
          %v491 = vand.u32 %v486, 2139095040
          %v492 = vshrl.u32 %v491, 23
          %v493 = vsub.s32 %v492, 127
          %v494 = vand.u32 2147483647, %v486
          %v495 = vand.u32 %v494, 8388607
          %v496 = vor.u32 %v495, 8388608
          %v497 = vsub.s32 0, %v496
          %v498 = vadd.s32 %v493, 1
          %vm499 = vcmp.gt.s32.totalorder %v498, 0
          %v500 = vsel %vm499, %v498, 0
          %v501 = vshrl.u32 %v500, 5
          %v502 = vand.u32 %v500, 31
          %v503 = vsub.s32 32, %v502
          %v504 = vshrl.u32 683565275, %v503
          %v505 = vshll.u32 683565275, %v502
          %v506 = vshrl.u32 2475754826, %v503
          %v507 = vor.u32 %v505, %v506
          %v508 = vshll.u32 2475754826, %v502
          %v509 = vshrl.u32 2131351028, %v503
          %v510 = vor.u32 %v508, %v509
          %v511 = vshll.u32 2131351028, %v502
          %v512 = vshrl.u32 2102212464, %v503
          %v513 = vor.u32 %v511, %v512
          %v514 = vshll.u32 2102212464, %v502
          %v515 = vshrl.u32 920167782, %v503
          %v516 = vor.u32 %v514, %v515
          %v517 = vshll.u32 920167782, %v502
          %v518 = vshrl.u32 1326507024, %v503
          %v519 = vor.u32 %v517, %v518
          %vm520 = vcmp.lt.s32.totalorder %v501, 1
          %vm521 = vcmp.lt.s32.totalorder %v501, 2
          %vm522 = vcmp.lt.s32.totalorder %v501, 3
          %vm523 = vcmp.lt.s32.totalorder %v501, 4
          %v524 = vsel %vm520, %v504, %v507
          %v525 = vsel %vm523, %v513, 2102212464
          %v526 = vsel %vm522, %v510, %v525
          %v527 = vsel %vm521, %v524, %v526
          %v528 = vsel %vm520, %v507, %v510
          %v529 = vsel %vm523, %v516, 920167782
          %v530 = vsel %vm522, %v513, %v529
          %v531 = vsel %vm521, %v528, %v530
          %v532 = vsel %vm520, %v510, %v513
          %v533 = vsel %vm523, %v519, 1326507024
          %v534 = vsel %vm522, %v516, %v533
          %v535 = vsel %vm521, %v532, %v534
          %v536 = vshll.u32 %v496, 8
          %v537 = vmul.u32.u64.compose %v536, %v535
          %v538 = vextract.low.u32 %v537
          %v539 = vextract.high.u32 %v537
          %v540 = vmul.u32.u64.compose %v536, %v531
          %v541 = vextract.low.u32 %v540
          %v542 = vextract.high.u32 %v540
          %v543 = vmul.u32 %v536, %v527
          %v544 = vadd.s32 %v539, %v541
          %vm545 = vc.u32 %v539, %v541
          %v546 = vadd.s32 %v542, 1
          %v547 = vsel %vm545, %v546, %v542
          %v548 = vadd.s32 %v543, %v547
          %v549 = vadd.s32 %v548, 536870912
          %v550 = vshrl.u32 %v549, 30
          %v551 = vshll.u32 %v550, 30
          %v552 = vsub.s32 %v548, %v551
          %vm553 = vcmp.lt.s32.totalorder %v552, 0
          %v554 = vsub.s32 0, %v552
          %v555 = vsel %vm553, %v554, %v552
          %v556 = vclz %v555
          %v557 = vsub.s32 %v556, 2
          %vm558 = vcmp.gt.s32.totalorder 0, %v557
          %v559 = vsel %vm558, 0, %v557
          %v560 = vsub.s32 32, %v559
          %v561 = vshll.u32 %v552, %v559
          %v562 = vshrl.u32 %v544, %v560
          %v563 = vor.u32 %v561, %v562
          %v564 = vsub.s32 4294967266, %v559
          %v565 = vadd.s32 %v564, 127
          %v566 = vshll.u32 %v565, 23
          %v567 = vor.u32 4788187, %v566
          %v568 = vand.u32 2147483647, %v567
          %v570 = vcvt.s32.f32 %v563
          %v571 = vmul.f32 %v570, %v568
          %v572 = vxor.u32 %v571, 2147483648
          %v573 = vsel %vm490, %v572, %v571
          %v574 = vsub.s32 4, %v550
          %v575 = vsel %vm490, %v574, %v550
          %v576 = vsel %vm489, %v486, %v573
          %v577 = vsel %vm489, 0, %v575
          %v578 = vcosq.f32.pop %v576
          %v579 = vsinq.f32.pop %v576
          %vm580 = vweird.f32 %v486
          %v581 = vadd.s32 %v577, 3
          %v582 = vand.u32 %v581, 3
          %vm583 = vcmp.lt.s32.totalorder %v582, 2
          %vm584 = vcmp.eq.s32.totalorder %v582, 0
          %v585 = vxor.u32 %v579, 2147483648
          %v586 = vsel %vm584, %v578, %v585
          %vm587 = vcmp.eq.s32.totalorder %v582, 2
          %v588 = vxor.u32 %v578, 2147483648
          %v589 = vsel %vm587, %v588, %v579
          %v590 = vsel %vm583, %v586, %v589
          %v591 = vsel %vm580, nan, %v590
          %v592 = vand.u32 2147483647, %v487
          %vm593 = vcmp.le.f32.partialorder %v592, 0.7853982
          %vm594 = vcmp.lt.s32.totalorder %v487, 0
          %v595 = vand.u32 %v487, 2139095040
          %v596 = vshrl.u32 %v595, 23
          %v597 = vsub.s32 %v596, 127
          %v598 = vand.u32 2147483647, %v487
          %v599 = vand.u32 %v598, 8388607
          %v600 = vor.u32 %v599, 8388608
          %v601 = vsub.s32 0, %v600
          %v602 = vadd.s32 %v597, 1
          %vm603 = vcmp.gt.s32.totalorder %v602, 0
          %v604 = vsel %vm603, %v602, 0
          %v605 = vshrl.u32 %v604, 5
          %v606 = vand.u32 %v604, 31
          %v607 = vsub.s32 32, %v606
          %v608 = vshrl.u32 683565275, %v607
          %v609 = vshll.u32 683565275, %v606
          %v610 = vshrl.u32 2475754826, %v607
          %v611 = vor.u32 %v609, %v610
          %v612 = vshll.u32 2475754826, %v606
          %v613 = vshrl.u32 2131351028, %v607
          %v614 = vor.u32 %v612, %v613
          %v615 = vshll.u32 2131351028, %v606
          %v616 = vshrl.u32 2102212464, %v607
          %v617 = vor.u32 %v615, %v616
          %v618 = vshll.u32 2102212464, %v606
          %v619 = vshrl.u32 920167782, %v607
          %v620 = vor.u32 %v618, %v619
          %v621 = vshll.u32 920167782, %v606
          %v622 = vshrl.u32 1326507024, %v607
          %v623 = vor.u32 %v621, %v622
          %vm624 = vcmp.lt.s32.totalorder %v605, 1
          %vm625 = vcmp.lt.s32.totalorder %v605, 2
          %vm626 = vcmp.lt.s32.totalorder %v605, 3
          %vm627 = vcmp.lt.s32.totalorder %v605, 4
          %v628 = vsel %vm624, %v608, %v611
          %v629 = vsel %vm627, %v617, 2102212464
          %v630 = vsel %vm626, %v614, %v629
          %v631 = vsel %vm625, %v628, %v630
          %v632 = vsel %vm624, %v611, %v614
          %v633 = vsel %vm627, %v620, 920167782
          %v634 = vsel %vm626, %v617, %v633
          %v635 = vsel %vm625, %v632, %v634
          %v636 = vsel %vm624, %v614, %v617
          %v637 = vsel %vm627, %v623, 1326507024
          %v638 = vsel %vm626, %v620, %v637
          %v639 = vsel %vm625, %v636, %v638
          %v640 = vshll.u32 %v600, 8
          %v641 = vmul.u32.u64.compose %v640, %v639
          %v642 = vextract.low.u32 %v641
          %v643 = vextract.high.u32 %v641
          %v644 = vmul.u32.u64.compose %v640, %v635
          %v645 = vextract.low.u32 %v644
          %v646 = vextract.high.u32 %v644
          %v647 = vmul.u32 %v640, %v631
          %v648 = vadd.s32 %v643, %v645
          %vm649 = vc.u32 %v643, %v645
          %v650 = vadd.s32 %v646, 1
          %v651 = vsel %vm649, %v650, %v646
          %v652 = vadd.s32 %v647, %v651
          %v653 = vadd.s32 %v652, 536870912
          %v654 = vshrl.u32 %v653, 30
          %v655 = vshll.u32 %v654, 30
          %v656 = vsub.s32 %v652, %v655
          %vm657 = vcmp.lt.s32.totalorder %v656, 0
          %v658 = vsub.s32 0, %v656
          %v659 = vsel %vm657, %v658, %v656
          %v660 = vclz %v659
          %v661 = vsub.s32 %v660, 2
          %vm662 = vcmp.gt.s32.totalorder 0, %v661
          %v663 = vsel %vm662, 0, %v661
          %v664 = vsub.s32 32, %v663
          %v665 = vshll.u32 %v656, %v663
          %v666 = vshrl.u32 %v648, %v664
          %v667 = vor.u32 %v665, %v666
          %v668 = vsub.s32 4294967266, %v663
          %v669 = vadd.s32 %v668, 127
          %v670 = vshll.u32 %v669, 23
          %v671 = vor.u32 4788187, %v670
          %v672 = vand.u32 2147483647, %v671
          %v674 = vcvt.s32.f32 %v667
          %v675 = vmul.f32 %v674, %v672
          %v676 = vxor.u32 %v675, 2147483648
          %v677 = vsel %vm594, %v676, %v675
          %v678 = vsub.s32 4, %v654
          %v679 = vsel %vm594, %v678, %v654
          %v680 = vsel %vm593, %v487, %v677
          %v681 = vsel %vm593, 0, %v679
          %v682 = vcosq.f32.pop %v680
          %v683 = vsinq.f32.pop %v680
          %vm684 = vweird.f32 %v487
          %v685 = vadd.s32 %v681, 3
          %v686 = vand.u32 %v685, 3
          %vm687 = vcmp.lt.s32.totalorder %v686, 2
          %vm688 = vcmp.eq.s32.totalorder %v686, 0
          %v689 = vxor.u32 %v683, 2147483648
          %v690 = vsel %vm688, %v682, %v689
          %vm691 = vcmp.eq.s32.totalorder %v686, 2
          %v692 = vxor.u32 %v682, 2147483648
          %v693 = vsel %vm691, %v692, %v683
          %v694 = vsel %vm687, %v690, %v693
          %v695 = vsel %vm684, nan, %v694
          %v696 = vand.u32 2147483647, %v486
          %vm697 = vcmp.le.f32.partialorder %v696, 0.7853982
          %vm698 = vcmp.lt.s32.totalorder %v486, 0
          %v699 = vand.u32 %v486, 2139095040
          %v700 = vshrl.u32 %v699, 23
          %v701 = vsub.s32 %v700, 127
          %v702 = vand.u32 2147483647, %v486
          %v703 = vand.u32 %v702, 8388607
          %v704 = vor.u32 %v703, 8388608
          %v705 = vsub.s32 0, %v704
          %v706 = vadd.s32 %v701, 1
          %vm707 = vcmp.gt.s32.totalorder %v706, 0
          %v708 = vsel %vm707, %v706, 0
          %v709 = vshrl.u32 %v708, 5
          %v710 = vand.u32 %v708, 31
          %v711 = vsub.s32 32, %v710
          %v712 = vshrl.u32 683565275, %v711
          %v713 = vshll.u32 683565275, %v710
          %v714 = vshrl.u32 2475754826, %v711
          %v715 = vor.u32 %v713, %v714
          %v716 = vshll.u32 2475754826, %v710
          %v717 = vshrl.u32 2131351028, %v711
          %v718 = vor.u32 %v716, %v717
          %v719 = vshll.u32 2131351028, %v710
          %v720 = vshrl.u32 2102212464, %v711
          %v721 = vor.u32 %v719, %v720
          %v722 = vshll.u32 2102212464, %v710
          %v723 = vshrl.u32 920167782, %v711
          %v724 = vor.u32 %v722, %v723
          %v725 = vshll.u32 920167782, %v710
          %v726 = vshrl.u32 1326507024, %v711
          %v727 = vor.u32 %v725, %v726
          %vm728 = vcmp.lt.s32.totalorder %v709, 1
          %vm729 = vcmp.lt.s32.totalorder %v709, 2
          %vm730 = vcmp.lt.s32.totalorder %v709, 3
          %vm731 = vcmp.lt.s32.totalorder %v709, 4
          %v732 = vsel %vm728, %v712, %v715
          %v733 = vsel %vm731, %v721, 2102212464
          %v734 = vsel %vm730, %v718, %v733
          %v735 = vsel %vm729, %v732, %v734
          %v736 = vsel %vm728, %v715, %v718
          %v737 = vsel %vm731, %v724, 920167782
          %v738 = vsel %vm730, %v721, %v737
          %v739 = vsel %vm729, %v736, %v738
          %v740 = vsel %vm728, %v718, %v721
          %v741 = vsel %vm731, %v727, 1326507024
          %v742 = vsel %vm730, %v724, %v741
          %v743 = vsel %vm729, %v740, %v742
          %v744 = vshll.u32 %v704, 8
          %v745 = vmul.u32.u64.compose %v744, %v743
          %v746 = vextract.low.u32 %v745
          %v747 = vextract.high.u32 %v745
          %v748 = vmul.u32.u64.compose %v744, %v739
          %v749 = vextract.low.u32 %v748
          %v750 = vextract.high.u32 %v748
          %v751 = vmul.u32 %v744, %v735
          %v752 = vadd.s32 %v747, %v749
          %vm753 = vc.u32 %v747, %v749
          %v754 = vadd.s32 %v750, 1
          %v755 = vsel %vm753, %v754, %v750
          %v756 = vadd.s32 %v751, %v755
          %v757 = vadd.s32 %v756, 536870912
          %v758 = vshrl.u32 %v757, 30
          %v759 = vshll.u32 %v758, 30
          %v760 = vsub.s32 %v756, %v759
          %vm761 = vcmp.lt.s32.totalorder %v760, 0
          %v762 = vsub.s32 0, %v760
          %v763 = vsel %vm761, %v762, %v760
          %v764 = vclz %v763
          %v765 = vsub.s32 %v764, 2
          %vm766 = vcmp.gt.s32.totalorder 0, %v765
          %v767 = vsel %vm766, 0, %v765
          %v768 = vsub.s32 32, %v767
          %v769 = vshll.u32 %v760, %v767
          %v770 = vshrl.u32 %v752, %v768
          %v771 = vor.u32 %v769, %v770
          %v772 = vsub.s32 4294967266, %v767
          %v773 = vadd.s32 %v772, 127
          %v774 = vshll.u32 %v773, 23
          %v775 = vor.u32 4788187, %v774
          %v776 = vand.u32 2147483647, %v775
          %v778 = vcvt.s32.f32 %v771
          %v779 = vmul.f32 %v778, %v776
          %v780 = vxor.u32 %v779, 2147483648
          %v781 = vsel %vm698, %v780, %v779
          %v782 = vsub.s32 4, %v758
          %v783 = vsel %vm698, %v782, %v758
          %v784 = vsel %vm697, %v486, %v781
          %v785 = vsel %vm697, 0, %v783
          %v786 = vcosq.f32.pop %v784
          %v787 = vsinq.f32.pop %v784
          %vm788 = vweird.f32 %v486
          %v789 = vand.u32 %v785, 3
          %vm790 = vcmp.lt.s32.totalorder %v789, 2
          %vm791 = vcmp.eq.s32.totalorder %v789, 0
          %v792 = vxor.u32 %v787, 2147483648
          %v793 = vsel %vm791, %v786, %v792
          %vm794 = vcmp.eq.s32.totalorder %v789, 2
          %v795 = vxor.u32 %v786, 2147483648
          %v796 = vsel %vm794, %v795, %v787
          %v797 = vsel %vm790, %v793, %v796
          %v798 = vsel %vm788, nan, %v797
          %v799 = vand.u32 2147483647, %v487
          %vm800 = vcmp.le.f32.partialorder %v799, 0.7853982
          %vm801 = vcmp.lt.s32.totalorder %v487, 0
          %v802 = vand.u32 %v487, 2139095040
          %v803 = vshrl.u32 %v802, 23
          %v804 = vsub.s32 %v803, 127
          %v805 = vand.u32 2147483647, %v487
          %v806 = vand.u32 %v805, 8388607
          %v807 = vor.u32 %v806, 8388608
          %v808 = vsub.s32 0, %v807
          %v809 = vadd.s32 %v804, 1
          %vm810 = vcmp.gt.s32.totalorder %v809, 0
          %v811 = vsel %vm810, %v809, 0
          %v812 = vshrl.u32 %v811, 5
          %v813 = vand.u32 %v811, 31
          %v814 = vsub.s32 32, %v813
          %v815 = vshrl.u32 683565275, %v814
          %v816 = vshll.u32 683565275, %v813
          %v817 = vshrl.u32 2475754826, %v814
          %v818 = vor.u32 %v816, %v817
          %v819 = vshll.u32 2475754826, %v813
          %v820 = vshrl.u32 2131351028, %v814
          %v821 = vor.u32 %v819, %v820
          %v822 = vshll.u32 2131351028, %v813
          %v823 = vshrl.u32 2102212464, %v814
          %v824 = vor.u32 %v822, %v823
          %v825 = vshll.u32 2102212464, %v813
          %v826 = vshrl.u32 920167782, %v814
          %v827 = vor.u32 %v825, %v826
          %v828 = vshll.u32 920167782, %v813
          %v829 = vshrl.u32 1326507024, %v814
          %v830 = vor.u32 %v828, %v829
          %vm831 = vcmp.lt.s32.totalorder %v812, 1
          %vm832 = vcmp.lt.s32.totalorder %v812, 2
          %vm833 = vcmp.lt.s32.totalorder %v812, 3
          %vm834 = vcmp.lt.s32.totalorder %v812, 4
          %v835 = vsel %vm831, %v815, %v818
          %v836 = vsel %vm834, %v824, 2102212464
          %v837 = vsel %vm833, %v821, %v836
          %v838 = vsel %vm832, %v835, %v837
          %v839 = vsel %vm831, %v818, %v821
          %v840 = vsel %vm834, %v827, 920167782
          %v841 = vsel %vm833, %v824, %v840
          %v842 = vsel %vm832, %v839, %v841
          %v843 = vsel %vm831, %v821, %v824
          %v844 = vsel %vm834, %v830, 1326507024
          %v845 = vsel %vm833, %v827, %v844
          %v846 = vsel %vm832, %v843, %v845
          %v847 = vshll.u32 %v807, 8
          %v848 = vmul.u32.u64.compose %v847, %v846
          %v849 = vextract.low.u32 %v848
          %v850 = vextract.high.u32 %v848
          %v851 = vmul.u32.u64.compose %v847, %v842
          %v852 = vextract.low.u32 %v851
          %v853 = vextract.high.u32 %v851
          %v854 = vmul.u32 %v847, %v838
          %v855 = vadd.s32 %v850, %v852
          %vm856 = vc.u32 %v850, %v852
          %v857 = vadd.s32 %v853, 1
          %v858 = vsel %vm856, %v857, %v853
          %v859 = vadd.s32 %v854, %v858
          %v860 = vadd.s32 %v859, 536870912
          %v861 = vshrl.u32 %v860, 30
          %v862 = vshll.u32 %v861, 30
          %v863 = vsub.s32 %v859, %v862
          %vm864 = vcmp.lt.s32.totalorder %v863, 0
          %v865 = vsub.s32 0, %v863
          %v866 = vsel %vm864, %v865, %v863
          %v867 = vclz %v866
          %v868 = vsub.s32 %v867, 2
          %vm869 = vcmp.gt.s32.totalorder 0, %v868
          %v870 = vsel %vm869, 0, %v868
          %v871 = vsub.s32 32, %v870
          %v872 = vshll.u32 %v863, %v870
          %v873 = vshrl.u32 %v855, %v871
          %v874 = vor.u32 %v872, %v873
          %v875 = vsub.s32 4294967266, %v870
          %v876 = vadd.s32 %v875, 127
          %v877 = vshll.u32 %v876, 23
          %v878 = vor.u32 4788187, %v877
          %v879 = vand.u32 2147483647, %v878
          %v881 = vcvt.s32.f32 %v874
          %v882 = vmul.f32 %v881, %v879
          %v883 = vxor.u32 %v882, 2147483648
          %v884 = vsel %vm801, %v883, %v882
          %v885 = vsub.s32 4, %v861
          %v886 = vsel %vm801, %v885, %v861
          %v887 = vsel %vm800, %v487, %v884
          %v888 = vsel %vm800, 0, %v886
          %v889 = vcosq.f32.pop %v887
          %v890 = vsinq.f32.pop %v887
          %vm891 = vweird.f32 %v487
          %v892 = vand.u32 %v888, 3
          %vm893 = vcmp.lt.s32.totalorder %v892, 2
          %vm894 = vcmp.eq.s32.totalorder %v892, 0
          %v895 = vxor.u32 %v890, 2147483648
          %v896 = vsel %vm894, %v889, %v895
          %vm897 = vcmp.eq.s32.totalorder %v892, 2
          %v898 = vxor.u32 %v889, 2147483648
          %v899 = vsel %vm897, %v898, %v890
          %v900 = vsel %vm893, %v896, %v899
          %v901 = vsel %vm891, nan, %v900
          %s902 = smul.u32 %s27, 128
          %s903 = sld [smem:[#allocation7 + %s902]]
          %v904 = vstv %s903
          %v905 = vmul.f32 %v904, %v591
          %v906 = vmul.f32 %v904, %v695
          %s907 = sld [smem:[#allocation9 + %s902]]
          %v908 = vstv %s907
          %v909 = vmul.f32 %v908, %v798
          %v910 = vmul.f32 %v908, %v901
          %v911 = vadd.f32 %v905, %v909
          %v912 = vadd.f32 %v906, %v910
          %v913 = vmul.f32 %v591, %v798
          %v914 = vmul.f32 %v695, %v901
          %v915 = vadd.f32 %v913, %v913
          %v916 = vadd.f32 %v914, %v914
          %v917 = vmul.f32 %v798, %v798
          %v918 = vmul.f32 %v901, %v901
          %v919 = vmul.f32 %v591, %v591
          %v920 = vmul.f32 %v695, %v695
          %v921 = vsub.f32 %v917, %v919
          %v922 = vsub.f32 %v918, %v920
          %s923 = sadd.s32 %s902, 1
          %s924 = sld [smem:[#allocation7 + %s923]]
          %v925 = vstv %s924
          %v926 = vmul.f32 %v925, %v915
          %v927 = vmul.f32 %v925, %v916
          %v928 = vadd.f32 %v911, %v926
          %v929 = vadd.f32 %v912, %v927
          %s930 = sld [smem:[#allocation9 + %s923]]
          %v931 = vstv %s930
          %v932 = vmul.f32 %v931, %v921
          %v933 = vmul.f32 %v931, %v922
          %v934 = vadd.f32 %v928, %v932
          %v935 = vadd.f32 %v929, %v933
          %v936 = vmul.f32 %v915, %v798
          %v937 = vmul.f32 %v916, %v901
          %v938 = vmul.f32 %v921, %v591
          %v939 = vmul.f32 %v922, %v695
          %v940 = vadd.f32 %v936, %v938
          %v941 = vadd.f32 %v937, %v939
          %v942 = vmul.f32 %v921, %v798
          %v943 = vmul.f32 %v922, %v901
          %v944 = vmul.f32 %v915, %v591
          %v945 = vmul.f32 %v916, %v695
          %v946 = vsub.f32 %v942, %v944
          %v947 = vsub.f32 %v943, %v945
          %s948 = sadd.s32 %s902, 2
          %s949 = sld [smem:[#allocation7 + %s948]]
          %v950 = vstv %s949
          %v951 = vmul.f32 %v950, %v940
          %v952 = vmul.f32 %v950, %v941
          %v953 = vadd.f32 %v934, %v951
          %v954 = vadd.f32 %v935, %v952
          %s955 = sld [smem:[#allocation9 + %s948]]
          %v956 = vstv %s955
          %v957 = vmul.f32 %v956, %v946
          %v958 = vmul.f32 %v956, %v947
          %v959 = vadd.f32 %v953, %v957
          %v960 = vadd.f32 %v954, %v958
          %v961 = vmul.f32 %v940, %v798
          %v962 = vmul.f32 %v941, %v901
          %v963 = vmul.f32 %v946, %v591
          %v964 = vmul.f32 %v947, %v695
          %v965 = vadd.f32 %v961, %v963
          %v966 = vadd.f32 %v962, %v964
          %v967 = vmul.f32 %v946, %v798
          %v968 = vmul.f32 %v947, %v901
          %v969 = vmul.f32 %v940, %v591
          %v970 = vmul.f32 %v941, %v695
          %v971 = vsub.f32 %v967, %v969
          %v972 = vsub.f32 %v968, %v970
          %s973 = sadd.s32 %s902, 3
          %s974 = sld [smem:[#allocation7 + %s973]]
          %v975 = vstv %s974
          %v976 = vmul.f32 %v975, %v965
          %v977 = vmul.f32 %v975, %v966
          %v978 = vadd.f32 %v959, %v976
          %v979 = vadd.f32 %v960, %v977
          %s980 = sld [smem:[#allocation9 + %s973]]
          %v981 = vstv %s980
          %v982 = vmul.f32 %v981, %v971
          %v983 = vmul.f32 %v981, %v972
          %v984 = vadd.f32 %v978, %v982
          %v985 = vadd.f32 %v979, %v983
          %v986 = vmul.f32 %v965, %v798
          %v987 = vmul.f32 %v966, %v901
          %v988 = vmul.f32 %v971, %v591
          %v989 = vmul.f32 %v972, %v695
          %v990 = vadd.f32 %v986, %v988
          %v991 = vadd.f32 %v987, %v989
          %v992 = vmul.f32 %v971, %v798
          %v993 = vmul.f32 %v972, %v901
          %v994 = vmul.f32 %v965, %v591
          %v995 = vmul.f32 %v966, %v695
          %v996 = vsub.f32 %v992, %v994
          %v997 = vsub.f32 %v993, %v995
          %s998 = sadd.s32 %s902, 4
          %s999 = sld [smem:[#allocation7 + %s998]]
          %v1000 = vstv %s999
          %v1001 = vmul.f32 %v1000, %v990
          %v1002 = vmul.f32 %v1000, %v991
          %v1003 = vadd.f32 %v984, %v1001
          %v1004 = vadd.f32 %v985, %v1002
          %s1005 = sld [smem:[#allocation9 + %s998]]
          %v1006 = vstv %s1005
          %v1007 = vmul.f32 %v1006, %v996
          %v1008 = vmul.f32 %v1006, %v997
          %v1009 = vadd.f32 %v1003, %v1007
          %v1010 = vadd.f32 %v1004, %v1008
          %v1011 = vmul.f32 %v990, %v798
          %v1012 = vmul.f32 %v991, %v901
          %v1013 = vmul.f32 %v996, %v591
          %v1014 = vmul.f32 %v997, %v695
          %v1015 = vadd.f32 %v1011, %v1013
          %v1016 = vadd.f32 %v1012, %v1014
          %v1017 = vmul.f32 %v996, %v798
          %v1018 = vmul.f32 %v997, %v901
          %v1019 = vmul.f32 %v990, %v591
          %v1020 = vmul.f32 %v991, %v695
          %v1021 = vsub.f32 %v1017, %v1019
          %v1022 = vsub.f32 %v1018, %v1020
          %s1023 = sadd.s32 %s902, 5
          %s1024 = sld [smem:[#allocation7 + %s1023]]
          %v1025 = vstv %s1024
          %v1026 = vmul.f32 %v1025, %v1015
          %v1027 = vmul.f32 %v1025, %v1016
          %v1028 = vadd.f32 %v1009, %v1026
          %v1029 = vadd.f32 %v1010, %v1027
          %s1030 = sld [smem:[#allocation9 + %s1023]]
          %v1031 = vstv %s1030
          %v1032 = vmul.f32 %v1031, %v1021
          %v1033 = vmul.f32 %v1031, %v1022
          %v1034 = vadd.f32 %v1028, %v1032
          %v1035 = vadd.f32 %v1029, %v1033
          %v1036 = vmul.f32 %v1015, %v798
          %v1037 = vmul.f32 %v1016, %v901
          %v1038 = vmul.f32 %v1021, %v591
          %v1039 = vmul.f32 %v1022, %v695
          %v1040 = vadd.f32 %v1036, %v1038
          %v1041 = vadd.f32 %v1037, %v1039
          %v1042 = vmul.f32 %v1021, %v798
          %v1043 = vmul.f32 %v1022, %v901
          %v1044 = vmul.f32 %v1015, %v591
          %v1045 = vmul.f32 %v1016, %v695
          %v1046 = vsub.f32 %v1042, %v1044
          %v1047 = vsub.f32 %v1043, %v1045
          %s1048 = sadd.s32 %s902, 6
          %s1049 = sld [smem:[#allocation7 + %s1048]]
          %v1050 = vstv %s1049
          %v1051 = vmul.f32 %v1050, %v1040
          %v1052 = vmul.f32 %v1050, %v1041
          %v1053 = vadd.f32 %v1034, %v1051
          %v1054 = vadd.f32 %v1035, %v1052
          %s1055 = sld [smem:[#allocation9 + %s1048]]
          %v1056 = vstv %s1055
          %v1057 = vmul.f32 %v1056, %v1046
          %v1058 = vmul.f32 %v1056, %v1047
          %v1059 = vadd.f32 %v1053, %v1057
          %v1060 = vadd.f32 %v1054, %v1058
          %v1061 = vmul.f32 %v1040, %v798
          %v1062 = vmul.f32 %v1041, %v901
          %v1063 = vmul.f32 %v1046, %v591
          %v1064 = vmul.f32 %v1047, %v695
          %v1065 = vadd.f32 %v1061, %v1063
          %v1066 = vadd.f32 %v1062, %v1064
          %v1067 = vmul.f32 %v1046, %v798
          %v1068 = vmul.f32 %v1047, %v901
          %v1069 = vmul.f32 %v1040, %v591
          %v1070 = vmul.f32 %v1041, %v695
          %v1071 = vsub.f32 %v1067, %v1069
          %v1072 = vsub.f32 %v1068, %v1070
          %s1073 = sadd.s32 %s902, 7
          %s1074 = sld [smem:[#allocation7 + %s1073]]
          %v1075 = vstv %s1074
          %v1076 = vmul.f32 %v1075, %v1065
          %v1077 = vmul.f32 %v1075, %v1066
          %v1078 = vadd.f32 %v1059, %v1076
          %v1079 = vadd.f32 %v1060, %v1077
          %s1080 = sld [smem:[#allocation9 + %s1073]]
          %v1081 = vstv %s1080
          %v1082 = vmul.f32 %v1081, %v1071
          %v1083 = vmul.f32 %v1081, %v1072
          %v1084 = vadd.f32 %v1078, %v1082
          %v1085 = vadd.f32 %v1079, %v1083
          %v1086 = vmul.f32 %v434, 0.1
          %v1087 = vlaneseq
          %v1088 = vshrl.u32 %v1087, 7
          %v1089 = vsub.s32 0, %v1088
          %v1090 = vrot.slane %v1086, %v1089
          %v1091 = vmul.f32 %v1090, %v1084
          %v1092 = vmul.f32 %v1090, %v1085
          %v1093 = vadd.f32 %v1091, %v462
          %v1094 = vadd.f32 %v1092, %v463
          %v1095 = vtanh.pop %v1093
          %v1096 = vtanh.pop %v1094
          %1097 = vst [vmem:[%s433] sm:$0xff] %v1095
          %1098 = vst [vmem:[%s433 + $0x8] sm:$0xff] %v1096
        $region143: #{tpu_custom_call.1} parent=114 // pred_fallthru
          _
        %p1099 = scmp.eq.s32.totalorder %s28, 0
        // Predicated region
        $region144: #{tpu_custom_call.1} parent=114 // pred_check
          %p1100 = pneg %p1099
        $region145: #{tpu_custom_call.1} parent=114 // pred_check_branch
          %1102 = sbr.rel (%p1100) target = $region147
        $region146: #{tpu_custom_call.1} parent=114 // pred_region
          %v1103 = vld [vmem:[%s379] sm:$0x1]
          %v1104 = vld [vmem:[%s379 + $0x8] sm:$0x1]
          %v1105 = vlaneseq
          %v1106 = vshrl.u32 %v1105, 7
          %v1107 = vsub.s32 0, %v1106
          %v1108 = vrot.slane %v1103, %v1107
          %v1109 = vmul.f32 %v440, %v1108
          %v1110 = vmul.f32 %v441, %v1108
          %v1111 = vlaneseq
          %v1112 = vshrl.u32 %v1111, 7
          %v1113 = vsub.s32 0, %v1112
          %v1114 = vrot.slane %v1104, %v1113
          %v1115 = vadd.f32 %v1114, %v1109
          %v1116 = vadd.f32 %v1114, %v1110
          %v1117 = vfloor.f32 %v1115
          %v1118 = vfloor.f32 %v1116
          %v1119 = vsub.f32 %v1115, %v1117
          %v1120 = vsub.f32 %v1116, %v1118
          %s1121 = sld [smem:[#allocation4]]
          %v1122 = vmul.f32 %v1119, 6.2831855
          %v1123 = vmul.f32 %v1120, 6.2831855
          %v1124 = vand.u32 2147483647, %v1122
          %vm1125 = vcmp.le.f32.partialorder %v1124, 0.7853982
          %vm1126 = vcmp.lt.s32.totalorder %v1122, 0
          %v1127 = vand.u32 %v1122, 2139095040
          %v1128 = vshrl.u32 %v1127, 23
          %v1129 = vsub.s32 %v1128, 127
          %v1130 = vand.u32 2147483647, %v1122
          %v1131 = vand.u32 %v1130, 8388607
          %v1132 = vor.u32 %v1131, 8388608
          %v1133 = vsub.s32 0, %v1132
          %v1134 = vadd.s32 %v1129, 1
          %vm1135 = vcmp.gt.s32.totalorder %v1134, 0
          %v1136 = vsel %vm1135, %v1134, 0
          %v1137 = vshrl.u32 %v1136, 5
          %v1138 = vand.u32 %v1136, 31
          %v1139 = vsub.s32 32, %v1138
          %v1140 = vshrl.u32 683565275, %v1139
          %v1141 = vshll.u32 683565275, %v1138
          %v1142 = vshrl.u32 2475754826, %v1139
          %v1143 = vor.u32 %v1141, %v1142
          %v1144 = vshll.u32 2475754826, %v1138
          %v1145 = vshrl.u32 2131351028, %v1139
          %v1146 = vor.u32 %v1144, %v1145
          %v1147 = vshll.u32 2131351028, %v1138
          %v1148 = vshrl.u32 2102212464, %v1139
          %v1149 = vor.u32 %v1147, %v1148
          %v1150 = vshll.u32 2102212464, %v1138
          %v1151 = vshrl.u32 920167782, %v1139
          %v1152 = vor.u32 %v1150, %v1151
          %v1153 = vshll.u32 920167782, %v1138
          %v1154 = vshrl.u32 1326507024, %v1139
          %v1155 = vor.u32 %v1153, %v1154
          %vm1156 = vcmp.lt.s32.totalorder %v1137, 1
          %vm1157 = vcmp.lt.s32.totalorder %v1137, 2
          %vm1158 = vcmp.lt.s32.totalorder %v1137, 3
          %vm1159 = vcmp.lt.s32.totalorder %v1137, 4
          %v1160 = vsel %vm1156, %v1140, %v1143
          %v1161 = vsel %vm1159, %v1149, 2102212464
          %v1162 = vsel %vm1158, %v1146, %v1161
          %v1163 = vsel %vm1157, %v1160, %v1162
          %v1164 = vsel %vm1156, %v1143, %v1146
          %v1165 = vsel %vm1159, %v1152, 920167782
          %v1166 = vsel %vm1158, %v1149, %v1165
          %v1167 = vsel %vm1157, %v1164, %v1166
          %v1168 = vsel %vm1156, %v1146, %v1149
          %v1169 = vsel %vm1159, %v1155, 1326507024
          %v1170 = vsel %vm1158, %v1152, %v1169
          %v1171 = vsel %vm1157, %v1168, %v1170
          %v1172 = vshll.u32 %v1132, 8
          %v1173 = vmul.u32.u64.compose %v1172, %v1171
          %v1174 = vextract.low.u32 %v1173
          %v1175 = vextract.high.u32 %v1173
          %v1176 = vmul.u32.u64.compose %v1172, %v1167
          %v1177 = vextract.low.u32 %v1176
          %v1178 = vextract.high.u32 %v1176
          %v1179 = vmul.u32 %v1172, %v1163
          %v1180 = vadd.s32 %v1175, %v1177
          %vm1181 = vc.u32 %v1175, %v1177
          %v1182 = vadd.s32 %v1178, 1
          %v1183 = vsel %vm1181, %v1182, %v1178
          %v1184 = vadd.s32 %v1179, %v1183
          %v1185 = vadd.s32 %v1184, 536870912
          %v1186 = vshrl.u32 %v1185, 30
          %v1187 = vshll.u32 %v1186, 30
          %v1188 = vsub.s32 %v1184, %v1187
          %vm1189 = vcmp.lt.s32.totalorder %v1188, 0
          %v1190 = vsub.s32 0, %v1188
          %v1191 = vsel %vm1189, %v1190, %v1188
          %v1192 = vclz %v1191
          %v1193 = vsub.s32 %v1192, 2
          %vm1194 = vcmp.gt.s32.totalorder 0, %v1193
          %v1195 = vsel %vm1194, 0, %v1193
          %v1196 = vsub.s32 32, %v1195
          %v1197 = vshll.u32 %v1188, %v1195
          %v1198 = vshrl.u32 %v1180, %v1196
          %v1199 = vor.u32 %v1197, %v1198
          %v1200 = vsub.s32 4294967266, %v1195
          %v1201 = vadd.s32 %v1200, 127
          %v1202 = vshll.u32 %v1201, 23
          %v1203 = vor.u32 4788187, %v1202
          %v1204 = vand.u32 2147483647, %v1203
          %v1206 = vcvt.s32.f32 %v1199
          %v1207 = vmul.f32 %v1206, %v1204
          %v1208 = vxor.u32 %v1207, 2147483648
          %v1209 = vsel %vm1126, %v1208, %v1207
          %v1210 = vsub.s32 4, %v1186
          %v1211 = vsel %vm1126, %v1210, %v1186
          %v1212 = vsel %vm1125, %v1122, %v1209
          %v1213 = vsel %vm1125, 0, %v1211
          %v1214 = vcosq.f32.pop %v1212
          %v1215 = vsinq.f32.pop %v1212
          %vm1216 = vweird.f32 %v1122
          %v1217 = vadd.s32 %v1213, 3
          %v1218 = vand.u32 %v1217, 3
          %vm1219 = vcmp.lt.s32.totalorder %v1218, 2
          %vm1220 = vcmp.eq.s32.totalorder %v1218, 0
          %v1221 = vxor.u32 %v1215, 2147483648
          %v1222 = vsel %vm1220, %v1214, %v1221
          %vm1223 = vcmp.eq.s32.totalorder %v1218, 2
          %v1224 = vxor.u32 %v1214, 2147483648
          %v1225 = vsel %vm1223, %v1224, %v1215
          %v1226 = vsel %vm1219, %v1222, %v1225
          %v1227 = vsel %vm1216, nan, %v1226
          %v1228 = vand.u32 2147483647, %v1123
          %vm1229 = vcmp.le.f32.partialorder %v1228, 0.7853982
          %vm1230 = vcmp.lt.s32.totalorder %v1123, 0
          %v1231 = vand.u32 %v1123, 2139095040
          %v1232 = vshrl.u32 %v1231, 23
          %v1233 = vsub.s32 %v1232, 127
          %v1234 = vand.u32 2147483647, %v1123
          %v1235 = vand.u32 %v1234, 8388607
          %v1236 = vor.u32 %v1235, 8388608
          %v1237 = vsub.s32 0, %v1236
          %v1238 = vadd.s32 %v1233, 1
          %vm1239 = vcmp.gt.s32.totalorder %v1238, 0
          %v1240 = vsel %vm1239, %v1238, 0
          %v1241 = vshrl.u32 %v1240, 5
          %v1242 = vand.u32 %v1240, 31
          %v1243 = vsub.s32 32, %v1242
          %v1244 = vshrl.u32 683565275, %v1243
          %v1245 = vshll.u32 683565275, %v1242
          %v1246 = vshrl.u32 2475754826, %v1243
          %v1247 = vor.u32 %v1245, %v1246
          %v1248 = vshll.u32 2475754826, %v1242
          %v1249 = vshrl.u32 2131351028, %v1243
          %v1250 = vor.u32 %v1248, %v1249
          %v1251 = vshll.u32 2131351028, %v1242
          %v1252 = vshrl.u32 2102212464, %v1243
          %v1253 = vor.u32 %v1251, %v1252
          %v1254 = vshll.u32 2102212464, %v1242
          %v1255 = vshrl.u32 920167782, %v1243
          %v1256 = vor.u32 %v1254, %v1255
          %v1257 = vshll.u32 920167782, %v1242
          %v1258 = vshrl.u32 1326507024, %v1243
          %v1259 = vor.u32 %v1257, %v1258
          %vm1260 = vcmp.lt.s32.totalorder %v1241, 1
          %vm1261 = vcmp.lt.s32.totalorder %v1241, 2
          %vm1262 = vcmp.lt.s32.totalorder %v1241, 3
          %vm1263 = vcmp.lt.s32.totalorder %v1241, 4
          %v1264 = vsel %vm1260, %v1244, %v1247
          %v1265 = vsel %vm1263, %v1253, 2102212464
          %v1266 = vsel %vm1262, %v1250, %v1265
          %v1267 = vsel %vm1261, %v1264, %v1266
          %v1268 = vsel %vm1260, %v1247, %v1250
          %v1269 = vsel %vm1263, %v1256, 920167782
          %v1270 = vsel %vm1262, %v1253, %v1269
          %v1271 = vsel %vm1261, %v1268, %v1270
          %v1272 = vsel %vm1260, %v1250, %v1253
          %v1273 = vsel %vm1263, %v1259, 1326507024
          %v1274 = vsel %vm1262, %v1256, %v1273
          %v1275 = vsel %vm1261, %v1272, %v1274
          %v1276 = vshll.u32 %v1236, 8
          %v1277 = vmul.u32.u64.compose %v1276, %v1275
          %v1278 = vextract.low.u32 %v1277
          %v1279 = vextract.high.u32 %v1277
          %v1280 = vmul.u32.u64.compose %v1276, %v1271
          %v1281 = vextract.low.u32 %v1280
          %v1282 = vextract.high.u32 %v1280
          %v1283 = vmul.u32 %v1276, %v1267
          %v1284 = vadd.s32 %v1279, %v1281
          %vm1285 = vc.u32 %v1279, %v1281
          %v1286 = vadd.s32 %v1282, 1
          %v1287 = vsel %vm1285, %v1286, %v1282
          %v1288 = vadd.s32 %v1283, %v1287
          %v1289 = vadd.s32 %v1288, 536870912
          %v1290 = vshrl.u32 %v1289, 30
          %v1291 = vshll.u32 %v1290, 30
          %v1292 = vsub.s32 %v1288, %v1291
          %vm1293 = vcmp.lt.s32.totalorder %v1292, 0
          %v1294 = vsub.s32 0, %v1292
          %v1295 = vsel %vm1293, %v1294, %v1292
          %v1296 = vclz %v1295
          %v1297 = vsub.s32 %v1296, 2
          %vm1298 = vcmp.gt.s32.totalorder 0, %v1297
          %v1299 = vsel %vm1298, 0, %v1297
          %v1300 = vsub.s32 32, %v1299
          %v1301 = vshll.u32 %v1292, %v1299
          %v1302 = vshrl.u32 %v1284, %v1300
          %v1303 = vor.u32 %v1301, %v1302
          %v1304 = vsub.s32 4294967266, %v1299
          %v1305 = vadd.s32 %v1304, 127
          %v1306 = vshll.u32 %v1305, 23
          %v1307 = vor.u32 4788187, %v1306
          %v1308 = vand.u32 2147483647, %v1307
          %v1310 = vcvt.s32.f32 %v1303
          %v1311 = vmul.f32 %v1310, %v1308
          %v1312 = vxor.u32 %v1311, 2147483648
          %v1313 = vsel %vm1230, %v1312, %v1311
          %v1314 = vsub.s32 4, %v1290
          %v1315 = vsel %vm1230, %v1314, %v1290
          %v1316 = vsel %vm1229, %v1123, %v1313
          %v1317 = vsel %vm1229, 0, %v1315
          %v1318 = vcosq.f32.pop %v1316
          %v1319 = vsinq.f32.pop %v1316
          %vm1320 = vweird.f32 %v1123
          %v1321 = vadd.s32 %v1317, 3
          %v1322 = vand.u32 %v1321, 3
          %vm1323 = vcmp.lt.s32.totalorder %v1322, 2
          %vm1324 = vcmp.eq.s32.totalorder %v1322, 0
          %v1325 = vxor.u32 %v1319, 2147483648
          %v1326 = vsel %vm1324, %v1318, %v1325
          %vm1327 = vcmp.eq.s32.totalorder %v1322, 2
          %v1328 = vxor.u32 %v1318, 2147483648
          %v1329 = vsel %vm1327, %v1328, %v1319
          %v1330 = vsel %vm1323, %v1326, %v1329
          %v1331 = vsel %vm1320, nan, %v1330
          %v1332 = vstv %s1121
          %v1333 = vmul.f32 %v1332, %v1227
          %v1334 = vmul.f32 %v1332, %v1331
          %v1335 = vadd.f32 %v1333, 0.0
          %v1336 = vadd.f32 %v1334, 0.0
          %v1337 = vld [vmem:[%s379 + $0x1] sm:$0x1]
          %v1338 = vld [vmem:[%s379 + $0x9] sm:$0x1]
          %v1339 = vlaneseq
          %v1340 = vshrl.u32 %v1339, 7
          %v1341 = vsub.s32 0, %v1340
          %v1342 = vrot.slane %v1337, %v1341
          %v1343 = vmul.f32 %v440, %v1342
          %v1344 = vmul.f32 %v441, %v1342
          %v1345 = vlaneseq
          %v1346 = vshrl.u32 %v1345, 7
          %v1347 = vsub.s32 0, %v1346
          %v1348 = vrot.slane %v1338, %v1347
          %v1349 = vadd.f32 %v1348, %v1343
          %v1350 = vadd.f32 %v1348, %v1344
          %v1351 = vfloor.f32 %v1349
          %v1352 = vfloor.f32 %v1350
          %v1353 = vsub.f32 %v1349, %v1351
          %v1354 = vsub.f32 %v1350, %v1352
          %s1355 = sld [smem:[#allocation4 + $0x1]]
          %v1356 = vmul.f32 %v1353, 6.2831855
          %v1357 = vmul.f32 %v1354, 6.2831855
          %v1358 = vand.u32 2147483647, %v1356
          %vm1359 = vcmp.le.f32.partialorder %v1358, 0.7853982
          %vm1360 = vcmp.lt.s32.totalorder %v1356, 0
          %v1361 = vand.u32 %v1356, 2139095040
          %v1362 = vshrl.u32 %v1361, 23
          %v1363 = vsub.s32 %v1362, 127
          %v1364 = vand.u32 2147483647, %v1356
          %v1365 = vand.u32 %v1364, 8388607
          %v1366 = vor.u32 %v1365, 8388608
          %v1367 = vsub.s32 0, %v1366
          %v1368 = vadd.s32 %v1363, 1
          %vm1369 = vcmp.gt.s32.totalorder %v1368, 0
          %v1370 = vsel %vm1369, %v1368, 0
          %v1371 = vshrl.u32 %v1370, 5
          %v1372 = vand.u32 %v1370, 31
          %v1373 = vsub.s32 32, %v1372
          %v1374 = vshrl.u32 683565275, %v1373
          %v1375 = vshll.u32 683565275, %v1372
          %v1376 = vshrl.u32 2475754826, %v1373
          %v1377 = vor.u32 %v1375, %v1376
          %v1378 = vshll.u32 2475754826, %v1372
          %v1379 = vshrl.u32 2131351028, %v1373
          %v1380 = vor.u32 %v1378, %v1379
          %v1381 = vshll.u32 2131351028, %v1372
          %v1382 = vshrl.u32 2102212464, %v1373
          %v1383 = vor.u32 %v1381, %v1382
          %v1384 = vshll.u32 2102212464, %v1372
          %v1385 = vshrl.u32 920167782, %v1373
          %v1386 = vor.u32 %v1384, %v1385
          %v1387 = vshll.u32 920167782, %v1372
          %v1388 = vshrl.u32 1326507024, %v1373
          %v1389 = vor.u32 %v1387, %v1388
          %vm1390 = vcmp.lt.s32.totalorder %v1371, 1
          %vm1391 = vcmp.lt.s32.totalorder %v1371, 2
          %vm1392 = vcmp.lt.s32.totalorder %v1371, 3
          %vm1393 = vcmp.lt.s32.totalorder %v1371, 4
          %v1394 = vsel %vm1390, %v1374, %v1377
          %v1395 = vsel %vm1393, %v1383, 2102212464
          %v1396 = vsel %vm1392, %v1380, %v1395
          %v1397 = vsel %vm1391, %v1394, %v1396
          %v1398 = vsel %vm1390, %v1377, %v1380
          %v1399 = vsel %vm1393, %v1386, 920167782
          %v1400 = vsel %vm1392, %v1383, %v1399
          %v1401 = vsel %vm1391, %v1398, %v1400
          %v1402 = vsel %vm1390, %v1380, %v1383
          %v1403 = vsel %vm1393, %v1389, 1326507024
          %v1404 = vsel %vm1392, %v1386, %v1403
          %v1405 = vsel %vm1391, %v1402, %v1404
          %v1406 = vshll.u32 %v1366, 8
          %v1407 = vmul.u32.u64.compose %v1406, %v1405
          %v1408 = vextract.low.u32 %v1407
          %v1409 = vextract.high.u32 %v1407
          %v1410 = vmul.u32.u64.compose %v1406, %v1401
          %v1411 = vextract.low.u32 %v1410
          %v1412 = vextract.high.u32 %v1410
          %v1413 = vmul.u32 %v1406, %v1397
          %v1414 = vadd.s32 %v1409, %v1411
          %vm1415 = vc.u32 %v1409, %v1411
          %v1416 = vadd.s32 %v1412, 1
          %v1417 = vsel %vm1415, %v1416, %v1412
          %v1418 = vadd.s32 %v1413, %v1417
          %v1419 = vadd.s32 %v1418, 536870912
          %v1420 = vshrl.u32 %v1419, 30
          %v1421 = vshll.u32 %v1420, 30
          %v1422 = vsub.s32 %v1418, %v1421
          %vm1423 = vcmp.lt.s32.totalorder %v1422, 0
          %v1424 = vsub.s32 0, %v1422
          %v1425 = vsel %vm1423, %v1424, %v1422
          %v1426 = vclz %v1425
          %v1427 = vsub.s32 %v1426, 2
          %vm1428 = vcmp.gt.s32.totalorder 0, %v1427
          %v1429 = vsel %vm1428, 0, %v1427
          %v1430 = vsub.s32 32, %v1429
          %v1431 = vshll.u32 %v1422, %v1429
          %v1432 = vshrl.u32 %v1414, %v1430
          %v1433 = vor.u32 %v1431, %v1432
          %v1434 = vsub.s32 4294967266, %v1429
          %v1435 = vadd.s32 %v1434, 127
          %v1436 = vshll.u32 %v1435, 23
          %v1437 = vor.u32 4788187, %v1436
          %v1438 = vand.u32 2147483647, %v1437
          %v1440 = vcvt.s32.f32 %v1433
          %v1441 = vmul.f32 %v1440, %v1438
          %v1442 = vxor.u32 %v1441, 2147483648
          %v1443 = vsel %vm1360, %v1442, %v1441
          %v1444 = vsub.s32 4, %v1420
          %v1445 = vsel %vm1360, %v1444, %v1420
          %v1446 = vsel %vm1359, %v1356, %v1443
          %v1447 = vsel %vm1359, 0, %v1445
          %v1448 = vcosq.f32.pop %v1446
          %v1449 = vsinq.f32.pop %v1446
          %vm1450 = vweird.f32 %v1356
          %v1451 = vadd.s32 %v1447, 3
          %v1452 = vand.u32 %v1451, 3
          %vm1453 = vcmp.lt.s32.totalorder %v1452, 2
          %vm1454 = vcmp.eq.s32.totalorder %v1452, 0
          %v1455 = vxor.u32 %v1449, 2147483648
          %v1456 = vsel %vm1454, %v1448, %v1455
          %vm1457 = vcmp.eq.s32.totalorder %v1452, 2
          %v1458 = vxor.u32 %v1448, 2147483648
          %v1459 = vsel %vm1457, %v1458, %v1449
          %v1460 = vsel %vm1453, %v1456, %v1459
          %v1461 = vsel %vm1450, nan, %v1460
          %v1462 = vand.u32 2147483647, %v1357
          %vm1463 = vcmp.le.f32.partialorder %v1462, 0.7853982
          %vm1464 = vcmp.lt.s32.totalorder %v1357, 0
          %v1465 = vand.u32 %v1357, 2139095040
          %v1466 = vshrl.u32 %v1465, 23
          %v1467 = vsub.s32 %v1466, 127
          %v1468 = vand.u32 2147483647, %v1357
          %v1469 = vand.u32 %v1468, 8388607
          %v1470 = vor.u32 %v1469, 8388608
          %v1471 = vsub.s32 0, %v1470
          %v1472 = vadd.s32 %v1467, 1
          %vm1473 = vcmp.gt.s32.totalorder %v1472, 0
          %v1474 = vsel %vm1473, %v1472, 0
          %v1475 = vshrl.u32 %v1474, 5
          %v1476 = vand.u32 %v1474, 31
          %v1477 = vsub.s32 32, %v1476
          %v1478 = vshrl.u32 683565275, %v1477
          %v1479 = vshll.u32 683565275, %v1476
          %v1480 = vshrl.u32 2475754826, %v1477
          %v1481 = vor.u32 %v1479, %v1480
          %v1482 = vshll.u32 2475754826, %v1476
          %v1483 = vshrl.u32 2131351028, %v1477
          %v1484 = vor.u32 %v1482, %v1483
          %v1485 = vshll.u32 2131351028, %v1476
          %v1486 = vshrl.u32 2102212464, %v1477
          %v1487 = vor.u32 %v1485, %v1486
          %v1488 = vshll.u32 2102212464, %v1476
          %v1489 = vshrl.u32 920167782, %v1477
          %v1490 = vor.u32 %v1488, %v1489
          %v1491 = vshll.u32 920167782, %v1476
          %v1492 = vshrl.u32 1326507024, %v1477
          %v1493 = vor.u32 %v1491, %v1492
          %vm1494 = vcmp.lt.s32.totalorder %v1475, 1
          %vm1495 = vcmp.lt.s32.totalorder %v1475, 2
          %vm1496 = vcmp.lt.s32.totalorder %v1475, 3
          %vm1497 = vcmp.lt.s32.totalorder %v1475, 4
          %v1498 = vsel %vm1494, %v1478, %v1481
          %v1499 = vsel %vm1497, %v1487, 2102212464
          %v1500 = vsel %vm1496, %v1484, %v1499
          %v1501 = vsel %vm1495, %v1498, %v1500
          %v1502 = vsel %vm1494, %v1481, %v1484
          %v1503 = vsel %vm1497, %v1490, 920167782
          %v1504 = vsel %vm1496, %v1487, %v1503
          %v1505 = vsel %vm1495, %v1502, %v1504
          %v1506 = vsel %vm1494, %v1484, %v1487
          %v1507 = vsel %vm1497, %v1493, 1326507024
          %v1508 = vsel %vm1496, %v1490, %v1507
          %v1509 = vsel %vm1495, %v1506, %v1508
          %v1510 = vshll.u32 %v1470, 8
          %v1511 = vmul.u32.u64.compose %v1510, %v1509
          %v1512 = vextract.low.u32 %v1511
          %v1513 = vextract.high.u32 %v1511
          %v1514 = vmul.u32.u64.compose %v1510, %v1505
          %v1515 = vextract.low.u32 %v1514
          %v1516 = vextract.high.u32 %v1514
          %v1517 = vmul.u32 %v1510, %v1501
          %v1518 = vadd.s32 %v1513, %v1515
          %vm1519 = vc.u32 %v1513, %v1515
          %v1520 = vadd.s32 %v1516, 1
          %v1521 = vsel %vm1519, %v1520, %v1516
          %v1522 = vadd.s32 %v1517, %v1521
          %v1523 = vadd.s32 %v1522, 536870912
          %v1524 = vshrl.u32 %v1523, 30
          %v1525 = vshll.u32 %v1524, 30
          %v1526 = vsub.s32 %v1522, %v1525
          %vm1527 = vcmp.lt.s32.totalorder %v1526, 0
          %v1528 = vsub.s32 0, %v1526
          %v1529 = vsel %vm1527, %v1528, %v1526
          %v1530 = vclz %v1529
          %v1531 = vsub.s32 %v1530, 2
          %vm1532 = vcmp.gt.s32.totalorder 0, %v1531
          %v1533 = vsel %vm1532, 0, %v1531
          %v1534 = vsub.s32 32, %v1533
          %v1535 = vshll.u32 %v1526, %v1533
          %v1536 = vshrl.u32 %v1518, %v1534
          %v1537 = vor.u32 %v1535, %v1536
          %v1538 = vsub.s32 4294967266, %v1533
          %v1539 = vadd.s32 %v1538, 127
          %v1540 = vshll.u32 %v1539, 23
          %v1541 = vor.u32 4788187, %v1540
          %v1542 = vand.u32 2147483647, %v1541
          %v1544 = vcvt.s32.f32 %v1537
          %v1545 = vmul.f32 %v1544, %v1542
          %v1546 = vxor.u32 %v1545, 2147483648
          %v1547 = vsel %vm1464, %v1546, %v1545
          %v1548 = vsub.s32 4, %v1524
          %v1549 = vsel %vm1464, %v1548, %v1524
          %v1550 = vsel %vm1463, %v1357, %v1547
          %v1551 = vsel %vm1463, 0, %v1549
          %v1552 = vcosq.f32.pop %v1550
          %v1553 = vsinq.f32.pop %v1550
          %vm1554 = vweird.f32 %v1357
          %v1555 = vadd.s32 %v1551, 3
          %v1556 = vand.u32 %v1555, 3
          %vm1557 = vcmp.lt.s32.totalorder %v1556, 2
          %vm1558 = vcmp.eq.s32.totalorder %v1556, 0
          %v1559 = vxor.u32 %v1553, 2147483648
          %v1560 = vsel %vm1558, %v1552, %v1559
          %vm1561 = vcmp.eq.s32.totalorder %v1556, 2
          %v1562 = vxor.u32 %v1552, 2147483648
          %v1563 = vsel %vm1561, %v1562, %v1553
          %v1564 = vsel %vm1557, %v1560, %v1563
          %v1565 = vsel %vm1554, nan, %v1564
          %v1566 = vstv %s1355
          %v1567 = vmul.f32 %v1566, %v1461
          %v1568 = vmul.f32 %v1566, %v1565
          %v1569 = vadd.f32 %v1335, %v1567
          %v1570 = vadd.f32 %v1336, %v1568
          %v1571 = vld [vmem:[%s379 + $0x2] sm:$0x1]
          %v1572 = vld [vmem:[%s379 + $0xa] sm:$0x1]
          %v1573 = vlaneseq
          %v1574 = vshrl.u32 %v1573, 7
          %v1575 = vsub.s32 0, %v1574
          %v1576 = vrot.slane %v1571, %v1575
          %v1577 = vmul.f32 %v440, %v1576
          %v1578 = vmul.f32 %v441, %v1576
          %v1579 = vlaneseq
          %v1580 = vshrl.u32 %v1579, 7
          %v1581 = vsub.s32 0, %v1580
          %v1582 = vrot.slane %v1572, %v1581
          %v1583 = vadd.f32 %v1582, %v1577
          %v1584 = vadd.f32 %v1582, %v1578
          %v1585 = vfloor.f32 %v1583
          %v1586 = vfloor.f32 %v1584
          %v1587 = vsub.f32 %v1583, %v1585
          %v1588 = vsub.f32 %v1584, %v1586
          %s1589 = sld [smem:[#allocation4 + $0x2]]
          %v1590 = vmul.f32 %v1587, 6.2831855
          %v1591 = vmul.f32 %v1588, 6.2831855
          %v1592 = vand.u32 2147483647, %v1590
          %vm1593 = vcmp.le.f32.partialorder %v1592, 0.7853982
          %vm1594 = vcmp.lt.s32.totalorder %v1590, 0
          %v1595 = vand.u32 %v1590, 2139095040
          %v1596 = vshrl.u32 %v1595, 23
          %v1597 = vsub.s32 %v1596, 127
          %v1598 = vand.u32 2147483647, %v1590
          %v1599 = vand.u32 %v1598, 8388607
          %v1600 = vor.u32 %v1599, 8388608
          %v1601 = vsub.s32 0, %v1600
          %v1602 = vadd.s32 %v1597, 1
          %vm1603 = vcmp.gt.s32.totalorder %v1602, 0
          %v1604 = vsel %vm1603, %v1602, 0
          %v1605 = vshrl.u32 %v1604, 5
          %v1606 = vand.u32 %v1604, 31
          %v1607 = vsub.s32 32, %v1606
          %v1608 = vshrl.u32 683565275, %v1607
          %v1609 = vshll.u32 683565275, %v1606
          %v1610 = vshrl.u32 2475754826, %v1607
          %v1611 = vor.u32 %v1609, %v1610
          %v1612 = vshll.u32 2475754826, %v1606
          %v1613 = vshrl.u32 2131351028, %v1607
          %v1614 = vor.u32 %v1612, %v1613
          %v1615 = vshll.u32 2131351028, %v1606
          %v1616 = vshrl.u32 2102212464, %v1607
          %v1617 = vor.u32 %v1615, %v1616
          %v1618 = vshll.u32 2102212464, %v1606
          %v1619 = vshrl.u32 920167782, %v1607
          %v1620 = vor.u32 %v1618, %v1619
          %v1621 = vshll.u32 920167782, %v1606
          %v1622 = vshrl.u32 1326507024, %v1607
          %v1623 = vor.u32 %v1621, %v1622
          %vm1624 = vcmp.lt.s32.totalorder %v1605, 1
          %vm1625 = vcmp.lt.s32.totalorder %v1605, 2
          %vm1626 = vcmp.lt.s32.totalorder %v1605, 3
          %vm1627 = vcmp.lt.s32.totalorder %v1605, 4
          %v1628 = vsel %vm1624, %v1608, %v1611
          %v1629 = vsel %vm1627, %v1617, 2102212464
          %v1630 = vsel %vm1626, %v1614, %v1629
          %v1631 = vsel %vm1625, %v1628, %v1630
          %v1632 = vsel %vm1624, %v1611, %v1614
          %v1633 = vsel %vm1627, %v1620, 920167782
          %v1634 = vsel %vm1626, %v1617, %v1633
          %v1635 = vsel %vm1625, %v1632, %v1634
          %v1636 = vsel %vm1624, %v1614, %v1617
          %v1637 = vsel %vm1627, %v1623, 1326507024
          %v1638 = vsel %vm1626, %v1620, %v1637
          %v1639 = vsel %vm1625, %v1636, %v1638
          %v1640 = vshll.u32 %v1600, 8
          %v1641 = vmul.u32.u64.compose %v1640, %v1639
          %v1642 = vextract.low.u32 %v1641
          %v1643 = vextract.high.u32 %v1641
          %v1644 = vmul.u32.u64.compose %v1640, %v1635
          %v1645 = vextract.low.u32 %v1644
          %v1646 = vextract.high.u32 %v1644
          %v1647 = vmul.u32 %v1640, %v1631
          %v1648 = vadd.s32 %v1643, %v1645
          %vm1649 = vc.u32 %v1643, %v1645
          %v1650 = vadd.s32 %v1646, 1
          %v1651 = vsel %vm1649, %v1650, %v1646
          %v1652 = vadd.s32 %v1647, %v1651
          %v1653 = vadd.s32 %v1652, 536870912
          %v1654 = vshrl.u32 %v1653, 30
          %v1655 = vshll.u32 %v1654, 30
          %v1656 = vsub.s32 %v1652, %v1655
          %vm1657 = vcmp.lt.s32.totalorder %v1656, 0
          %v1658 = vsub.s32 0, %v1656
          %v1659 = vsel %vm1657, %v1658, %v1656
          %v1660 = vclz %v1659
          %v1661 = vsub.s32 %v1660, 2
          %vm1662 = vcmp.gt.s32.totalorder 0, %v1661
          %v1663 = vsel %vm1662, 0, %v1661
          %v1664 = vsub.s32 32, %v1663
          %v1665 = vshll.u32 %v1656, %v1663
          %v1666 = vshrl.u32 %v1648, %v1664
          %v1667 = vor.u32 %v1665, %v1666
          %v1668 = vsub.s32 4294967266, %v1663
          %v1669 = vadd.s32 %v1668, 127
          %v1670 = vshll.u32 %v1669, 23
          %v1671 = vor.u32 4788187, %v1670
          %v1672 = vand.u32 2147483647, %v1671
          %v1674 = vcvt.s32.f32 %v1667
          %v1675 = vmul.f32 %v1674, %v1672
          %v1676 = vxor.u32 %v1675, 2147483648
          %v1677 = vsel %vm1594, %v1676, %v1675
          %v1678 = vsub.s32 4, %v1654
          %v1679 = vsel %vm1594, %v1678, %v1654
          %v1680 = vsel %vm1593, %v1590, %v1677
          %v1681 = vsel %vm1593, 0, %v1679
          %v1682 = vcosq.f32.pop %v1680
          %v1683 = vsinq.f32.pop %v1680
          %vm1684 = vweird.f32 %v1590
          %v1685 = vadd.s32 %v1681, 3
          %v1686 = vand.u32 %v1685, 3
          %vm1687 = vcmp.lt.s32.totalorder %v1686, 2
          %vm1688 = vcmp.eq.s32.totalorder %v1686, 0
          %v1689 = vxor.u32 %v1683, 2147483648
          %v1690 = vsel %vm1688, %v1682, %v1689
          %vm1691 = vcmp.eq.s32.totalorder %v1686, 2
          %v1692 = vxor.u32 %v1682, 2147483648
          %v1693 = vsel %vm1691, %v1692, %v1683
          %v1694 = vsel %vm1687, %v1690, %v1693
          %v1695 = vsel %vm1684, nan, %v1694
          %v1696 = vand.u32 2147483647, %v1591
          %vm1697 = vcmp.le.f32.partialorder %v1696, 0.7853982
          %vm1698 = vcmp.lt.s32.totalorder %v1591, 0
          %v1699 = vand.u32 %v1591, 2139095040
          %v1700 = vshrl.u32 %v1699, 23
          %v1701 = vsub.s32 %v1700, 127
          %v1702 = vand.u32 2147483647, %v1591
          %v1703 = vand.u32 %v1702, 8388607
          %v1704 = vor.u32 %v1703, 8388608
          %v1705 = vsub.s32 0, %v1704
          %v1706 = vadd.s32 %v1701, 1
          %vm1707 = vcmp.gt.s32.totalorder %v1706, 0
          %v1708 = vsel %vm1707, %v1706, 0
          %v1709 = vshrl.u32 %v1708, 5
          %v1710 = vand.u32 %v1708, 31
          %v1711 = vsub.s32 32, %v1710
          %v1712 = vshrl.u32 683565275, %v1711
          %v1713 = vshll.u32 683565275, %v1710
          %v1714 = vshrl.u32 2475754826, %v1711
          %v1715 = vor.u32 %v1713, %v1714
          %v1716 = vshll.u32 2475754826, %v1710
          %v1717 = vshrl.u32 2131351028, %v1711
          %v1718 = vor.u32 %v1716, %v1717
          %v1719 = vshll.u32 2131351028, %v1710
          %v1720 = vshrl.u32 2102212464, %v1711
          %v1721 = vor.u32 %v1719, %v1720
          %v1722 = vshll.u32 2102212464, %v1710
          %v1723 = vshrl.u32 920167782, %v1711
          %v1724 = vor.u32 %v1722, %v1723
          %v1725 = vshll.u32 920167782, %v1710
          %v1726 = vshrl.u32 1326507024, %v1711
          %v1727 = vor.u32 %v1725, %v1726
          %vm1728 = vcmp.lt.s32.totalorder %v1709, 1
          %vm1729 = vcmp.lt.s32.totalorder %v1709, 2
          %vm1730 = vcmp.lt.s32.totalorder %v1709, 3
          %vm1731 = vcmp.lt.s32.totalorder %v1709, 4
          %v1732 = vsel %vm1728, %v1712, %v1715
          %v1733 = vsel %vm1731, %v1721, 2102212464
          %v1734 = vsel %vm1730, %v1718, %v1733
          %v1735 = vsel %vm1729, %v1732, %v1734
          %v1736 = vsel %vm1728, %v1715, %v1718
          %v1737 = vsel %vm1731, %v1724, 920167782
          %v1738 = vsel %vm1730, %v1721, %v1737
          %v1739 = vsel %vm1729, %v1736, %v1738
          %v1740 = vsel %vm1728, %v1718, %v1721
          %v1741 = vsel %vm1731, %v1727, 1326507024
          %v1742 = vsel %vm1730, %v1724, %v1741
          %v1743 = vsel %vm1729, %v1740, %v1742
          %v1744 = vshll.u32 %v1704, 8
          %v1745 = vmul.u32.u64.compose %v1744, %v1743
          %v1746 = vextract.low.u32 %v1745
          %v1747 = vextract.high.u32 %v1745
          %v1748 = vmul.u32.u64.compose %v1744, %v1739
          %v1749 = vextract.low.u32 %v1748
          %v1750 = vextract.high.u32 %v1748
          %v1751 = vmul.u32 %v1744, %v1735
          %v1752 = vadd.s32 %v1747, %v1749
          %vm1753 = vc.u32 %v1747, %v1749
          %v1754 = vadd.s32 %v1750, 1
          %v1755 = vsel %vm1753, %v1754, %v1750
          %v1756 = vadd.s32 %v1751, %v1755
          %v1757 = vadd.s32 %v1756, 536870912
          %v1758 = vshrl.u32 %v1757, 30
          %v1759 = vshll.u32 %v1758, 30
          %v1760 = vsub.s32 %v1756, %v1759
          %vm1761 = vcmp.lt.s32.totalorder %v1760, 0
          %v1762 = vsub.s32 0, %v1760
          %v1763 = vsel %vm1761, %v1762, %v1760
          %v1764 = vclz %v1763
          %v1765 = vsub.s32 %v1764, 2
          %vm1766 = vcmp.gt.s32.totalorder 0, %v1765
          %v1767 = vsel %vm1766, 0, %v1765
          %v1768 = vsub.s32 32, %v1767
          %v1769 = vshll.u32 %v1760, %v1767
          %v1770 = vshrl.u32 %v1752, %v1768
          %v1771 = vor.u32 %v1769, %v1770
          %v1772 = vsub.s32 4294967266, %v1767
          %v1773 = vadd.s32 %v1772, 127
          %v1774 = vshll.u32 %v1773, 23
          %v1775 = vor.u32 4788187, %v1774
          %v1776 = vand.u32 2147483647, %v1775
          %v1778 = vcvt.s32.f32 %v1771
          %v1779 = vmul.f32 %v1778, %v1776
          %v1780 = vxor.u32 %v1779, 2147483648
          %v1781 = vsel %vm1698, %v1780, %v1779
          %v1782 = vsub.s32 4, %v1758
          %v1783 = vsel %vm1698, %v1782, %v1758
          %v1784 = vsel %vm1697, %v1591, %v1781
          %v1785 = vsel %vm1697, 0, %v1783
          %v1786 = vcosq.f32.pop %v1784
          %v1787 = vsinq.f32.pop %v1784
          %vm1788 = vweird.f32 %v1591
          %v1789 = vadd.s32 %v1785, 3
          %v1790 = vand.u32 %v1789, 3
          %vm1791 = vcmp.lt.s32.totalorder %v1790, 2
          %vm1792 = vcmp.eq.s32.totalorder %v1790, 0
          %v1793 = vxor.u32 %v1787, 2147483648
          %v1794 = vsel %vm1792, %v1786, %v1793
          %vm1795 = vcmp.eq.s32.totalorder %v1790, 2
          %v1796 = vxor.u32 %v1786, 2147483648
          %v1797 = vsel %vm1795, %v1796, %v1787
          %v1798 = vsel %vm1791, %v1794, %v1797
          %v1799 = vsel %vm1788, nan, %v1798
          %v1800 = vstv %s1589
          %v1801 = vmul.f32 %v1800, %v1695
          %v1802 = vmul.f32 %v1800, %v1799
          %v1803 = vadd.f32 %v1569, %v1801
          %v1804 = vadd.f32 %v1570, %v1802
          %v1805 = vld [vmem:[%s379 + $0x3] sm:$0x1]
          %v1806 = vld [vmem:[%s379 + $0xb] sm:$0x1]
          %v1807 = vlaneseq
          %v1808 = vshrl.u32 %v1807, 7
          %v1809 = vsub.s32 0, %v1808
          %v1810 = vrot.slane %v1805, %v1809
          %v1811 = vmul.f32 %v440, %v1810
          %v1812 = vmul.f32 %v441, %v1810
          %v1813 = vlaneseq
          %v1814 = vshrl.u32 %v1813, 7
          %v1815 = vsub.s32 0, %v1814
          %v1816 = vrot.slane %v1806, %v1815
          %v1817 = vadd.f32 %v1816, %v1811
          %v1818 = vadd.f32 %v1816, %v1812
          %v1819 = vfloor.f32 %v1817
          %v1820 = vfloor.f32 %v1818
          %v1821 = vsub.f32 %v1817, %v1819
          %v1822 = vsub.f32 %v1818, %v1820
          %s1823 = sld [smem:[#allocation4 + $0x3]]
          %v1824 = vmul.f32 %v1821, 6.2831855
          %v1825 = vmul.f32 %v1822, 6.2831855
          %v1826 = vand.u32 2147483647, %v1824
          %vm1827 = vcmp.le.f32.partialorder %v1826, 0.7853982
          %vm1828 = vcmp.lt.s32.totalorder %v1824, 0
          %v1829 = vand.u32 %v1824, 2139095040
          %v1830 = vshrl.u32 %v1829, 23
          %v1831 = vsub.s32 %v1830, 127
          %v1832 = vand.u32 2147483647, %v1824
          %v1833 = vand.u32 %v1832, 8388607
          %v1834 = vor.u32 %v1833, 8388608
          %v1835 = vsub.s32 0, %v1834
          %v1836 = vadd.s32 %v1831, 1
          %vm1837 = vcmp.gt.s32.totalorder %v1836, 0
          %v1838 = vsel %vm1837, %v1836, 0
          %v1839 = vshrl.u32 %v1838, 5
          %v1840 = vand.u32 %v1838, 31
          %v1841 = vsub.s32 32, %v1840
          %v1842 = vshrl.u32 683565275, %v1841
          %v1843 = vshll.u32 683565275, %v1840
          %v1844 = vshrl.u32 2475754826, %v1841
          %v1845 = vor.u32 %v1843, %v1844
          %v1846 = vshll.u32 2475754826, %v1840
          %v1847 = vshrl.u32 2131351028, %v1841
          %v1848 = vor.u32 %v1846, %v1847
          %v1849 = vshll.u32 2131351028, %v1840
          %v1850 = vshrl.u32 2102212464, %v1841
          %v1851 = vor.u32 %v1849, %v1850
          %v1852 = vshll.u32 2102212464, %v1840
          %v1853 = vshrl.u32 920167782, %v1841
          %v1854 = vor.u32 %v1852, %v1853
          %v1855 = vshll.u32 920167782, %v1840
          %v1856 = vshrl.u32 1326507024, %v1841
          %v1857 = vor.u32 %v1855, %v1856
          %vm1858 = vcmp.lt.s32.totalorder %v1839, 1
          %vm1859 = vcmp.lt.s32.totalorder %v1839, 2
          %vm1860 = vcmp.lt.s32.totalorder %v1839, 3
          %vm1861 = vcmp.lt.s32.totalorder %v1839, 4
          %v1862 = vsel %vm1858, %v1842, %v1845
          %v1863 = vsel %vm1861, %v1851, 2102212464
          %v1864 = vsel %vm1860, %v1848, %v1863
          %v1865 = vsel %vm1859, %v1862, %v1864
          %v1866 = vsel %vm1858, %v1845, %v1848
          %v1867 = vsel %vm1861, %v1854, 920167782
          %v1868 = vsel %vm1860, %v1851, %v1867
          %v1869 = vsel %vm1859, %v1866, %v1868
          %v1870 = vsel %vm1858, %v1848, %v1851
          %v1871 = vsel %vm1861, %v1857, 1326507024
          %v1872 = vsel %vm1860, %v1854, %v1871
          %v1873 = vsel %vm1859, %v1870, %v1872
          %v1874 = vshll.u32 %v1834, 8
          %v1875 = vmul.u32.u64.compose %v1874, %v1873
          %v1876 = vextract.low.u32 %v1875
          %v1877 = vextract.high.u32 %v1875
          %v1878 = vmul.u32.u64.compose %v1874, %v1869
          %v1879 = vextract.low.u32 %v1878
          %v1880 = vextract.high.u32 %v1878
          %v1881 = vmul.u32 %v1874, %v1865
          %v1882 = vadd.s32 %v1877, %v1879
          %vm1883 = vc.u32 %v1877, %v1879
          %v1884 = vadd.s32 %v1880, 1
          %v1885 = vsel %vm1883, %v1884, %v1880
          %v1886 = vadd.s32 %v1881, %v1885
          %v1887 = vadd.s32 %v1886, 536870912
          %v1888 = vshrl.u32 %v1887, 30
          %v1889 = vshll.u32 %v1888, 30
          %v1890 = vsub.s32 %v1886, %v1889
          %vm1891 = vcmp.lt.s32.totalorder %v1890, 0
          %v1892 = vsub.s32 0, %v1890
          %v1893 = vsel %vm1891, %v1892, %v1890
          %v1894 = vclz %v1893
          %v1895 = vsub.s32 %v1894, 2
          %vm1896 = vcmp.gt.s32.totalorder 0, %v1895
          %v1897 = vsel %vm1896, 0, %v1895
          %v1898 = vsub.s32 32, %v1897
          %v1899 = vshll.u32 %v1890, %v1897
          %v1900 = vshrl.u32 %v1882, %v1898
          %v1901 = vor.u32 %v1899, %v1900
          %v1902 = vsub.s32 4294967266, %v1897
          %v1903 = vadd.s32 %v1902, 127
          %v1904 = vshll.u32 %v1903, 23
          %v1905 = vor.u32 4788187, %v1904
          %v1906 = vand.u32 2147483647, %v1905
          %v1908 = vcvt.s32.f32 %v1901
          %v1909 = vmul.f32 %v1908, %v1906
          %v1910 = vxor.u32 %v1909, 2147483648
          %v1911 = vsel %vm1828, %v1910, %v1909
          %v1912 = vsub.s32 4, %v1888
          %v1913 = vsel %vm1828, %v1912, %v1888
          %v1914 = vsel %vm1827, %v1824, %v1911
          %v1915 = vsel %vm1827, 0, %v1913
          %v1916 = vcosq.f32.pop %v1914
          %v1917 = vsinq.f32.pop %v1914
          %vm1918 = vweird.f32 %v1824
          %v1919 = vadd.s32 %v1915, 3
          %v1920 = vand.u32 %v1919, 3
          %vm1921 = vcmp.lt.s32.totalorder %v1920, 2
          %vm1922 = vcmp.eq.s32.totalorder %v1920, 0
          %v1923 = vxor.u32 %v1917, 2147483648
          %v1924 = vsel %vm1922, %v1916, %v1923
          %vm1925 = vcmp.eq.s32.totalorder %v1920, 2
          %v1926 = vxor.u32 %v1916, 2147483648
          %v1927 = vsel %vm1925, %v1926, %v1917
          %v1928 = vsel %vm1921, %v1924, %v1927
          %v1929 = vsel %vm1918, nan, %v1928
          %v1930 = vand.u32 2147483647, %v1825
          %vm1931 = vcmp.le.f32.partialorder %v1930, 0.7853982
          %vm1932 = vcmp.lt.s32.totalorder %v1825, 0
          %v1933 = vand.u32 %v1825, 2139095040
          %v1934 = vshrl.u32 %v1933, 23
          %v1935 = vsub.s32 %v1934, 127
          %v1936 = vand.u32 2147483647, %v1825
          %v1937 = vand.u32 %v1936, 8388607
          %v1938 = vor.u32 %v1937, 8388608
          %v1939 = vsub.s32 0, %v1938
          %v1940 = vadd.s32 %v1935, 1
          %vm1941 = vcmp.gt.s32.totalorder %v1940, 0
          %v1942 = vsel %vm1941, %v1940, 0
          %v1943 = vshrl.u32 %v1942, 5
          %v1944 = vand.u32 %v1942, 31
          %v1945 = vsub.s32 32, %v1944
          %v1946 = vshrl.u32 683565275, %v1945
          %v1947 = vshll.u32 683565275, %v1944
          %v1948 = vshrl.u32 2475754826, %v1945
          %v1949 = vor.u32 %v1947, %v1948
          %v1950 = vshll.u32 2475754826, %v1944
          %v1951 = vshrl.u32 2131351028, %v1945
          %v1952 = vor.u32 %v1950, %v1951
          %v1953 = vshll.u32 2131351028, %v1944
          %v1954 = vshrl.u32 2102212464, %v1945
          %v1955 = vor.u32 %v1953, %v1954
          %v1956 = vshll.u32 2102212464, %v1944
          %v1957 = vshrl.u32 920167782, %v1945
          %v1958 = vor.u32 %v1956, %v1957
          %v1959 = vshll.u32 920167782, %v1944
          %v1960 = vshrl.u32 1326507024, %v1945
          %v1961 = vor.u32 %v1959, %v1960
          %vm1962 = vcmp.lt.s32.totalorder %v1943, 1
          %vm1963 = vcmp.lt.s32.totalorder %v1943, 2
          %vm1964 = vcmp.lt.s32.totalorder %v1943, 3
          %vm1965 = vcmp.lt.s32.totalorder %v1943, 4
          %v1966 = vsel %vm1962, %v1946, %v1949
          %v1967 = vsel %vm1965, %v1955, 2102212464
          %v1968 = vsel %vm1964, %v1952, %v1967
          %v1969 = vsel %vm1963, %v1966, %v1968
          %v1970 = vsel %vm1962, %v1949, %v1952
          %v1971 = vsel %vm1965, %v1958, 920167782
          %v1972 = vsel %vm1964, %v1955, %v1971
          %v1973 = vsel %vm1963, %v1970, %v1972
          %v1974 = vsel %vm1962, %v1952, %v1955
          %v1975 = vsel %vm1965, %v1961, 1326507024
          %v1976 = vsel %vm1964, %v1958, %v1975
          %v1977 = vsel %vm1963, %v1974, %v1976
          %v1978 = vshll.u32 %v1938, 8
          %v1979 = vmul.u32.u64.compose %v1978, %v1977
          %v1980 = vextract.low.u32 %v1979
          %v1981 = vextract.high.u32 %v1979
          %v1982 = vmul.u32.u64.compose %v1978, %v1973
          %v1983 = vextract.low.u32 %v1982
          %v1984 = vextract.high.u32 %v1982
          %v1985 = vmul.u32 %v1978, %v1969
          %v1986 = vadd.s32 %v1981, %v1983
          %vm1987 = vc.u32 %v1981, %v1983
          %v1988 = vadd.s32 %v1984, 1
          %v1989 = vsel %vm1987, %v1988, %v1984
          %v1990 = vadd.s32 %v1985, %v1989
          %v1991 = vadd.s32 %v1990, 536870912
          %v1992 = vshrl.u32 %v1991, 30
          %v1993 = vshll.u32 %v1992, 30
          %v1994 = vsub.s32 %v1990, %v1993
          %vm1995 = vcmp.lt.s32.totalorder %v1994, 0
          %v1996 = vsub.s32 0, %v1994
          %v1997 = vsel %vm1995, %v1996, %v1994
          %v1998 = vclz %v1997
          %v1999 = vsub.s32 %v1998, 2
          %vm2000 = vcmp.gt.s32.totalorder 0, %v1999
          %v2001 = vsel %vm2000, 0, %v1999
          %v2002 = vsub.s32 32, %v2001
          %v2003 = vshll.u32 %v1994, %v2001
          %v2004 = vshrl.u32 %v1986, %v2002
          %v2005 = vor.u32 %v2003, %v2004
          %v2006 = vsub.s32 4294967266, %v2001
          %v2007 = vadd.s32 %v2006, 127
          %v2008 = vshll.u32 %v2007, 23
          %v2009 = vor.u32 4788187, %v2008
          %v2010 = vand.u32 2147483647, %v2009
          %v2012 = vcvt.s32.f32 %v2005
          %v2013 = vmul.f32 %v2012, %v2010
          %v2014 = vxor.u32 %v2013, 2147483648
          %v2015 = vsel %vm1932, %v2014, %v2013
          %v2016 = vsub.s32 4, %v1992
          %v2017 = vsel %vm1932, %v2016, %v1992
          %v2018 = vsel %vm1931, %v1825, %v2015
          %v2019 = vsel %vm1931, 0, %v2017
          %v2020 = vcosq.f32.pop %v2018
          %v2021 = vsinq.f32.pop %v2018
          %vm2022 = vweird.f32 %v1825
          %v2023 = vadd.s32 %v2019, 3
          %v2024 = vand.u32 %v2023, 3
          %vm2025 = vcmp.lt.s32.totalorder %v2024, 2
          %vm2026 = vcmp.eq.s32.totalorder %v2024, 0
          %v2027 = vxor.u32 %v2021, 2147483648
          %v2028 = vsel %vm2026, %v2020, %v2027
          %vm2029 = vcmp.eq.s32.totalorder %v2024, 2
          %v2030 = vxor.u32 %v2020, 2147483648
          %v2031 = vsel %vm2029, %v2030, %v2021
          %v2032 = vsel %vm2025, %v2028, %v2031
          %v2033 = vsel %vm2022, nan, %v2032
          %v2034 = vstv %s1823
          %v2035 = vmul.f32 %v2034, %v1929
          %v2036 = vmul.f32 %v2034, %v2033
          %v2037 = vadd.f32 %v1803, %v2035
          %v2038 = vadd.f32 %v1804, %v2036
          %v2039 = vld [vmem:[%s379 + $0x4] sm:$0x1]
          %v2040 = vld [vmem:[%s379 + $0xc] sm:$0x1]
          %v2041 = vlaneseq
          %v2042 = vshrl.u32 %v2041, 7
          %v2043 = vsub.s32 0, %v2042
          %v2044 = vrot.slane %v2039, %v2043
          %v2045 = vmul.f32 %v440, %v2044
          %v2046 = vmul.f32 %v441, %v2044
          %v2047 = vlaneseq
          %v2048 = vshrl.u32 %v2047, 7
          %v2049 = vsub.s32 0, %v2048
          %v2050 = vrot.slane %v2040, %v2049
          %v2051 = vadd.f32 %v2050, %v2045
          %v2052 = vadd.f32 %v2050, %v2046
          %v2053 = vfloor.f32 %v2051
          %v2054 = vfloor.f32 %v2052
          %v2055 = vsub.f32 %v2051, %v2053
          %v2056 = vsub.f32 %v2052, %v2054
          %s2057 = sld [smem:[#allocation4 + $0x4]]
          %v2058 = vmul.f32 %v2055, 6.2831855
          %v2059 = vmul.f32 %v2056, 6.2831855
          %v2060 = vand.u32 2147483647, %v2058
          %vm2061 = vcmp.le.f32.partialorder %v2060, 0.7853982
          %vm2062 = vcmp.lt.s32.totalorder %v2058, 0
          %v2063 = vand.u32 %v2058, 2139095040
          %v2064 = vshrl.u32 %v2063, 23
          %v2065 = vsub.s32 %v2064, 127
          %v2066 = vand.u32 2147483647, %v2058
          %v2067 = vand.u32 %v2066, 8388607
          %v2068 = vor.u32 %v2067, 8388608
          %v2069 = vsub.s32 0, %v2068
          %v2070 = vadd.s32 %v2065, 1
          %vm2071 = vcmp.gt.s32.totalorder %v2070, 0
          %v2072 = vsel %vm2071, %v2070, 0
          %v2073 = vshrl.u32 %v2072, 5
          %v2074 = vand.u32 %v2072, 31
          %v2075 = vsub.s32 32, %v2074
          %v2076 = vshrl.u32 683565275, %v2075
          %v2077 = vshll.u32 683565275, %v2074
          %v2078 = vshrl.u32 2475754826, %v2075
          %v2079 = vor.u32 %v2077, %v2078
          %v2080 = vshll.u32 2475754826, %v2074
          %v2081 = vshrl.u32 2131351028, %v2075
          %v2082 = vor.u32 %v2080, %v2081
          %v2083 = vshll.u32 2131351028, %v2074
          %v2084 = vshrl.u32 2102212464, %v2075
          %v2085 = vor.u32 %v2083, %v2084
          %v2086 = vshll.u32 2102212464, %v2074
          %v2087 = vshrl.u32 920167782, %v2075
          %v2088 = vor.u32 %v2086, %v2087
          %v2089 = vshll.u32 920167782, %v2074
          %v2090 = vshrl.u32 1326507024, %v2075
          %v2091 = vor.u32 %v2089, %v2090
          %vm2092 = vcmp.lt.s32.totalorder %v2073, 1
          %vm2093 = vcmp.lt.s32.totalorder %v2073, 2
          %vm2094 = vcmp.lt.s32.totalorder %v2073, 3
          %vm2095 = vcmp.lt.s32.totalorder %v2073, 4
          %v2096 = vsel %vm2092, %v2076, %v2079
          %v2097 = vsel %vm2095, %v2085, 2102212464
          %v2098 = vsel %vm2094, %v2082, %v2097
          %v2099 = vsel %vm2093, %v2096, %v2098
          %v2100 = vsel %vm2092, %v2079, %v2082
          %v2101 = vsel %vm2095, %v2088, 920167782
          %v2102 = vsel %vm2094, %v2085, %v2101
          %v2103 = vsel %vm2093, %v2100, %v2102
          %v2104 = vsel %vm2092, %v2082, %v2085
          %v2105 = vsel %vm2095, %v2091, 1326507024
          %v2106 = vsel %vm2094, %v2088, %v2105
          %v2107 = vsel %vm2093, %v2104, %v2106
          %v2108 = vshll.u32 %v2068, 8
          %v2109 = vmul.u32.u64.compose %v2108, %v2107
          %v2110 = vextract.low.u32 %v2109
          %v2111 = vextract.high.u32 %v2109
          %v2112 = vmul.u32.u64.compose %v2108, %v2103
          %v2113 = vextract.low.u32 %v2112
          %v2114 = vextract.high.u32 %v2112
          %v2115 = vmul.u32 %v2108, %v2099
          %v2116 = vadd.s32 %v2111, %v2113
          %vm2117 = vc.u32 %v2111, %v2113
          %v2118 = vadd.s32 %v2114, 1
          %v2119 = vsel %vm2117, %v2118, %v2114
          %v2120 = vadd.s32 %v2115, %v2119
          %v2121 = vadd.s32 %v2120, 536870912
          %v2122 = vshrl.u32 %v2121, 30
          %v2123 = vshll.u32 %v2122, 30
          %v2124 = vsub.s32 %v2120, %v2123
          %vm2125 = vcmp.lt.s32.totalorder %v2124, 0
          %v2126 = vsub.s32 0, %v2124
          %v2127 = vsel %vm2125, %v2126, %v2124
          %v2128 = vclz %v2127
          %v2129 = vsub.s32 %v2128, 2
          %vm2130 = vcmp.gt.s32.totalorder 0, %v2129
          %v2131 = vsel %vm2130, 0, %v2129
          %v2132 = vsub.s32 32, %v2131
          %v2133 = vshll.u32 %v2124, %v2131
          %v2134 = vshrl.u32 %v2116, %v2132
          %v2135 = vor.u32 %v2133, %v2134
          %v2136 = vsub.s32 4294967266, %v2131
          %v2137 = vadd.s32 %v2136, 127
          %v2138 = vshll.u32 %v2137, 23
          %v2139 = vor.u32 4788187, %v2138
          %v2140 = vand.u32 2147483647, %v2139
          %v2142 = vcvt.s32.f32 %v2135
          %v2143 = vmul.f32 %v2142, %v2140
          %v2144 = vxor.u32 %v2143, 2147483648
          %v2145 = vsel %vm2062, %v2144, %v2143
          %v2146 = vsub.s32 4, %v2122
          %v2147 = vsel %vm2062, %v2146, %v2122
          %v2148 = vsel %vm2061, %v2058, %v2145
          %v2149 = vsel %vm2061, 0, %v2147
          %v2150 = vcosq.f32.pop %v2148
          %v2151 = vsinq.f32.pop %v2148
          %vm2152 = vweird.f32 %v2058
          %v2153 = vadd.s32 %v2149, 3
          %v2154 = vand.u32 %v2153, 3
          %vm2155 = vcmp.lt.s32.totalorder %v2154, 2
          %vm2156 = vcmp.eq.s32.totalorder %v2154, 0
          %v2157 = vxor.u32 %v2151, 2147483648
          %v2158 = vsel %vm2156, %v2150, %v2157
          %vm2159 = vcmp.eq.s32.totalorder %v2154, 2
          %v2160 = vxor.u32 %v2150, 2147483648
          %v2161 = vsel %vm2159, %v2160, %v2151
          %v2162 = vsel %vm2155, %v2158, %v2161
          %v2163 = vsel %vm2152, nan, %v2162
          %v2164 = vand.u32 2147483647, %v2059
          %vm2165 = vcmp.le.f32.partialorder %v2164, 0.7853982
          %vm2166 = vcmp.lt.s32.totalorder %v2059, 0
          %v2167 = vand.u32 %v2059, 2139095040
          %v2168 = vshrl.u32 %v2167, 23
          %v2169 = vsub.s32 %v2168, 127
          %v2170 = vand.u32 2147483647, %v2059
          %v2171 = vand.u32 %v2170, 8388607
          %v2172 = vor.u32 %v2171, 8388608
          %v2173 = vsub.s32 0, %v2172
          %v2174 = vadd.s32 %v2169, 1
          %vm2175 = vcmp.gt.s32.totalorder %v2174, 0
          %v2176 = vsel %vm2175, %v2174, 0
          %v2177 = vshrl.u32 %v2176, 5
          %v2178 = vand.u32 %v2176, 31
          %v2179 = vsub.s32 32, %v2178
          %v2180 = vshrl.u32 683565275, %v2179
          %v2181 = vshll.u32 683565275, %v2178
          %v2182 = vshrl.u32 2475754826, %v2179
          %v2183 = vor.u32 %v2181, %v2182
          %v2184 = vshll.u32 2475754826, %v2178
          %v2185 = vshrl.u32 2131351028, %v2179
          %v2186 = vor.u32 %v2184, %v2185
          %v2187 = vshll.u32 2131351028, %v2178
          %v2188 = vshrl.u32 2102212464, %v2179
          %v2189 = vor.u32 %v2187, %v2188
          %v2190 = vshll.u32 2102212464, %v2178
          %v2191 = vshrl.u32 920167782, %v2179
          %v2192 = vor.u32 %v2190, %v2191
          %v2193 = vshll.u32 920167782, %v2178
          %v2194 = vshrl.u32 1326507024, %v2179
          %v2195 = vor.u32 %v2193, %v2194
          %vm2196 = vcmp.lt.s32.totalorder %v2177, 1
          %vm2197 = vcmp.lt.s32.totalorder %v2177, 2
          %vm2198 = vcmp.lt.s32.totalorder %v2177, 3
          %vm2199 = vcmp.lt.s32.totalorder %v2177, 4
          %v2200 = vsel %vm2196, %v2180, %v2183
          %v2201 = vsel %vm2199, %v2189, 2102212464
          %v2202 = vsel %vm2198, %v2186, %v2201
          %v2203 = vsel %vm2197, %v2200, %v2202
          %v2204 = vsel %vm2196, %v2183, %v2186
          %v2205 = vsel %vm2199, %v2192, 920167782
          %v2206 = vsel %vm2198, %v2189, %v2205
          %v2207 = vsel %vm2197, %v2204, %v2206
          %v2208 = vsel %vm2196, %v2186, %v2189
          %v2209 = vsel %vm2199, %v2195, 1326507024
          %v2210 = vsel %vm2198, %v2192, %v2209
          %v2211 = vsel %vm2197, %v2208, %v2210
          %v2212 = vshll.u32 %v2172, 8
          %v2213 = vmul.u32.u64.compose %v2212, %v2211
          %v2214 = vextract.low.u32 %v2213
          %v2215 = vextract.high.u32 %v2213
          %v2216 = vmul.u32.u64.compose %v2212, %v2207
          %v2217 = vextract.low.u32 %v2216
          %v2218 = vextract.high.u32 %v2216
          %v2219 = vmul.u32 %v2212, %v2203
          %v2220 = vadd.s32 %v2215, %v2217
          %vm2221 = vc.u32 %v2215, %v2217
          %v2222 = vadd.s32 %v2218, 1
          %v2223 = vsel %vm2221, %v2222, %v2218
          %v2224 = vadd.s32 %v2219, %v2223
          %v2225 = vadd.s32 %v2224, 536870912
          %v2226 = vshrl.u32 %v2225, 30
          %v2227 = vshll.u32 %v2226, 30
          %v2228 = vsub.s32 %v2224, %v2227
          %vm2229 = vcmp.lt.s32.totalorder %v2228, 0
          %v2230 = vsub.s32 0, %v2228
          %v2231 = vsel %vm2229, %v2230, %v2228
          %v2232 = vclz %v2231
          %v2233 = vsub.s32 %v2232, 2
          %vm2234 = vcmp.gt.s32.totalorder 0, %v2233
          %v2235 = vsel %vm2234, 0, %v2233
          %v2236 = vsub.s32 32, %v2235
          %v2237 = vshll.u32 %v2228, %v2235
          %v2238 = vshrl.u32 %v2220, %v2236
          %v2239 = vor.u32 %v2237, %v2238
          %v2240 = vsub.s32 4294967266, %v2235
          %v2241 = vadd.s32 %v2240, 127
          %v2242 = vshll.u32 %v2241, 23
          %v2243 = vor.u32 4788187, %v2242
          %v2244 = vand.u32 2147483647, %v2243
          %v2246 = vcvt.s32.f32 %v2239
          %v2247 = vmul.f32 %v2246, %v2244
          %v2248 = vxor.u32 %v2247, 2147483648
          %v2249 = vsel %vm2166, %v2248, %v2247
          %v2250 = vsub.s32 4, %v2226
          %v2251 = vsel %vm2166, %v2250, %v2226
          %v2252 = vsel %vm2165, %v2059, %v2249
          %v2253 = vsel %vm2165, 0, %v2251
          %v2254 = vcosq.f32.pop %v2252
          %v2255 = vsinq.f32.pop %v2252
          %vm2256 = vweird.f32 %v2059
          %v2257 = vadd.s32 %v2253, 3
          %v2258 = vand.u32 %v2257, 3
          %vm2259 = vcmp.lt.s32.totalorder %v2258, 2
          %vm2260 = vcmp.eq.s32.totalorder %v2258, 0
          %v2261 = vxor.u32 %v2255, 2147483648
          %v2262 = vsel %vm2260, %v2254, %v2261
          %vm2263 = vcmp.eq.s32.totalorder %v2258, 2
          %v2264 = vxor.u32 %v2254, 2147483648
          %v2265 = vsel %vm2263, %v2264, %v2255
          %v2266 = vsel %vm2259, %v2262, %v2265
          %v2267 = vsel %vm2256, nan, %v2266
          %v2268 = vstv %s2057
          %v2269 = vmul.f32 %v2268, %v2163
          %v2270 = vmul.f32 %v2268, %v2267
          %v2271 = vadd.f32 %v2037, %v2269
          %v2272 = vadd.f32 %v2038, %v2270
          %v2273 = vld [vmem:[%s379 + $0x5] sm:$0x1]
          %v2274 = vld [vmem:[%s379 + $0xd] sm:$0x1]
          %v2275 = vlaneseq
          %v2276 = vshrl.u32 %v2275, 7
          %v2277 = vsub.s32 0, %v2276
          %v2278 = vrot.slane %v2273, %v2277
          %v2279 = vmul.f32 %v440, %v2278
          %v2280 = vmul.f32 %v441, %v2278
          %v2281 = vlaneseq
          %v2282 = vshrl.u32 %v2281, 7
          %v2283 = vsub.s32 0, %v2282
          %v2284 = vrot.slane %v2274, %v2283
          %v2285 = vadd.f32 %v2284, %v2279
          %v2286 = vadd.f32 %v2284, %v2280
          %v2287 = vfloor.f32 %v2285
          %v2288 = vfloor.f32 %v2286
          %v2289 = vsub.f32 %v2285, %v2287
          %v2290 = vsub.f32 %v2286, %v2288
          %s2291 = sld [smem:[#allocation4 + $0x5]]
          %v2292 = vmul.f32 %v2289, 6.2831855
          %v2293 = vmul.f32 %v2290, 6.2831855
          %v2294 = vand.u32 2147483647, %v2292
          %vm2295 = vcmp.le.f32.partialorder %v2294, 0.7853982
          %vm2296 = vcmp.lt.s32.totalorder %v2292, 0
          %v2297 = vand.u32 %v2292, 2139095040
          %v2298 = vshrl.u32 %v2297, 23
          %v2299 = vsub.s32 %v2298, 127
          %v2300 = vand.u32 2147483647, %v2292
          %v2301 = vand.u32 %v2300, 8388607
          %v2302 = vor.u32 %v2301, 8388608
          %v2303 = vsub.s32 0, %v2302
          %v2304 = vadd.s32 %v2299, 1
          %vm2305 = vcmp.gt.s32.totalorder %v2304, 0
          %v2306 = vsel %vm2305, %v2304, 0
          %v2307 = vshrl.u32 %v2306, 5
          %v2308 = vand.u32 %v2306, 31
          %v2309 = vsub.s32 32, %v2308
          %v2310 = vshrl.u32 683565275, %v2309
          %v2311 = vshll.u32 683565275, %v2308
          %v2312 = vshrl.u32 2475754826, %v2309
          %v2313 = vor.u32 %v2311, %v2312
          %v2314 = vshll.u32 2475754826, %v2308
          %v2315 = vshrl.u32 2131351028, %v2309
          %v2316 = vor.u32 %v2314, %v2315
          %v2317 = vshll.u32 2131351028, %v2308
          %v2318 = vshrl.u32 2102212464, %v2309
          %v2319 = vor.u32 %v2317, %v2318
          %v2320 = vshll.u32 2102212464, %v2308
          %v2321 = vshrl.u32 920167782, %v2309
          %v2322 = vor.u32 %v2320, %v2321
          %v2323 = vshll.u32 920167782, %v2308
          %v2324 = vshrl.u32 1326507024, %v2309
          %v2325 = vor.u32 %v2323, %v2324
          %vm2326 = vcmp.lt.s32.totalorder %v2307, 1
          %vm2327 = vcmp.lt.s32.totalorder %v2307, 2
          %vm2328 = vcmp.lt.s32.totalorder %v2307, 3
          %vm2329 = vcmp.lt.s32.totalorder %v2307, 4
          %v2330 = vsel %vm2326, %v2310, %v2313
          %v2331 = vsel %vm2329, %v2319, 2102212464
          %v2332 = vsel %vm2328, %v2316, %v2331
          %v2333 = vsel %vm2327, %v2330, %v2332
          %v2334 = vsel %vm2326, %v2313, %v2316
          %v2335 = vsel %vm2329, %v2322, 920167782
          %v2336 = vsel %vm2328, %v2319, %v2335
          %v2337 = vsel %vm2327, %v2334, %v2336
          %v2338 = vsel %vm2326, %v2316, %v2319
          %v2339 = vsel %vm2329, %v2325, 1326507024
          %v2340 = vsel %vm2328, %v2322, %v2339
          %v2341 = vsel %vm2327, %v2338, %v2340
          %v2342 = vshll.u32 %v2302, 8
          %v2343 = vmul.u32.u64.compose %v2342, %v2341
          %v2344 = vextract.low.u32 %v2343
          %v2345 = vextract.high.u32 %v2343
          %v2346 = vmul.u32.u64.compose %v2342, %v2337
          %v2347 = vextract.low.u32 %v2346
          %v2348 = vextract.high.u32 %v2346
          %v2349 = vmul.u32 %v2342, %v2333
          %v2350 = vadd.s32 %v2345, %v2347
          %vm2351 = vc.u32 %v2345, %v2347
          %v2352 = vadd.s32 %v2348, 1
          %v2353 = vsel %vm2351, %v2352, %v2348
          %v2354 = vadd.s32 %v2349, %v2353
          %v2355 = vadd.s32 %v2354, 536870912
          %v2356 = vshrl.u32 %v2355, 30
          %v2357 = vshll.u32 %v2356, 30
          %v2358 = vsub.s32 %v2354, %v2357
          %vm2359 = vcmp.lt.s32.totalorder %v2358, 0
          %v2360 = vsub.s32 0, %v2358
          %v2361 = vsel %vm2359, %v2360, %v2358
          %v2362 = vclz %v2361
          %v2363 = vsub.s32 %v2362, 2
          %vm2364 = vcmp.gt.s32.totalorder 0, %v2363
          %v2365 = vsel %vm2364, 0, %v2363
          %v2366 = vsub.s32 32, %v2365
          %v2367 = vshll.u32 %v2358, %v2365
          %v2368 = vshrl.u32 %v2350, %v2366
          %v2369 = vor.u32 %v2367, %v2368
          %v2370 = vsub.s32 4294967266, %v2365
          %v2371 = vadd.s32 %v2370, 127
          %v2372 = vshll.u32 %v2371, 23
          %v2373 = vor.u32 4788187, %v2372
          %v2374 = vand.u32 2147483647, %v2373
          %v2376 = vcvt.s32.f32 %v2369
          %v2377 = vmul.f32 %v2376, %v2374
          %v2378 = vxor.u32 %v2377, 2147483648
          %v2379 = vsel %vm2296, %v2378, %v2377
          %v2380 = vsub.s32 4, %v2356
          %v2381 = vsel %vm2296, %v2380, %v2356
          %v2382 = vsel %vm2295, %v2292, %v2379
          %v2383 = vsel %vm2295, 0, %v2381
          %v2384 = vcosq.f32.pop %v2382
          %v2385 = vsinq.f32.pop %v2382
          %vm2386 = vweird.f32 %v2292
          %v2387 = vadd.s32 %v2383, 3
          %v2388 = vand.u32 %v2387, 3
          %vm2389 = vcmp.lt.s32.totalorder %v2388, 2
          %vm2390 = vcmp.eq.s32.totalorder %v2388, 0
          %v2391 = vxor.u32 %v2385, 2147483648
          %v2392 = vsel %vm2390, %v2384, %v2391
          %vm2393 = vcmp.eq.s32.totalorder %v2388, 2
          %v2394 = vxor.u32 %v2384, 2147483648
          %v2395 = vsel %vm2393, %v2394, %v2385
          %v2396 = vsel %vm2389, %v2392, %v2395
          %v2397 = vsel %vm2386, nan, %v2396
          %v2398 = vand.u32 2147483647, %v2293
          %vm2399 = vcmp.le.f32.partialorder %v2398, 0.7853982
          %vm2400 = vcmp.lt.s32.totalorder %v2293, 0
          %v2401 = vand.u32 %v2293, 2139095040
          %v2402 = vshrl.u32 %v2401, 23
          %v2403 = vsub.s32 %v2402, 127
          %v2404 = vand.u32 2147483647, %v2293
          %v2405 = vand.u32 %v2404, 8388607
          %v2406 = vor.u32 %v2405, 8388608
          %v2407 = vsub.s32 0, %v2406
          %v2408 = vadd.s32 %v2403, 1
          %vm2409 = vcmp.gt.s32.totalorder %v2408, 0
          %v2410 = vsel %vm2409, %v2408, 0
          %v2411 = vshrl.u32 %v2410, 5
          %v2412 = vand.u32 %v2410, 31
          %v2413 = vsub.s32 32, %v2412
          %v2414 = vshrl.u32 683565275, %v2413
          %v2415 = vshll.u32 683565275, %v2412
          %v2416 = vshrl.u32 2475754826, %v2413
          %v2417 = vor.u32 %v2415, %v2416
          %v2418 = vshll.u32 2475754826, %v2412
          %v2419 = vshrl.u32 2131351028, %v2413
          %v2420 = vor.u32 %v2418, %v2419
          %v2421 = vshll.u32 2131351028, %v2412
          %v2422 = vshrl.u32 2102212464, %v2413
          %v2423 = vor.u32 %v2421, %v2422
          %v2424 = vshll.u32 2102212464, %v2412
          %v2425 = vshrl.u32 920167782, %v2413
          %v2426 = vor.u32 %v2424, %v2425
          %v2427 = vshll.u32 920167782, %v2412
          %v2428 = vshrl.u32 1326507024, %v2413
          %v2429 = vor.u32 %v2427, %v2428
          %vm2430 = vcmp.lt.s32.totalorder %v2411, 1
          %vm2431 = vcmp.lt.s32.totalorder %v2411, 2
          %vm2432 = vcmp.lt.s32.totalorder %v2411, 3
          %vm2433 = vcmp.lt.s32.totalorder %v2411, 4
          %v2434 = vsel %vm2430, %v2414, %v2417
          %v2435 = vsel %vm2433, %v2423, 2102212464
          %v2436 = vsel %vm2432, %v2420, %v2435
          %v2437 = vsel %vm2431, %v2434, %v2436
          %v2438 = vsel %vm2430, %v2417, %v2420
          %v2439 = vsel %vm2433, %v2426, 920167782
          %v2440 = vsel %vm2432, %v2423, %v2439
          %v2441 = vsel %vm2431, %v2438, %v2440
          %v2442 = vsel %vm2430, %v2420, %v2423
          %v2443 = vsel %vm2433, %v2429, 1326507024
          %v2444 = vsel %vm2432, %v2426, %v2443
          %v2445 = vsel %vm2431, %v2442, %v2444
          %v2446 = vshll.u32 %v2406, 8
          %v2447 = vmul.u32.u64.compose %v2446, %v2445
          %v2448 = vextract.low.u32 %v2447
          %v2449 = vextract.high.u32 %v2447
          %v2450 = vmul.u32.u64.compose %v2446, %v2441
          %v2451 = vextract.low.u32 %v2450
          %v2452 = vextract.high.u32 %v2450
          %v2453 = vmul.u32 %v2446, %v2437
          %v2454 = vadd.s32 %v2449, %v2451
          %vm2455 = vc.u32 %v2449, %v2451
          %v2456 = vadd.s32 %v2452, 1
          %v2457 = vsel %vm2455, %v2456, %v2452
          %v2458 = vadd.s32 %v2453, %v2457
          %v2459 = vadd.s32 %v2458, 536870912
          %v2460 = vshrl.u32 %v2459, 30
          %v2461 = vshll.u32 %v2460, 30
          %v2462 = vsub.s32 %v2458, %v2461
          %vm2463 = vcmp.lt.s32.totalorder %v2462, 0
          %v2464 = vsub.s32 0, %v2462
          %v2465 = vsel %vm2463, %v2464, %v2462
          %v2466 = vclz %v2465
          %v2467 = vsub.s32 %v2466, 2
          %vm2468 = vcmp.gt.s32.totalorder 0, %v2467
          %v2469 = vsel %vm2468, 0, %v2467
          %v2470 = vsub.s32 32, %v2469
          %v2471 = vshll.u32 %v2462, %v2469
          %v2472 = vshrl.u32 %v2454, %v2470
          %v2473 = vor.u32 %v2471, %v2472
          %v2474 = vsub.s32 4294967266, %v2469
          %v2475 = vadd.s32 %v2474, 127
          %v2476 = vshll.u32 %v2475, 23
          %v2477 = vor.u32 4788187, %v2476
          %v2478 = vand.u32 2147483647, %v2477
          %v2480 = vcvt.s32.f32 %v2473
          %v2481 = vmul.f32 %v2480, %v2478
          %v2482 = vxor.u32 %v2481, 2147483648
          %v2483 = vsel %vm2400, %v2482, %v2481
          %v2484 = vsub.s32 4, %v2460
          %v2485 = vsel %vm2400, %v2484, %v2460
          %v2486 = vsel %vm2399, %v2293, %v2483
          %v2487 = vsel %vm2399, 0, %v2485
          %v2488 = vcosq.f32.pop %v2486
          %v2489 = vsinq.f32.pop %v2486
          %vm2490 = vweird.f32 %v2293
          %v2491 = vadd.s32 %v2487, 3
          %v2492 = vand.u32 %v2491, 3
          %vm2493 = vcmp.lt.s32.totalorder %v2492, 2
          %vm2494 = vcmp.eq.s32.totalorder %v2492, 0
          %v2495 = vxor.u32 %v2489, 2147483648
          %v2496 = vsel %vm2494, %v2488, %v2495
          %vm2497 = vcmp.eq.s32.totalorder %v2492, 2
          %v2498 = vxor.u32 %v2488, 2147483648
          %v2499 = vsel %vm2497, %v2498, %v2489
          %v2500 = vsel %vm2493, %v2496, %v2499
          %v2501 = vsel %vm2490, nan, %v2500
          %v2502 = vstv %s2291
          %v2503 = vmul.f32 %v2502, %v2397
          %v2504 = vmul.f32 %v2502, %v2501
          %v2505 = vadd.f32 %v2271, %v2503
          %v2506 = vadd.f32 %v2272, %v2504
          %v2507 = vld [vmem:[%s379 + $0x6] sm:$0x1]
          %v2508 = vld [vmem:[%s379 + $0xe] sm:$0x1]
          %v2509 = vlaneseq
          %v2510 = vshrl.u32 %v2509, 7
          %v2511 = vsub.s32 0, %v2510
          %v2512 = vrot.slane %v2507, %v2511
          %v2513 = vmul.f32 %v440, %v2512
          %v2514 = vmul.f32 %v441, %v2512
          %v2515 = vlaneseq
          %v2516 = vshrl.u32 %v2515, 7
          %v2517 = vsub.s32 0, %v2516
          %v2518 = vrot.slane %v2508, %v2517
          %v2519 = vadd.f32 %v2518, %v2513
          %v2520 = vadd.f32 %v2518, %v2514
          %v2521 = vfloor.f32 %v2519
          %v2522 = vfloor.f32 %v2520
          %v2523 = vsub.f32 %v2519, %v2521
          %v2524 = vsub.f32 %v2520, %v2522
          %s2525 = sld [smem:[#allocation4 + $0x6]]
          %v2526 = vmul.f32 %v2523, 6.2831855
          %v2527 = vmul.f32 %v2524, 6.2831855
          %v2528 = vand.u32 2147483647, %v2526
          %vm2529 = vcmp.le.f32.partialorder %v2528, 0.7853982
          %vm2530 = vcmp.lt.s32.totalorder %v2526, 0
          %v2531 = vand.u32 %v2526, 2139095040
          %v2532 = vshrl.u32 %v2531, 23
          %v2533 = vsub.s32 %v2532, 127
          %v2534 = vand.u32 2147483647, %v2526
          %v2535 = vand.u32 %v2534, 8388607
          %v2536 = vor.u32 %v2535, 8388608
          %v2537 = vsub.s32 0, %v2536
          %v2538 = vadd.s32 %v2533, 1
          %vm2539 = vcmp.gt.s32.totalorder %v2538, 0
          %v2540 = vsel %vm2539, %v2538, 0
          %v2541 = vshrl.u32 %v2540, 5
          %v2542 = vand.u32 %v2540, 31
          %v2543 = vsub.s32 32, %v2542
          %v2544 = vshrl.u32 683565275, %v2543
          %v2545 = vshll.u32 683565275, %v2542
          %v2546 = vshrl.u32 2475754826, %v2543
          %v2547 = vor.u32 %v2545, %v2546
          %v2548 = vshll.u32 2475754826, %v2542
          %v2549 = vshrl.u32 2131351028, %v2543
          %v2550 = vor.u32 %v2548, %v2549
          %v2551 = vshll.u32 2131351028, %v2542
          %v2552 = vshrl.u32 2102212464, %v2543
          %v2553 = vor.u32 %v2551, %v2552
          %v2554 = vshll.u32 2102212464, %v2542
          %v2555 = vshrl.u32 920167782, %v2543
          %v2556 = vor.u32 %v2554, %v2555
          %v2557 = vshll.u32 920167782, %v2542
          %v2558 = vshrl.u32 1326507024, %v2543
          %v2559 = vor.u32 %v2557, %v2558
          %vm2560 = vcmp.lt.s32.totalorder %v2541, 1
          %vm2561 = vcmp.lt.s32.totalorder %v2541, 2
          %vm2562 = vcmp.lt.s32.totalorder %v2541, 3
          %vm2563 = vcmp.lt.s32.totalorder %v2541, 4
          %v2564 = vsel %vm2560, %v2544, %v2547
          %v2565 = vsel %vm2563, %v2553, 2102212464
          %v2566 = vsel %vm2562, %v2550, %v2565
          %v2567 = vsel %vm2561, %v2564, %v2566
          %v2568 = vsel %vm2560, %v2547, %v2550
          %v2569 = vsel %vm2563, %v2556, 920167782
          %v2570 = vsel %vm2562, %v2553, %v2569
          %v2571 = vsel %vm2561, %v2568, %v2570
          %v2572 = vsel %vm2560, %v2550, %v2553
          %v2573 = vsel %vm2563, %v2559, 1326507024
          %v2574 = vsel %vm2562, %v2556, %v2573
          %v2575 = vsel %vm2561, %v2572, %v2574
          %v2576 = vshll.u32 %v2536, 8
          %v2577 = vmul.u32.u64.compose %v2576, %v2575
          %v2578 = vextract.low.u32 %v2577
          %v2579 = vextract.high.u32 %v2577
          %v2580 = vmul.u32.u64.compose %v2576, %v2571
          %v2581 = vextract.low.u32 %v2580
          %v2582 = vextract.high.u32 %v2580
          %v2583 = vmul.u32 %v2576, %v2567
          %v2584 = vadd.s32 %v2579, %v2581
          %vm2585 = vc.u32 %v2579, %v2581
          %v2586 = vadd.s32 %v2582, 1
          %v2587 = vsel %vm2585, %v2586, %v2582
          %v2588 = vadd.s32 %v2583, %v2587
          %v2589 = vadd.s32 %v2588, 536870912
          %v2590 = vshrl.u32 %v2589, 30
          %v2591 = vshll.u32 %v2590, 30
          %v2592 = vsub.s32 %v2588, %v2591
          %vm2593 = vcmp.lt.s32.totalorder %v2592, 0
          %v2594 = vsub.s32 0, %v2592
          %v2595 = vsel %vm2593, %v2594, %v2592
          %v2596 = vclz %v2595
          %v2597 = vsub.s32 %v2596, 2
          %vm2598 = vcmp.gt.s32.totalorder 0, %v2597
          %v2599 = vsel %vm2598, 0, %v2597
          %v2600 = vsub.s32 32, %v2599
          %v2601 = vshll.u32 %v2592, %v2599
          %v2602 = vshrl.u32 %v2584, %v2600
          %v2603 = vor.u32 %v2601, %v2602
          %v2604 = vsub.s32 4294967266, %v2599
          %v2605 = vadd.s32 %v2604, 127
          %v2606 = vshll.u32 %v2605, 23
          %v2607 = vor.u32 4788187, %v2606
          %v2608 = vand.u32 2147483647, %v2607
          %v2610 = vcvt.s32.f32 %v2603
          %v2611 = vmul.f32 %v2610, %v2608
          %v2612 = vxor.u32 %v2611, 2147483648
          %v2613 = vsel %vm2530, %v2612, %v2611
          %v2614 = vsub.s32 4, %v2590
          %v2615 = vsel %vm2530, %v2614, %v2590
          %v2616 = vsel %vm2529, %v2526, %v2613
          %v2617 = vsel %vm2529, 0, %v2615
          %v2618 = vcosq.f32.pop %v2616
          %v2619 = vsinq.f32.pop %v2616
          %vm2620 = vweird.f32 %v2526
          %v2621 = vadd.s32 %v2617, 3
          %v2622 = vand.u32 %v2621, 3
          %vm2623 = vcmp.lt.s32.totalorder %v2622, 2
          %vm2624 = vcmp.eq.s32.totalorder %v2622, 0
          %v2625 = vxor.u32 %v2619, 2147483648
          %v2626 = vsel %vm2624, %v2618, %v2625
          %vm2627 = vcmp.eq.s32.totalorder %v2622, 2
          %v2628 = vxor.u32 %v2618, 2147483648
          %v2629 = vsel %vm2627, %v2628, %v2619
          %v2630 = vsel %vm2623, %v2626, %v2629
          %v2631 = vsel %vm2620, nan, %v2630
          %v2632 = vand.u32 2147483647, %v2527
          %vm2633 = vcmp.le.f32.partialorder %v2632, 0.7853982
          %vm2634 = vcmp.lt.s32.totalorder %v2527, 0
          %v2635 = vand.u32 %v2527, 2139095040
          %v2636 = vshrl.u32 %v2635, 23
          %v2637 = vsub.s32 %v2636, 127
          %v2638 = vand.u32 2147483647, %v2527
          %v2639 = vand.u32 %v2638, 8388607
          %v2640 = vor.u32 %v2639, 8388608
          %v2641 = vsub.s32 0, %v2640
          %v2642 = vadd.s32 %v2637, 1
          %vm2643 = vcmp.gt.s32.totalorder %v2642, 0
          %v2644 = vsel %vm2643, %v2642, 0
          %v2645 = vshrl.u32 %v2644, 5
          %v2646 = vand.u32 %v2644, 31
          %v2647 = vsub.s32 32, %v2646
          %v2648 = vshrl.u32 683565275, %v2647
          %v2649 = vshll.u32 683565275, %v2646
          %v2650 = vshrl.u32 2475754826, %v2647
          %v2651 = vor.u32 %v2649, %v2650
          %v2652 = vshll.u32 2475754826, %v2646
          %v2653 = vshrl.u32 2131351028, %v2647
          %v2654 = vor.u32 %v2652, %v2653
          %v2655 = vshll.u32 2131351028, %v2646
          %v2656 = vshrl.u32 2102212464, %v2647
          %v2657 = vor.u32 %v2655, %v2656
          %v2658 = vshll.u32 2102212464, %v2646
          %v2659 = vshrl.u32 920167782, %v2647
          %v2660 = vor.u32 %v2658, %v2659
          %v2661 = vshll.u32 920167782, %v2646
          %v2662 = vshrl.u32 1326507024, %v2647
          %v2663 = vor.u32 %v2661, %v2662
          %vm2664 = vcmp.lt.s32.totalorder %v2645, 1
          %vm2665 = vcmp.lt.s32.totalorder %v2645, 2
          %vm2666 = vcmp.lt.s32.totalorder %v2645, 3
          %vm2667 = vcmp.lt.s32.totalorder %v2645, 4
          %v2668 = vsel %vm2664, %v2648, %v2651
          %v2669 = vsel %vm2667, %v2657, 2102212464
          %v2670 = vsel %vm2666, %v2654, %v2669
          %v2671 = vsel %vm2665, %v2668, %v2670
          %v2672 = vsel %vm2664, %v2651, %v2654
          %v2673 = vsel %vm2667, %v2660, 920167782
          %v2674 = vsel %vm2666, %v2657, %v2673
          %v2675 = vsel %vm2665, %v2672, %v2674
          %v2676 = vsel %vm2664, %v2654, %v2657
          %v2677 = vsel %vm2667, %v2663, 1326507024
          %v2678 = vsel %vm2666, %v2660, %v2677
          %v2679 = vsel %vm2665, %v2676, %v2678
          %v2680 = vshll.u32 %v2640, 8
          %v2681 = vmul.u32.u64.compose %v2680, %v2679
          %v2682 = vextract.low.u32 %v2681
          %v2683 = vextract.high.u32 %v2681
          %v2684 = vmul.u32.u64.compose %v2680, %v2675
          %v2685 = vextract.low.u32 %v2684
          %v2686 = vextract.high.u32 %v2684
          %v2687 = vmul.u32 %v2680, %v2671
          %v2688 = vadd.s32 %v2683, %v2685
          %vm2689 = vc.u32 %v2683, %v2685
          %v2690 = vadd.s32 %v2686, 1
          %v2691 = vsel %vm2689, %v2690, %v2686
          %v2692 = vadd.s32 %v2687, %v2691
          %v2693 = vadd.s32 %v2692, 536870912
          %v2694 = vshrl.u32 %v2693, 30
          %v2695 = vshll.u32 %v2694, 30
          %v2696 = vsub.s32 %v2692, %v2695
          %vm2697 = vcmp.lt.s32.totalorder %v2696, 0
          %v2698 = vsub.s32 0, %v2696
          %v2699 = vsel %vm2697, %v2698, %v2696
          %v2700 = vclz %v2699
          %v2701 = vsub.s32 %v2700, 2
          %vm2702 = vcmp.gt.s32.totalorder 0, %v2701
          %v2703 = vsel %vm2702, 0, %v2701
          %v2704 = vsub.s32 32, %v2703
          %v2705 = vshll.u32 %v2696, %v2703
          %v2706 = vshrl.u32 %v2688, %v2704
          %v2707 = vor.u32 %v2705, %v2706
          %v2708 = vsub.s32 4294967266, %v2703
          %v2709 = vadd.s32 %v2708, 127
          %v2710 = vshll.u32 %v2709, 23
          %v2711 = vor.u32 4788187, %v2710
          %v2712 = vand.u32 2147483647, %v2711
          %v2714 = vcvt.s32.f32 %v2707
          %v2715 = vmul.f32 %v2714, %v2712
          %v2716 = vxor.u32 %v2715, 2147483648
          %v2717 = vsel %vm2634, %v2716, %v2715
          %v2718 = vsub.s32 4, %v2694
          %v2719 = vsel %vm2634, %v2718, %v2694
          %v2720 = vsel %vm2633, %v2527, %v2717
          %v2721 = vsel %vm2633, 0, %v2719
          %v2722 = vcosq.f32.pop %v2720
          %v2723 = vsinq.f32.pop %v2720
          %vm2724 = vweird.f32 %v2527
          %v2725 = vadd.s32 %v2721, 3
          %v2726 = vand.u32 %v2725, 3
          %vm2727 = vcmp.lt.s32.totalorder %v2726, 2
          %vm2728 = vcmp.eq.s32.totalorder %v2726, 0
          %v2729 = vxor.u32 %v2723, 2147483648
          %v2730 = vsel %vm2728, %v2722, %v2729
          %vm2731 = vcmp.eq.s32.totalorder %v2726, 2
          %v2732 = vxor.u32 %v2722, 2147483648
          %v2733 = vsel %vm2731, %v2732, %v2723
          %v2734 = vsel %vm2727, %v2730, %v2733
          %v2735 = vsel %vm2724, nan, %v2734
          %v2736 = vstv %s2525
          %v2737 = vmul.f32 %v2736, %v2631
          %v2738 = vmul.f32 %v2736, %v2735
          %v2739 = vadd.f32 %v2505, %v2737
          %v2740 = vadd.f32 %v2506, %v2738
          %v2741 = vld [vmem:[%s379 + $0x7] sm:$0x1]
          %v2742 = vld [vmem:[%s379 + $0xf] sm:$0x1]
          %v2743 = vlaneseq
          %v2744 = vshrl.u32 %v2743, 7
          %v2745 = vsub.s32 0, %v2744
          %v2746 = vrot.slane %v2741, %v2745
          %v2747 = vmul.f32 %v440, %v2746
          %v2748 = vmul.f32 %v441, %v2746
          %v2749 = vlaneseq
          %v2750 = vshrl.u32 %v2749, 7
          %v2751 = vsub.s32 0, %v2750
          %v2752 = vrot.slane %v2742, %v2751
          %v2753 = vadd.f32 %v2752, %v2747
          %v2754 = vadd.f32 %v2752, %v2748
          %v2755 = vfloor.f32 %v2753
          %v2756 = vfloor.f32 %v2754
          %v2757 = vsub.f32 %v2753, %v2755
          %v2758 = vsub.f32 %v2754, %v2756
          %s2759 = sld [smem:[#allocation4 + $0x7]]
          %v2760 = vmul.f32 %v2757, 6.2831855
          %v2761 = vmul.f32 %v2758, 6.2831855
          %v2762 = vand.u32 2147483647, %v2760
          %vm2763 = vcmp.le.f32.partialorder %v2762, 0.7853982
          %vm2764 = vcmp.lt.s32.totalorder %v2760, 0
          %v2765 = vand.u32 %v2760, 2139095040
          %v2766 = vshrl.u32 %v2765, 23
          %v2767 = vsub.s32 %v2766, 127
          %v2768 = vand.u32 2147483647, %v2760
          %v2769 = vand.u32 %v2768, 8388607
          %v2770 = vor.u32 %v2769, 8388608
          %v2771 = vsub.s32 0, %v2770
          %v2772 = vadd.s32 %v2767, 1
          %vm2773 = vcmp.gt.s32.totalorder %v2772, 0
          %v2774 = vsel %vm2773, %v2772, 0
          %v2775 = vshrl.u32 %v2774, 5
          %v2776 = vand.u32 %v2774, 31
          %v2777 = vsub.s32 32, %v2776
          %v2778 = vshrl.u32 683565275, %v2777
          %v2779 = vshll.u32 683565275, %v2776
          %v2780 = vshrl.u32 2475754826, %v2777
          %v2781 = vor.u32 %v2779, %v2780
          %v2782 = vshll.u32 2475754826, %v2776
          %v2783 = vshrl.u32 2131351028, %v2777
          %v2784 = vor.u32 %v2782, %v2783
          %v2785 = vshll.u32 2131351028, %v2776
          %v2786 = vshrl.u32 2102212464, %v2777
          %v2787 = vor.u32 %v2785, %v2786
          %v2788 = vshll.u32 2102212464, %v2776
          %v2789 = vshrl.u32 920167782, %v2777
          %v2790 = vor.u32 %v2788, %v2789
          %v2791 = vshll.u32 920167782, %v2776
          %v2792 = vshrl.u32 1326507024, %v2777
          %v2793 = vor.u32 %v2791, %v2792
          %vm2794 = vcmp.lt.s32.totalorder %v2775, 1
          %vm2795 = vcmp.lt.s32.totalorder %v2775, 2
          %vm2796 = vcmp.lt.s32.totalorder %v2775, 3
          %vm2797 = vcmp.lt.s32.totalorder %v2775, 4
          %v2798 = vsel %vm2794, %v2778, %v2781
          %v2799 = vsel %vm2797, %v2787, 2102212464
          %v2800 = vsel %vm2796, %v2784, %v2799
          %v2801 = vsel %vm2795, %v2798, %v2800
          %v2802 = vsel %vm2794, %v2781, %v2784
          %v2803 = vsel %vm2797, %v2790, 920167782
          %v2804 = vsel %vm2796, %v2787, %v2803
          %v2805 = vsel %vm2795, %v2802, %v2804
          %v2806 = vsel %vm2794, %v2784, %v2787
          %v2807 = vsel %vm2797, %v2793, 1326507024
          %v2808 = vsel %vm2796, %v2790, %v2807
          %v2809 = vsel %vm2795, %v2806, %v2808
          %v2810 = vshll.u32 %v2770, 8
          %v2811 = vmul.u32.u64.compose %v2810, %v2809
          %v2812 = vextract.low.u32 %v2811
          %v2813 = vextract.high.u32 %v2811
          %v2814 = vmul.u32.u64.compose %v2810, %v2805
          %v2815 = vextract.low.u32 %v2814
          %v2816 = vextract.high.u32 %v2814
          %v2817 = vmul.u32 %v2810, %v2801
          %v2818 = vadd.s32 %v2813, %v2815
          %vm2819 = vc.u32 %v2813, %v2815
          %v2820 = vadd.s32 %v2816, 1
          %v2821 = vsel %vm2819, %v2820, %v2816
          %v2822 = vadd.s32 %v2817, %v2821
          %v2823 = vadd.s32 %v2822, 536870912
          %v2824 = vshrl.u32 %v2823, 30
          %v2825 = vshll.u32 %v2824, 30
          %v2826 = vsub.s32 %v2822, %v2825
          %vm2827 = vcmp.lt.s32.totalorder %v2826, 0
          %v2828 = vsub.s32 0, %v2826
          %v2829 = vsel %vm2827, %v2828, %v2826
          %v2830 = vclz %v2829
          %v2831 = vsub.s32 %v2830, 2
          %vm2832 = vcmp.gt.s32.totalorder 0, %v2831
          %v2833 = vsel %vm2832, 0, %v2831
          %v2834 = vsub.s32 32, %v2833
          %v2835 = vshll.u32 %v2826, %v2833
          %v2836 = vshrl.u32 %v2818, %v2834
          %v2837 = vor.u32 %v2835, %v2836
          %v2838 = vsub.s32 4294967266, %v2833
          %v2839 = vadd.s32 %v2838, 127
          %v2840 = vshll.u32 %v2839, 23
          %v2841 = vor.u32 4788187, %v2840
          %v2842 = vand.u32 2147483647, %v2841
          %v2844 = vcvt.s32.f32 %v2837
          %v2845 = vmul.f32 %v2844, %v2842
          %v2846 = vxor.u32 %v2845, 2147483648
          %v2847 = vsel %vm2764, %v2846, %v2845
          %v2848 = vsub.s32 4, %v2824
          %v2849 = vsel %vm2764, %v2848, %v2824
          %v2850 = vsel %vm2763, %v2760, %v2847
          %v2851 = vsel %vm2763, 0, %v2849
          %v2852 = vcosq.f32.pop %v2850
          %v2853 = vsinq.f32.pop %v2850
          %vm2854 = vweird.f32 %v2760
          %v2855 = vadd.s32 %v2851, 3
          %v2856 = vand.u32 %v2855, 3
          %vm2857 = vcmp.lt.s32.totalorder %v2856, 2
          %vm2858 = vcmp.eq.s32.totalorder %v2856, 0
          %v2859 = vxor.u32 %v2853, 2147483648
          %v2860 = vsel %vm2858, %v2852, %v2859
          %vm2861 = vcmp.eq.s32.totalorder %v2856, 2
          %v2862 = vxor.u32 %v2852, 2147483648
          %v2863 = vsel %vm2861, %v2862, %v2853
          %v2864 = vsel %vm2857, %v2860, %v2863
          %v2865 = vsel %vm2854, nan, %v2864
          %v2866 = vand.u32 2147483647, %v2761
          %vm2867 = vcmp.le.f32.partialorder %v2866, 0.7853982
          %vm2868 = vcmp.lt.s32.totalorder %v2761, 0
          %v2869 = vand.u32 %v2761, 2139095040
          %v2870 = vshrl.u32 %v2869, 23
          %v2871 = vsub.s32 %v2870, 127
          %v2872 = vand.u32 2147483647, %v2761
          %v2873 = vand.u32 %v2872, 8388607
          %v2874 = vor.u32 %v2873, 8388608
          %v2875 = vsub.s32 0, %v2874
          %v2876 = vadd.s32 %v2871, 1
          %vm2877 = vcmp.gt.s32.totalorder %v2876, 0
          %v2878 = vsel %vm2877, %v2876, 0
          %v2879 = vshrl.u32 %v2878, 5
          %v2880 = vand.u32 %v2878, 31
          %v2881 = vsub.s32 32, %v2880
          %v2882 = vshrl.u32 683565275, %v2881
          %v2883 = vshll.u32 683565275, %v2880
          %v2884 = vshrl.u32 2475754826, %v2881
          %v2885 = vor.u32 %v2883, %v2884
          %v2886 = vshll.u32 2475754826, %v2880
          %v2887 = vshrl.u32 2131351028, %v2881
          %v2888 = vor.u32 %v2886, %v2887
          %v2889 = vshll.u32 2131351028, %v2880
          %v2890 = vshrl.u32 2102212464, %v2881
          %v2891 = vor.u32 %v2889, %v2890
          %v2892 = vshll.u32 2102212464, %v2880
          %v2893 = vshrl.u32 920167782, %v2881
          %v2894 = vor.u32 %v2892, %v2893
          %v2895 = vshll.u32 920167782, %v2880
          %v2896 = vshrl.u32 1326507024, %v2881
          %v2897 = vor.u32 %v2895, %v2896
          %vm2898 = vcmp.lt.s32.totalorder %v2879, 1
          %vm2899 = vcmp.lt.s32.totalorder %v2879, 2
          %vm2900 = vcmp.lt.s32.totalorder %v2879, 3
          %vm2901 = vcmp.lt.s32.totalorder %v2879, 4
          %v2902 = vsel %vm2898, %v2882, %v2885
          %v2903 = vsel %vm2901, %v2891, 2102212464
          %v2904 = vsel %vm2900, %v2888, %v2903
          %v2905 = vsel %vm2899, %v2902, %v2904
          %v2906 = vsel %vm2898, %v2885, %v2888
          %v2907 = vsel %vm2901, %v2894, 920167782
          %v2908 = vsel %vm2900, %v2891, %v2907
          %v2909 = vsel %vm2899, %v2906, %v2908
          %v2910 = vsel %vm2898, %v2888, %v2891
          %v2911 = vsel %vm2901, %v2897, 1326507024
          %v2912 = vsel %vm2900, %v2894, %v2911
          %v2913 = vsel %vm2899, %v2910, %v2912
          %v2914 = vshll.u32 %v2874, 8
          %v2915 = vmul.u32.u64.compose %v2914, %v2913
          %v2916 = vextract.low.u32 %v2915
          %v2917 = vextract.high.u32 %v2915
          %v2918 = vmul.u32.u64.compose %v2914, %v2909
          %v2919 = vextract.low.u32 %v2918
          %v2920 = vextract.high.u32 %v2918
          %v2921 = vmul.u32 %v2914, %v2905
          %v2922 = vadd.s32 %v2917, %v2919
          %vm2923 = vc.u32 %v2917, %v2919
          %v2924 = vadd.s32 %v2920, 1
          %v2925 = vsel %vm2923, %v2924, %v2920
          %v2926 = vadd.s32 %v2921, %v2925
          %v2927 = vadd.s32 %v2926, 536870912
          %v2928 = vshrl.u32 %v2927, 30
          %v2929 = vshll.u32 %v2928, 30
          %v2930 = vsub.s32 %v2926, %v2929
          %vm2931 = vcmp.lt.s32.totalorder %v2930, 0
          %v2932 = vsub.s32 0, %v2930
          %v2933 = vsel %vm2931, %v2932, %v2930
          %v2934 = vclz %v2933
          %v2935 = vsub.s32 %v2934, 2
          %vm2936 = vcmp.gt.s32.totalorder 0, %v2935
          %v2937 = vsel %vm2936, 0, %v2935
          %v2938 = vsub.s32 32, %v2937
          %v2939 = vshll.u32 %v2930, %v2937
          %v2940 = vshrl.u32 %v2922, %v2938
          %v2941 = vor.u32 %v2939, %v2940
          %v2942 = vsub.s32 4294967266, %v2937
          %v2943 = vadd.s32 %v2942, 127
          %v2944 = vshll.u32 %v2943, 23
          %v2945 = vor.u32 4788187, %v2944
          %v2946 = vand.u32 2147483647, %v2945
          %v2948 = vcvt.s32.f32 %v2941
          %v2949 = vmul.f32 %v2948, %v2946
          %v2950 = vxor.u32 %v2949, 2147483648
          %v2951 = vsel %vm2868, %v2950, %v2949
          %v2952 = vsub.s32 4, %v2928
          %v2953 = vsel %vm2868, %v2952, %v2928
          %v2954 = vsel %vm2867, %v2761, %v2951
          %v2955 = vsel %vm2867, 0, %v2953
          %v2956 = vcosq.f32.pop %v2954
          %v2957 = vsinq.f32.pop %v2954
          %vm2958 = vweird.f32 %v2761
          %v2959 = vadd.s32 %v2955, 3
          %v2960 = vand.u32 %v2959, 3
          %vm2961 = vcmp.lt.s32.totalorder %v2960, 2
          %vm2962 = vcmp.eq.s32.totalorder %v2960, 0
          %v2963 = vxor.u32 %v2957, 2147483648
          %v2964 = vsel %vm2962, %v2956, %v2963
          %vm2965 = vcmp.eq.s32.totalorder %v2960, 2
          %v2966 = vxor.u32 %v2956, 2147483648
          %v2967 = vsel %vm2965, %v2966, %v2957
          %v2968 = vsel %vm2961, %v2964, %v2967
          %v2969 = vsel %vm2958, nan, %v2968
          %v2970 = vstv %s2759
          %v2971 = vmul.f32 %v2970, %v2865
          %v2972 = vmul.f32 %v2970, %v2969
          %v2973 = vadd.f32 %v2739, %v2971
          %v2974 = vadd.f32 %v2740, %v2972
          %v2975 = vmul.f32 %v434, 0.1
          %v2976 = vlaneseq
          %v2977 = vshrl.u32 %v2976, 7
          %v2978 = vsub.s32 0, %v2977
          %v2979 = vrot.slane %v2975, %v2978
          %v2980 = vmul.f32 %v2979, %v2973
          %v2981 = vmul.f32 %v2979, %v2974
          %v2982 = vadd.f32 %v2980, %v462
          %v2983 = vadd.f32 %v2981, %v463
          %v2984 = vtanh.pop %v2982
          %v2985 = vtanh.pop %v2983
          %2986 = vst [vmem:[%s433] sm:$0xff] %v2984
          %2987 = vst [vmem:[%s433 + $0x8] sm:$0xff] %v2985
        $region147: #{tpu_custom_call.1} parent=114 // pred_fallthru
          _
        %s2988 = sand.u32 %s185, 1
        %s2989 = scalar_lea.sflag [#allocation5], %s2988
        %s2990 = sand.u32 %s185, 1
        %s2991 = smul.addr %s2990, 16
        %s2992 = scalar_lea.vmem [#allocation12], %s2991
        // Predicated region
        $region148: #{tpu_custom_call.1} parent=114 // pred_check
          %p2993 = pneg %p195
        $region149: #{tpu_custom_call.1} parent=114 // pred_check_branch
          %2995 = sbr.rel (%p2993) target = $region151
        $region150: #{tpu_custom_call.1} parent=114 // pred_region
          %s2997 = ssub.s32 256, 256
          %2998 = vsyncadd %s2989, %s2997
          %s2999 = smul.addr %s27, 4
          %s3000 = sadd.s32 %s28, %s2999
          %s3001 = smul.addr %s3000, 128
          %s3002 = scalar_lea.hbm %s6, %s3001
          %s3003 = sshll.u32 %s2992, 4
          %s3004 = int_to_ptr.vmem [resolvable:$true] %s3003
          %3009 = dma.vmem_to_hbm [thread:$0]  %s3004, 256, %s3002, %s2989, 128, 256, 8
        $region151: #{tpu_custom_call.1} parent=114 // pred_fallthru
          _
      $region115: #{tpu_custom_call.1} parent=5 // pred_fallthru
        _
      %p3010 = scmp.le.s32.totalorder 2, %s18
      // Predicated region
      $region152: #{tpu_custom_call.1} parent=5 // pred_check
        %p3011 = pneg %p3010
      $region153: #{tpu_custom_call.1} parent=5 // pred_check_branch
        %3013 = sbr.rel (%p3011) target = $region155
      $region154: #{tpu_custom_call.1} parent=5 // pred_region
        %s3014 = ssub.s32 %s18, 2
        // Predicated region
        $region156: #{tpu_custom_call.1} parent=154 // pred_check
          %p3015 = pneg %p201
        $region157: #{tpu_custom_call.1} parent=154 // pred_check_branch
          %3017 = sbr.rel (%p3015) target = $region159
        $region158: #{tpu_custom_call.1} parent=154 // pred_region
          %s3018 = sand.u32 %s186, 1
          %s3019 = scalar_lea.sflag [#allocation5], %s3018
          %s3020 = sand.u32 %s186, 1
          %s3021 = smul.addr %s3020, 16
          %s3022 = scalar_lea.vmem [#allocation12], %s3021
          %3023 = dma.done %s3019, 256
        $region159: #{tpu_custom_call.1} parent=154 // pred_fallthru
          _
      $region155: #{tpu_custom_call.1} parent=5 // pred_fallthru
        _
    $region6: #{tpu_custom_call.1} parent=1 // loop_footer
      %s22 = sadd.s32 1, %s18
    $region7: #{tpu_custom_call.1} parent=1 // loop_footer_branch
      %17 = sbr.rel target = $region3
    $region8: #{tpu_custom_call.1} parent=1 // loop_exit
      _
    %3024 = vsyncpa [#allocation5], 1
    %s3025 = scalar_lea.sflag [#allocation5], 1
    %3026 = vsyncpa %s3025, 1
    %3027 = vsyncpa [#allocation6], 1
    %s3028 = scalar_lea.sflag [#allocation6], 1
    %3029 = vsyncpa %s3028, 1
    %3030 = vsyncpa [#allocation8], 1
    %3031 = vsyncpa [#allocation11], 1

</llo_original>
